<compile_context>
chip_gen: v7x
topology: tpu7x:2x2x1
jax: 0.10.0
libtpu: 0.0.40
codegen_flags: <defaults>
</compile_context>

<pallas_src>
import functools

import jax
import jax.numpy as jnp
from jax import lax
from jax.experimental import pallas as pl
from jax.experimental.pallas import tpu as pltpu

DTYPE = jnp.float32
LN_EPS = 1e-5


# --------------------------- fused forward kernel ---------------------------

def _transformer_kernel(n_head,
                        src_ref, w_in_ref, b_in_ref,
                        wqkv_ref, bqkv_ref, wo_ref, bo_ref,
                        ln1g_ref, ln1b_ref,
                        w1_ref, b1_ref, w2_ref, b2_ref,
                        ln2g_ref, ln2b_ref,
                        hlng_ref, hlnb_ref, wh_ref, bh_ref,
                        o_ref):
    B, S, F = src_ref.shape
    D = w_in_ref.shape[1]
    H = n_head
    Dh = D // H
    L = wqkv_ref.shape[0]
    C = wh_ref.shape[2]

    def layernorm(x, g, b):
        xf = x.astype(jnp.float32)
        mu = jnp.mean(xf, axis=-1, keepdims=True)
        var = jnp.mean((xf - mu) ** 2, axis=-1, keepdims=True)
        y = (xf - mu) * lax.rsqrt(var + LN_EPS)
        return y * g + b

    # ---- encoder input layer: (B*S, F) @ (F, D) + b ----
    x = src_ref[...].reshape(B * S, F).astype(jnp.float32)
    x = jnp.dot(x, w_in_ref[...], preferred_element_type=jnp.float32) + b_in_ref[...]

    scale = 1.0 / (Dh ** 0.5)

    # ---- encoder layers (unrolled at trace time; L is static) ----
    for li in range(L):
        wqkv_l = wqkv_ref[li]
        bqkv_l = bqkv_ref[li]
        wo_l = wo_ref[li]
        bo_l = bo_ref[li]

        resid = x
        qkv = jnp.dot(x, wqkv_l, preferred_element_type=jnp.float32) + bqkv_l
        q = qkv[:, 0 * D:1 * D]
        k = qkv[:, 1 * D:2 * D]
        v = qkv[:, 2 * D:3 * D]

        # Multi-head attention: per-head (static loop), batched over B.
        # Output projection is folded in per head:  attn @ Wo == sum_h oh @ Wo[h]
        attn = jnp.zeros((B * S, D), jnp.float32)
        for h in range(H):
            lo, hi = h * Dh, (h + 1) * Dh
            qh = q[:, lo:hi].reshape(B, S, Dh)
            kh = k[:, lo:hi].reshape(B, S, Dh)
            vh = v[:, lo:hi].reshape(B, S, Dh)
            sc = jnp.einsum('bqd,bkd->bqk', qh, kh,
                            preferred_element_type=jnp.float32) * scale
            sc = sc - jnp.max(sc, axis=-1, keepdims=True)
            p = jnp.exp(sc)
            p = p * pl.reciprocal(jnp.sum(p, axis=-1, keepdims=True), approx=True)
            oh = jnp.einsum('bqk,bkd->bqd', p, vh,
                            preferred_element_type=jnp.float32)
            attn = attn + jnp.dot(oh.reshape(B * S, Dh), wo_l[lo:hi, :],
                                  preferred_element_type=jnp.float32)
        attn = attn + bo_l
        x = layernorm(attn + resid, ln1g_ref[li], ln1b_ref[li])

        # Feed-forward (ReLU); dropout = identity in eval mode.
        resid = x
        ff = jnp.dot(x, w1_ref[li], preferred_element_type=jnp.float32) + b1_ref[li]
        ff = jnp.maximum(ff, 0.0)
        ff = jnp.dot(ff, w2_ref[li], preferred_element_type=jnp.float32) + b2_ref[li]
        x = layernorm(ff + resid, ln2g_ref[li], ln2b_ref[li])

    # ---- classification head: LayerNorm -> flatten -> Linear(S*D, C) ----
    xn = layernorm(x, hlng_ref[...], hlnb_ref[...])
    x3 = xn.reshape(B, S, D)
    acc = jnp.zeros((B, C), jnp.float32)
    for s in range(S):                       # flatten expressed as sum of matmuls
        acc = acc + jnp.dot(x3[:, s, :], wh_ref[s],
                            preferred_element_type=jnp.float32)
    o_ref[...] = (acc + bh_ref[...]).astype(o_ref.dtype)


def make_transformer_forward(n_head):
    kernel = functools.partial(_transformer_kernel, n_head)

    @jax.jit
    def forward(params, src):
        B, S, _ = src.shape
        C = params["bh"].shape[1]
        inputs = (
            src, params["w_in"], params["b_in"],
            params["wqkv"], params["bqkv"], params["wo"], params["bo"],
            params["ln1g"], params["ln1b"],
            params["w1"], params["b1"], params["w2"], params["b2"],
            params["ln2g"], params["ln2b"],
            params["hlng"], params["hlnb"], params["wh"], params["bh"],
        )
        vspec = pl.BlockSpec(memory_space=pltpu.MemorySpace.VMEM)
        return pl.pallas_call(
            kernel,
            out_shape=jax.ShapeDtypeStruct((B, C), src.dtype),
            in_specs=[vspec] * len(inputs),
            out_specs=vspec,
        )(*inputs)

    return forward


# --------------------------- parameter init ---------------------------------

def init_linear(key, fan_in, fan_out):
    # matches torch.nn.Linear default: U(-1/sqrt(fan_in), 1/sqrt(fan_in))
    kw, kb = jax.random.split(key)
    bound = 1.0 / (fan_in ** 0.5)
    w = jax.random.uniform(kw, (fan_in, fan_out), DTYPE, -bound, bound)
    b = jax.random.uniform(kb, (1, fan_out), DTYPE, -bound, bound)
    return w, b


def init_params(key, *, in_features, d_model, ffn_hidden, n_layers,
                seq_len, n_classes):
    keys = jax.random.split(key, n_layers + 2)
    w_in, b_in = init_linear(keys[0], in_features, d_model)

    wqkv, bqkv, wo, bo = [], [], [], []
    ln1g, ln1b, ln2g, ln2b = [], [], [], []
    w1, b1, w2, b2 = [], [], [], []
    for li in range(n_layers):
        lk = jax.random.split(keys[1 + li], 6)
        wq, bq = init_linear(lk[0], d_model, d_model)
        wk, bk = init_linear(lk[1], d_model, d_model)
        wv, bv = init_linear(lk[2], d_model, d_model)
        wqkv.append(jnp.concatenate([wq, wk, wv], axis=1))    # (D, 3D)
        bqkv.append(jnp.concatenate([bq, bk, bv], axis=1))    # (1, 3D)
        w, b = init_linear(lk[3], d_model, d_model); wo.append(w); bo.append(b)
        ln1g.append(jnp.ones((1, d_model), DTYPE)); ln1b.append(jnp.zeros((1, d_model), DTYPE))
        w, b = init_linear(lk[4], d_model, ffn_hidden); w1.append(w); b1.append(b)
        w, b = init_linear(lk[5], ffn_hidden, d_model); w2.append(w); b2.append(b)
        ln2g.append(jnp.ones((1, d_model), DTYPE)); ln2b.append(jnp.zeros((1, d_model), DTYPE))

    wh, bh = init_linear(keys[-1], seq_len * d_model, n_classes)

    return dict(
        w_in=w_in, b_in=b_in,
        wqkv=jnp.stack(wqkv), bqkv=jnp.stack(bqkv),
        wo=jnp.stack(wo), bo=jnp.stack(bo),
        ln1g=jnp.stack(ln1g), ln1b=jnp.stack(ln1b),
        w1=jnp.stack(w1), b1=jnp.stack(b1),
        w2=jnp.stack(w2), b2=jnp.stack(b2),
        ln2g=jnp.stack(ln2g), ln2b=jnp.stack(ln2b),
        hlng=jnp.ones((1, d_model), DTYPE), hlnb=jnp.zeros((1, d_model), DTYPE),
        # head weight reshaped to (S, D, C) so flatten == row-major (s*D + d)
        wh=wh.reshape(seq_len, d_model, n_classes), bh=bh,
    )


# --------------------------- demo --------------------------------------------

if __name__ == "__main__":
    # small shapes consistent with the module (in_features=73 is fixed by it)
    B = 2            # batch
    S = 8            # seq_len
    F = 73           # encoder input features
    D_MODEL = 32
    N_HEAD = 4
    FFN_HIDDEN = 64
    N_LAYERS = 2
    N_CLASSES = 1

    key = jax.random.PRNGKey(0)
    pkey, xkey = jax.random.split(key)
    params = init_params(
        pkey, in_features=F, d_model=D_MODEL, ffn_hidden=FFN_HIDDEN,
        n_layers=N_LAYERS, seq_len=S, n_classes=N_CLASSES,
    )
    src = jax.random.normal(xkey, (B, S, F), dtype=DTYPE)

    forward = make_transformer_forward(N_HEAD)
    out = jax.block_until_ready(forward(params, src))

    assert out.shape == (B, N_CLASSES), out.shape
    assert bool(jnp.all(jnp.isfinite(out)))
    print("KERNEL_OK")
</pallas_src>

<mosaic_0001>
module attributes {stable_mosaic.version = 11 : i64} {
  func.func @_transformer_kernel(%arg0: memref<2x8x73xf32, #tpu.memory_space<vmem>>, %arg1: memref<73x32xf32, #tpu.memory_space<vmem>>, %arg2: memref<1x32xf32, #tpu.memory_space<vmem>>, %arg3: memref<2x32x96xf32, #tpu.memory_space<vmem>>, %arg4: memref<2x1x96xf32, #tpu.memory_space<vmem>>, %arg5: memref<2x32x32xf32, #tpu.memory_space<vmem>>, %arg6: memref<2x1x32xf32, #tpu.memory_space<vmem>>, %arg7: memref<2x1x32xf32, #tpu.memory_space<vmem>>, %arg8: memref<2x1x32xf32, #tpu.memory_space<vmem>>, %arg9: memref<2x32x64xf32, #tpu.memory_space<vmem>>, %arg10: memref<2x1x64xf32, #tpu.memory_space<vmem>>, %arg11: memref<2x64x32xf32, #tpu.memory_space<vmem>>, %arg12: memref<2x1x32xf32, #tpu.memory_space<vmem>>, %arg13: memref<2x1x32xf32, #tpu.memory_space<vmem>>, %arg14: memref<2x1x32xf32, #tpu.memory_space<vmem>>, %arg15: memref<1x32xf32, #tpu.memory_space<vmem>>, %arg16: memref<1x32xf32, #tpu.memory_space<vmem>>, %arg17: memref<8x32x1xf32, #tpu.memory_space<vmem>>, %arg18: memref<1x1xf32, #tpu.memory_space<vmem>>, %arg19: memref<2x1xf32, #tpu.memory_space<vmem>>) attributes {dimension_semantics = [], scalar_prefetch = 0 : i64, scratch_operands = 0 : i64, tpu.core_type = #tpu.core_type<tc>} {
    %c0 = arith.constant 0 : index
    %c0_0 = arith.constant 0 : index
    %c0_1 = arith.constant 0 : index
    %0 = vector.load %arg0[%c0, %c0_0, %c0_1] : memref<2x8x73xf32, #tpu.memory_space<vmem>>, vector<2x8x73xf32>
    %1 = vector.shape_cast %0 : vector<2x8x73xf32> to vector<16x73xf32>
    %c0_2 = arith.constant 0 : index
    %c0_3 = arith.constant 0 : index
    %2 = vector.load %arg1[%c0_2, %c0_3] : memref<73x32xf32, #tpu.memory_space<vmem>>, vector<73x32xf32>
    %cst = arith.constant dense<0.000000e+00> : vector<16x32xf32>
    %3 = tpu.matmul %1, %2, %cst {dimension_numbers = #tpu.dot_dimension_numbers<[1], [0], [0], [1], [0, 0, 1, 1], [], []>} : vector<16x73xf32>, vector<73x32xf32>, vector<16x32xf32> -> vector<16x32xf32>
    %c0_4 = arith.constant 0 : index
    %c0_5 = arith.constant 0 : index
    %4 = vector.load %arg2[%c0_4, %c0_5] : memref<1x32xf32, #tpu.memory_space<vmem>>, vector<1x32xf32>
    %5 = vector.broadcast %4 : vector<1x32xf32> to vector<16x32xf32>
    %6 = arith.addf %3, %5 : vector<16x32xf32>
    %c0_6 = arith.constant 0 : index
    %c0_7 = arith.constant 0 : index
    %c0_8 = arith.constant 0 : index
    %7 = vector.load %arg3[%c0_6, %c0_7, %c0_8] : memref<2x32x96xf32, #tpu.memory_space<vmem>>, vector<1x32x96xf32>
    %8 = vector.shape_cast %7 : vector<1x32x96xf32> to vector<32x96xf32>
    %c0_9 = arith.constant 0 : index
    %c0_10 = arith.constant 0 : index
    %c0_11 = arith.constant 0 : index
    %9 = vector.load %arg4[%c0_9, %c0_10, %c0_11] : memref<2x1x96xf32, #tpu.memory_space<vmem>>, vector<1x1x96xf32>
    %10 = vector.shape_cast %9 : vector<1x1x96xf32> to vector<1x96xf32>
    %c0_12 = arith.constant 0 : index
    %c0_13 = arith.constant 0 : index
    %c0_14 = arith.constant 0 : index
    %11 = vector.load %arg5[%c0_12, %c0_13, %c0_14] : memref<2x32x32xf32, #tpu.memory_space<vmem>>, vector<1x32x32xf32>
    %12 = vector.shape_cast %11 : vector<1x32x32xf32> to vector<32x32xf32>
    %c0_15 = arith.constant 0 : index
    %c0_16 = arith.constant 0 : index
    %c0_17 = arith.constant 0 : index
    %13 = vector.load %arg6[%c0_15, %c0_16, %c0_17] : memref<2x1x32xf32, #tpu.memory_space<vmem>>, vector<1x1x32xf32>
    %14 = vector.shape_cast %13 : vector<1x1x32xf32> to vector<1x32xf32>
    %cst_18 = arith.constant dense<0.000000e+00> : vector<16x96xf32>
    %15 = tpu.matmul %6, %8, %cst_18 {dimension_numbers = #tpu.dot_dimension_numbers<[1], [0], [0], [1], [0, 0, 1, 1], [], []>} : vector<16x32xf32>, vector<32x96xf32>, vector<16x96xf32> -> vector<16x96xf32>
    %16 = vector.broadcast %10 : vector<1x96xf32> to vector<16x96xf32>
    %17 = arith.addf %15, %16 : vector<16x96xf32>
    %18 = vector.extract_strided_slice %17 {offsets = [0, 0], sizes = [16, 32], strides = [1, 1]} : vector<16x96xf32> to vector<16x32xf32>
    %19 = vector.extract_strided_slice %17 {offsets = [0, 32], sizes = [16, 32], strides = [1, 1]} : vector<16x96xf32> to vector<16x32xf32>
    %20 = vector.extract_strided_slice %17 {offsets = [0, 64], sizes = [16, 32], strides = [1, 1]} : vector<16x96xf32> to vector<16x32xf32>
    %cst_19 = arith.constant 0.000000e+00 : f32
    %21 = vector.broadcast %cst_19 : f32 to vector<16x32xf32>
    %22 = vector.extract_strided_slice %18 {offsets = [0, 0], sizes = [16, 8], strides = [1, 1]} : vector<16x32xf32> to vector<16x8xf32>
    %23 = vector.shape_cast %22 : vector<16x8xf32> to vector<2x8x8xf32>
    %24 = vector.extract_strided_slice %19 {offsets = [0, 0], sizes = [16, 8], strides = [1, 1]} : vector<16x32xf32> to vector<16x8xf32>
    %25 = vector.shape_cast %24 : vector<16x8xf32> to vector<2x8x8xf32>
    %26 = vector.extract_strided_slice %20 {offsets = [0, 0], sizes = [16, 8], strides = [1, 1]} : vector<16x32xf32> to vector<16x8xf32>
    %27 = vector.shape_cast %26 : vector<16x8xf32> to vector<2x8x8xf32>
    "tpu.trace_start"() <{level = 10 : i32, message = "bqd,bkd->bqk"}> : () -> ()
    %cst_20 = arith.constant dense<0.000000e+00> : vector<2x8x8xf32>
    %28 = tpu.matmul %23, %25, %cst_20 {dimension_numbers = #tpu.dot_dimension_numbers<[2], [2], [1], [1], [0, 0, 0, 1, 1, 1], [0], [0]>} : vector<2x8x8xf32>, vector<2x8x8xf32>, vector<2x8x8xf32> -> vector<2x8x8xf32>
    "tpu.trace_stop"() : () -> ()
    %cst_21 = arith.constant 0.353553385 : f32
    %29 = vector.broadcast %cst_21 : f32 to vector<2x8x8xf32>
    %30 = arith.mulf %28, %29 : vector<2x8x8xf32>
    %cst_22 = arith.constant dense<0xFF800000> : vector<2x8xf32>
    %31 = vector.multi_reduction <maximumf>, %30, %cst_22 [2] : vector<2x8x8xf32> to vector<2x8xf32>
    %32 = vector.shape_cast %31 : vector<2x8xf32> to vector<2x8x1xf32>
    %33 = vector.broadcast %32 : vector<2x8x1xf32> to vector<2x8x8xf32>
    %34 = arith.subf %30, %33 : vector<2x8x8xf32>
    %35 = math.exp %34 : vector<2x8x8xf32>
    %cst_23 = arith.constant dense<0.000000e+00> : vector<2x8xf32>
    %36 = vector.multi_reduction <add>, %35, %cst_23 [2] : vector<2x8x8xf32> to vector<2x8xf32>
    %37 = vector.shape_cast %36 : vector<2x8xf32> to vector<2x8x1xf32>
    %38 = tpu.reciprocal %37 {approx = true} : vector<2x8x1xf32> -> vector<2x8x1xf32>
    %39 = vector.broadcast %38 : vector<2x8x1xf32> to vector<2x8x8xf32>
    %40 = arith.mulf %35, %39 : vector<2x8x8xf32>
    "tpu.trace_start"() <{level = 10 : i32, message = "bqk,bkd->bqd"}> : () -> ()
    %cst_24 = arith.constant dense<0.000000e+00> : vector<2x8x8xf32>
    %41 = tpu.matmul %40, %27, %cst_24 {dimension_numbers = #tpu.dot_dimension_numbers<[2], [1], [1], [2], [0, 0, 0, 1, 1, 2], [0], [0]>} : vector<2x8x8xf32>, vector<2x8x8xf32>, vector<2x8x8xf32> -> vector<2x8x8xf32>
    "tpu.trace_stop"() : () -> ()
    %42 = vector.shape_cast %41 : vector<2x8x8xf32> to vector<16x8xf32>
    %43 = vector.extract_strided_slice %12 {offsets = [0, 0], sizes = [8, 32], strides = [1, 1]} : vector<32x32xf32> to vector<8x32xf32>
    %cst_25 = arith.constant dense<0.000000e+00> : vector<16x32xf32>
    %44 = tpu.matmul %42, %43, %cst_25 {dimension_numbers = #tpu.dot_dimension_numbers<[1], [0], [0], [1], [0, 0, 1, 1], [], []>} : vector<16x8xf32>, vector<8x32xf32>, vector<16x32xf32> -> vector<16x32xf32>
    %45 = arith.addf %21, %44 : vector<16x32xf32>
    %46 = vector.extract_strided_slice %18 {offsets = [0, 8], sizes = [16, 8], strides = [1, 1]} : vector<16x32xf32> to vector<16x8xf32>
    %47 = vector.shape_cast %46 : vector<16x8xf32> to vector<2x8x8xf32>
    %48 = vector.extract_strided_slice %19 {offsets = [0, 8], sizes = [16, 8], strides = [1, 1]} : vector<16x32xf32> to vector<16x8xf32>
    %49 = vector.shape_cast %48 : vector<16x8xf32> to vector<2x8x8xf32>
    %50 = vector.extract_strided_slice %20 {offsets = [0, 8], sizes = [16, 8], strides = [1, 1]} : vector<16x32xf32> to vector<16x8xf32>
    %51 = vector.shape_cast %50 : vector<16x8xf32> to vector<2x8x8xf32>
    "tpu.trace_start"() <{level = 10 : i32, message = "bqd,bkd->bqk"}> : () -> ()
    %cst_26 = arith.constant dense<0.000000e+00> : vector<2x8x8xf32>
    %52 = tpu.matmul %47, %49, %cst_26 {dimension_numbers = #tpu.dot_dimension_numbers<[2], [2], [1], [1], [0, 0, 0, 1, 1, 1], [0], [0]>} : vector<2x8x8xf32>, vector<2x8x8xf32>, vector<2x8x8xf32> -> vector<2x8x8xf32>
    "tpu.trace_stop"() : () -> ()
    %cst_27 = arith.constant 0.353553385 : f32
    %53 = vector.broadcast %cst_27 : f32 to vector<2x8x8xf32>
    %54 = arith.mulf %52, %53 : vector<2x8x8xf32>
    %cst_28 = arith.constant dense<0xFF800000> : vector<2x8xf32>
    %55 = vector.multi_reduction <maximumf>, %54, %cst_28 [2] : vector<2x8x8xf32> to vector<2x8xf32>
    %56 = vector.shape_cast %55 : vector<2x8xf32> to vector<2x8x1xf32>
    %57 = vector.broadcast %56 : vector<2x8x1xf32> to vector<2x8x8xf32>
    %58 = arith.subf %54, %57 : vector<2x8x8xf32>
    %59 = math.exp %58 : vector<2x8x8xf32>
    %cst_29 = arith.constant dense<0.000000e+00> : vector<2x8xf32>
    %60 = vector.multi_reduction <add>, %59, %cst_29 [2] : vector<2x8x8xf32> to vector<2x8xf32>
    %61 = vector.shape_cast %60 : vector<2x8xf32> to vector<2x8x1xf32>
    %62 = tpu.reciprocal %61 {approx = true} : vector<2x8x1xf32> -> vector<2x8x1xf32>
    %63 = vector.broadcast %62 : vector<2x8x1xf32> to vector<2x8x8xf32>
    %64 = arith.mulf %59, %63 : vector<2x8x8xf32>
    "tpu.trace_start"() <{level = 10 : i32, message = "bqk,bkd->bqd"}> : () -> ()
    %cst_30 = arith.constant dense<0.000000e+00> : vector<2x8x8xf32>
    %65 = tpu.matmul %64, %51, %cst_30 {dimension_numbers = #tpu.dot_dimension_numbers<[2], [1], [1], [2], [0, 0, 0, 1, 1, 2], [0], [0]>} : vector<2x8x8xf32>, vector<2x8x8xf32>, vector<2x8x8xf32> -> vector<2x8x8xf32>
    "tpu.trace_stop"() : () -> ()
    %66 = vector.shape_cast %65 : vector<2x8x8xf32> to vector<16x8xf32>
    %67 = vector.extract_strided_slice %12 {offsets = [8, 0], sizes = [8, 32], strides = [1, 1]} : vector<32x32xf32> to vector<8x32xf32>
    %cst_31 = arith.constant dense<0.000000e+00> : vector<16x32xf32>
    %68 = tpu.matmul %66, %67, %cst_31 {dimension_numbers = #tpu.dot_dimension_numbers<[1], [0], [0], [1], [0, 0, 1, 1], [], []>} : vector<16x8xf32>, vector<8x32xf32>, vector<16x32xf32> -> vector<16x32xf32>
    %69 = arith.addf %45, %68 : vector<16x32xf32>
    %70 = vector.extract_strided_slice %18 {offsets = [0, 16], sizes = [16, 8], strides = [1, 1]} : vector<16x32xf32> to vector<16x8xf32>
    %71 = vector.shape_cast %70 : vector<16x8xf32> to vector<2x8x8xf32>
    %72 = vector.extract_strided_slice %19 {offsets = [0, 16], sizes = [16, 8], strides = [1, 1]} : vector<16x32xf32> to vector<16x8xf32>
    %73 = vector.shape_cast %72 : vector<16x8xf32> to vector<2x8x8xf32>
    %74 = vector.extract_strided_slice %20 {offsets = [0, 16], sizes = [16, 8], strides = [1, 1]} : vector<16x32xf32> to vector<16x8xf32>
    %75 = vector.shape_cast %74 : vector<16x8xf32> to vector<2x8x8xf32>
    "tpu.trace_start"() <{level = 10 : i32, message = "bqd,bkd->bqk"}> : () -> ()
    %cst_32 = arith.constant dense<0.000000e+00> : vector<2x8x8xf32>
    %76 = tpu.matmul %71, %73, %cst_32 {dimension_numbers = #tpu.dot_dimension_numbers<[2], [2], [1], [1], [0, 0, 0, 1, 1, 1], [0], [0]>} : vector<2x8x8xf32>, vector<2x8x8xf32>, vector<2x8x8xf32> -> vector<2x8x8xf32>
    "tpu.trace_stop"() : () -> ()
    %cst_33 = arith.constant 0.353553385 : f32
    %77 = vector.broadcast %cst_33 : f32 to vector<2x8x8xf32>
    %78 = arith.mulf %76, %77 : vector<2x8x8xf32>
    %cst_34 = arith.constant dense<0xFF800000> : vector<2x8xf32>
    %79 = vector.multi_reduction <maximumf>, %78, %cst_34 [2] : vector<2x8x8xf32> to vector<2x8xf32>
    %80 = vector.shape_cast %79 : vector<2x8xf32> to vector<2x8x1xf32>
    %81 = vector.broadcast %80 : vector<2x8x1xf32> to vector<2x8x8xf32>
    %82 = arith.subf %78, %81 : vector<2x8x8xf32>
    %83 = math.exp %82 : vector<2x8x8xf32>
    %cst_35 = arith.constant dense<0.000000e+00> : vector<2x8xf32>
    %84 = vector.multi_reduction <add>, %83, %cst_35 [2] : vector<2x8x8xf32> to vector<2x8xf32>
    %85 = vector.shape_cast %84 : vector<2x8xf32> to vector<2x8x1xf32>
    %86 = tpu.reciprocal %85 {approx = true} : vector<2x8x1xf32> -> vector<2x8x1xf32>
    %87 = vector.broadcast %86 : vector<2x8x1xf32> to vector<2x8x8xf32>
    %88 = arith.mulf %83, %87 : vector<2x8x8xf32>
    "tpu.trace_start"() <{level = 10 : i32, message = "bqk,bkd->bqd"}> : () -> ()
    %cst_36 = arith.constant dense<0.000000e+00> : vector<2x8x8xf32>
    %89 = tpu.matmul %88, %75, %cst_36 {dimension_numbers = #tpu.dot_dimension_numbers<[2], [1], [1], [2], [0, 0, 0, 1, 1, 2], [0], [0]>} : vector<2x8x8xf32>, vector<2x8x8xf32>, vector<2x8x8xf32> -> vector<2x8x8xf32>
    "tpu.trace_stop"() : () -> ()
    %90 = vector.shape_cast %89 : vector<2x8x8xf32> to vector<16x8xf32>
    %91 = vector.extract_strided_slice %12 {offsets = [16, 0], sizes = [8, 32], strides = [1, 1]} : vector<32x32xf32> to vector<8x32xf32>
    %cst_37 = arith.constant dense<0.000000e+00> : vector<16x32xf32>
    %92 = tpu.matmul %90, %91, %cst_37 {dimension_numbers = #tpu.dot_dimension_numbers<[1], [0], [0], [1], [0, 0, 1, 1], [], []>} : vector<16x8xf32>, vector<8x32xf32>, vector<16x32xf32> -> vector<16x32xf32>
    %93 = arith.addf %69, %92 : vector<16x32xf32>
    %94 = vector.extract_strided_slice %18 {offsets = [0, 24], sizes = [16, 8], strides = [1, 1]} : vector<16x32xf32> to vector<16x8xf32>
    %95 = vector.shape_cast %94 : vector<16x8xf32> to vector<2x8x8xf32>
    %96 = vector.extract_strided_slice %19 {offsets = [0, 24], sizes = [16, 8], strides = [1, 1]} : vector<16x32xf32> to vector<16x8xf32>
    %97 = vector.shape_cast %96 : vector<16x8xf32> to vector<2x8x8xf32>
    %98 = vector.extract_strided_slice %20 {offsets = [0, 24], sizes = [16, 8], strides = [1, 1]} : vector<16x32xf32> to vector<16x8xf32>
    %99 = vector.shape_cast %98 : vector<16x8xf32> to vector<2x8x8xf32>
    "tpu.trace_start"() <{level = 10 : i32, message = "bqd,bkd->bqk"}> : () -> ()
    %cst_38 = arith.constant dense<0.000000e+00> : vector<2x8x8xf32>
    %100 = tpu.matmul %95, %97, %cst_38 {dimension_numbers = #tpu.dot_dimension_numbers<[2], [2], [1], [1], [0, 0, 0, 1, 1, 1], [0], [0]>} : vector<2x8x8xf32>, vector<2x8x8xf32>, vector<2x8x8xf32> -> vector<2x8x8xf32>
    "tpu.trace_stop"() : () -> ()
    %cst_39 = arith.constant 0.353553385 : f32
    %101 = vector.broadcast %cst_39 : f32 to vector<2x8x8xf32>
    %102 = arith.mulf %100, %101 : vector<2x8x8xf32>
    %cst_40 = arith.constant dense<0xFF800000> : vector<2x8xf32>
    %103 = vector.multi_reduction <maximumf>, %102, %cst_40 [2] : vector<2x8x8xf32> to vector<2x8xf32>
    %104 = vector.shape_cast %103 : vector<2x8xf32> to vector<2x8x1xf32>
    %105 = vector.broadcast %104 : vector<2x8x1xf32> to vector<2x8x8xf32>
    %106 = arith.subf %102, %105 : vector<2x8x8xf32>
    %107 = math.exp %106 : vector<2x8x8xf32>
    %cst_41 = arith.constant dense<0.000000e+00> : vector<2x8xf32>
    %108 = vector.multi_reduction <add>, %107, %cst_41 [2] : vector<2x8x8xf32> to vector<2x8xf32>
    %109 = vector.shape_cast %108 : vector<2x8xf32> to vector<2x8x1xf32>
    %110 = tpu.reciprocal %109 {approx = true} : vector<2x8x1xf32> -> vector<2x8x1xf32>
    %111 = vector.broadcast %110 : vector<2x8x1xf32> to vector<2x8x8xf32>
    %112 = arith.mulf %107, %111 : vector<2x8x8xf32>
    "tpu.trace_start"() <{level = 10 : i32, message = "bqk,bkd->bqd"}> : () -> ()
    %cst_42 = arith.constant dense<0.000000e+00> : vector<2x8x8xf32>
    %113 = tpu.matmul %112, %99, %cst_42 {dimension_numbers = #tpu.dot_dimension_numbers<[2], [1], [1], [2], [0, 0, 0, 1, 1, 2], [0], [0]>} : vector<2x8x8xf32>, vector<2x8x8xf32>, vector<2x8x8xf32> -> vector<2x8x8xf32>
    "tpu.trace_stop"() : () -> ()
    %114 = vector.shape_cast %113 : vector<2x8x8xf32> to vector<16x8xf32>
    %115 = vector.extract_strided_slice %12 {offsets = [24, 0], sizes = [8, 32], strides = [1, 1]} : vector<32x32xf32> to vector<8x32xf32>
    %cst_43 = arith.constant dense<0.000000e+00> : vector<16x32xf32>
    %116 = tpu.matmul %114, %115, %cst_43 {dimension_numbers = #tpu.dot_dimension_numbers<[1], [0], [0], [1], [0, 0, 1, 1], [], []>} : vector<16x8xf32>, vector<8x32xf32>, vector<16x32xf32> -> vector<16x32xf32>
    %117 = arith.addf %93, %116 : vector<16x32xf32>
    %118 = vector.broadcast %14 : vector<1x32xf32> to vector<16x32xf32>
    %119 = arith.addf %117, %118 : vector<16x32xf32>
    %120 = arith.addf %119, %6 : vector<16x32xf32>
    %c0_44 = arith.constant 0 : index
    %c0_45 = arith.constant 0 : index
    %c0_46 = arith.constant 0 : index
    %121 = vector.load %arg7[%c0_44, %c0_45, %c0_46] : memref<2x1x32xf32, #tpu.memory_space<vmem>>, vector<1x1x32xf32>
    %122 = vector.shape_cast %121 : vector<1x1x32xf32> to vector<1x32xf32>
    %c0_47 = arith.constant 0 : index
    %c0_48 = arith.constant 0 : index
    %c0_49 = arith.constant 0 : index
    %123 = vector.load %arg8[%c0_47, %c0_48, %c0_49] : memref<2x1x32xf32, #tpu.memory_space<vmem>>, vector<1x1x32xf32>
    %124 = vector.shape_cast %123 : vector<1x1x32xf32> to vector<1x32xf32>
    %cst_50 = arith.constant dense<0.000000e+00> : vector<16xf32>
    %125 = vector.multi_reduction <add>, %120, %cst_50 [1] : vector<16x32xf32> to vector<16xf32>
    %126 = vector.shape_cast %125 : vector<16xf32> to vector<16x1xf32>
    %cst_51 = arith.constant 3.200000e+01 : f32
    %127 = vector.broadcast %cst_51 : f32 to vector<16x1xf32>
    %128 = arith.divf %126, %127 : vector<16x1xf32>
    %129 = vector.broadcast %128 : vector<16x1xf32> to vector<16x32xf32>
    %130 = arith.subf %120, %129 : vector<16x32xf32>
    %131 = arith.mulf %130, %130 : vector<16x32xf32>
    %cst_52 = arith.constant dense<0.000000e+00> : vector<16xf32>
    %132 = vector.multi_reduction <add>, %131, %cst_52 [1] : vector<16x32xf32> to vector<16xf32>
    %133 = vector.shape_cast %132 : vector<16xf32> to vector<16x1xf32>
    %cst_53 = arith.constant 3.200000e+01 : f32
    %134 = vector.broadcast %cst_53 : f32 to vector<16x1xf32>
    %135 = arith.divf %133, %134 : vector<16x1xf32>
    %136 = vector.broadcast %128 : vector<16x1xf32> to vector<16x32xf32>
    %137 = arith.subf %120, %136 : vector<16x32xf32>
    %cst_54 = arith.constant 9.99999974E-6 : f32
    %138 = vector.broadcast %cst_54 : f32 to vector<16x1xf32>
    %139 = arith.addf %135, %138 : vector<16x1xf32>
    %140 = math.rsqrt %139 : vector<16x1xf32>
    %141 = vector.broadcast %140 : vector<16x1xf32> to vector<16x32xf32>
    %142 = arith.mulf %137, %141 : vector<16x32xf32>
    %143 = vector.broadcast %122 : vector<1x32xf32> to vector<16x32xf32>
    %144 = arith.mulf %142, %143 : vector<16x32xf32>
    %145 = vector.broadcast %124 : vector<1x32xf32> to vector<16x32xf32>
    %146 = arith.addf %144, %145 : vector<16x32xf32>
    %c0_55 = arith.constant 0 : index
    %c0_56 = arith.constant 0 : index
    %c0_57 = arith.constant 0 : index
    %147 = vector.load %arg9[%c0_55, %c0_56, %c0_57] : memref<2x32x64xf32, #tpu.memory_space<vmem>>, vector<1x32x64xf32>
    %148 = vector.shape_cast %147 : vector<1x32x64xf32> to vector<32x64xf32>
    %cst_58 = arith.constant dense<0.000000e+00> : vector<16x64xf32>
    %149 = tpu.matmul %146, %148, %cst_58 {dimension_numbers = #tpu.dot_dimension_numbers<[1], [0], [0], [1], [0, 0, 1, 1], [], []>} : vector<16x32xf32>, vector<32x64xf32>, vector<16x64xf32> -> vector<16x64xf32>
    %c0_59 = arith.constant 0 : index
    %c0_60 = arith.constant 0 : index
    %c0_61 = arith.constant 0 : index
    %150 = vector.load %arg10[%c0_59, %c0_60, %c0_61] : memref<2x1x64xf32, #tpu.memory_space<vmem>>, vector<1x1x64xf32>
    %151 = vector.shape_cast %150 : vector<1x1x64xf32> to vector<1x64xf32>
    %152 = vector.broadcast %151 : vector<1x64xf32> to vector<16x64xf32>
    %153 = arith.addf %149, %152 : vector<16x64xf32>
    %cst_62 = arith.constant 0.000000e+00 : f32
    %154 = vector.broadcast %cst_62 : f32 to vector<16x64xf32>
    %155 = arith.maximumf %153, %154 : vector<16x64xf32>
    %c0_63 = arith.constant 0 : index
    %c0_64 = arith.constant 0 : index
    %c0_65 = arith.constant 0 : index
    %156 = vector.load %arg11[%c0_63, %c0_64, %c0_65] : memref<2x64x32xf32, #tpu.memory_space<vmem>>, vector<1x64x32xf32>
    %157 = vector.shape_cast %156 : vector<1x64x32xf32> to vector<64x32xf32>
    %cst_66 = arith.constant dense<0.000000e+00> : vector<16x32xf32>
    %158 = tpu.matmul %155, %157, %cst_66 {dimension_numbers = #tpu.dot_dimension_numbers<[1], [0], [0], [1], [0, 0, 1, 1], [], []>} : vector<16x64xf32>, vector<64x32xf32>, vector<16x32xf32> -> vector<16x32xf32>
    %c0_67 = arith.constant 0 : index
    %c0_68 = arith.constant 0 : index
    %c0_69 = arith.constant 0 : index
    %159 = vector.load %arg12[%c0_67, %c0_68, %c0_69] : memref<2x1x32xf32, #tpu.memory_space<vmem>>, vector<1x1x32xf32>
    %160 = vector.shape_cast %159 : vector<1x1x32xf32> to vector<1x32xf32>
    %161 = vector.broadcast %160 : vector<1x32xf32> to vector<16x32xf32>
    %162 = arith.addf %158, %161 : vector<16x32xf32>
    %163 = arith.addf %162, %146 : vector<16x32xf32>
    %c0_70 = arith.constant 0 : index
    %c0_71 = arith.constant 0 : index
    %c0_72 = arith.constant 0 : index
    %164 = vector.load %arg13[%c0_70, %c0_71, %c0_72] : memref<2x1x32xf32, #tpu.memory_space<vmem>>, vector<1x1x32xf32>
    %165 = vector.shape_cast %164 : vector<1x1x32xf32> to vector<1x32xf32>
    %c0_73 = arith.constant 0 : index
    %c0_74 = arith.constant 0 : index
    %c0_75 = arith.constant 0 : index
    %166 = vector.load %arg14[%c0_73, %c0_74, %c0_75] : memref<2x1x32xf32, #tpu.memory_space<vmem>>, vector<1x1x32xf32>
    %167 = vector.shape_cast %166 : vector<1x1x32xf32> to vector<1x32xf32>
    %cst_76 = arith.constant dense<0.000000e+00> : vector<16xf32>
    %168 = vector.multi_reduction <add>, %163, %cst_76 [1] : vector<16x32xf32> to vector<16xf32>
    %169 = vector.shape_cast %168 : vector<16xf32> to vector<16x1xf32>
    %cst_77 = arith.constant 3.200000e+01 : f32
    %170 = vector.broadcast %cst_77 : f32 to vector<16x1xf32>
    %171 = arith.divf %169, %170 : vector<16x1xf32>
    %172 = vector.broadcast %171 : vector<16x1xf32> to vector<16x32xf32>
    %173 = arith.subf %163, %172 : vector<16x32xf32>
    %174 = arith.mulf %173, %173 : vector<16x32xf32>
    %cst_78 = arith.constant dense<0.000000e+00> : vector<16xf32>
    %175 = vector.multi_reduction <add>, %174, %cst_78 [1] : vector<16x32xf32> to vector<16xf32>
    %176 = vector.shape_cast %175 : vector<16xf32> to vector<16x1xf32>
    %cst_79 = arith.constant 3.200000e+01 : f32
    %177 = vector.broadcast %cst_79 : f32 to vector<16x1xf32>
    %178 = arith.divf %176, %177 : vector<16x1xf32>
    %179 = vector.broadcast %171 : vector<16x1xf32> to vector<16x32xf32>
    %180 = arith.subf %163, %179 : vector<16x32xf32>
    %cst_80 = arith.constant 9.99999974E-6 : f32
    %181 = vector.broadcast %cst_80 : f32 to vector<16x1xf32>
    %182 = arith.addf %178, %181 : vector<16x1xf32>
    %183 = math.rsqrt %182 : vector<16x1xf32>
    %184 = vector.broadcast %183 : vector<16x1xf32> to vector<16x32xf32>
    %185 = arith.mulf %180, %184 : vector<16x32xf32>
    %186 = vector.broadcast %165 : vector<1x32xf32> to vector<16x32xf32>
    %187 = arith.mulf %185, %186 : vector<16x32xf32>
    %188 = vector.broadcast %167 : vector<1x32xf32> to vector<16x32xf32>
    %189 = arith.addf %187, %188 : vector<16x32xf32>
    %c1 = arith.constant 1 : index
    %c0_81 = arith.constant 0 : index
    %c0_82 = arith.constant 0 : index
    %190 = vector.load %arg3[%c1, %c0_81, %c0_82] : memref<2x32x96xf32, #tpu.memory_space<vmem>>, vector<1x32x96xf32>
    %191 = vector.shape_cast %190 : vector<1x32x96xf32> to vector<32x96xf32>
    %c1_83 = arith.constant 1 : index
    %c0_84 = arith.constant 0 : index
    %c0_85 = arith.constant 0 : index
    %192 = vector.load %arg4[%c1_83, %c0_84, %c0_85] : memref<2x1x96xf32, #tpu.memory_space<vmem>>, vector<1x1x96xf32>
    %193 = vector.shape_cast %192 : vector<1x1x96xf32> to vector<1x96xf32>
    %c1_86 = arith.constant 1 : index
    %c0_87 = arith.constant 0 : index
    %c0_88 = arith.constant 0 : index
    %194 = vector.load %arg5[%c1_86, %c0_87, %c0_88] : memref<2x32x32xf32, #tpu.memory_space<vmem>>, vector<1x32x32xf32>
    %195 = vector.shape_cast %194 : vector<1x32x32xf32> to vector<32x32xf32>
    %c1_89 = arith.constant 1 : index
    %c0_90 = arith.constant 0 : index
    %c0_91 = arith.constant 0 : index
    %196 = vector.load %arg6[%c1_89, %c0_90, %c0_91] : memref<2x1x32xf32, #tpu.memory_space<vmem>>, vector<1x1x32xf32>
    %197 = vector.shape_cast %196 : vector<1x1x32xf32> to vector<1x32xf32>
    %cst_92 = arith.constant dense<0.000000e+00> : vector<16x96xf32>
    %198 = tpu.matmul %189, %191, %cst_92 {dimension_numbers = #tpu.dot_dimension_numbers<[1], [0], [0], [1], [0, 0, 1, 1], [], []>} : vector<16x32xf32>, vector<32x96xf32>, vector<16x96xf32> -> vector<16x96xf32>
    %199 = vector.broadcast %193 : vector<1x96xf32> to vector<16x96xf32>
    %200 = arith.addf %198, %199 : vector<16x96xf32>
    %201 = vector.extract_strided_slice %200 {offsets = [0, 0], sizes = [16, 32], strides = [1, 1]} : vector<16x96xf32> to vector<16x32xf32>
    %202 = vector.extract_strided_slice %200 {offsets = [0, 32], sizes = [16, 32], strides = [1, 1]} : vector<16x96xf32> to vector<16x32xf32>
    %203 = vector.extract_strided_slice %200 {offsets = [0, 64], sizes = [16, 32], strides = [1, 1]} : vector<16x96xf32> to vector<16x32xf32>
    %cst_93 = arith.constant 0.000000e+00 : f32
    %204 = vector.broadcast %cst_93 : f32 to vector<16x32xf32>
    %205 = vector.extract_strided_slice %201 {offsets = [0, 0], sizes = [16, 8], strides = [1, 1]} : vector<16x32xf32> to vector<16x8xf32>
    %206 = vector.shape_cast %205 : vector<16x8xf32> to vector<2x8x8xf32>
    %207 = vector.extract_strided_slice %202 {offsets = [0, 0], sizes = [16, 8], strides = [1, 1]} : vector<16x32xf32> to vector<16x8xf32>
    %208 = vector.shape_cast %207 : vector<16x8xf32> to vector<2x8x8xf32>
    %209 = vector.extract_strided_slice %203 {offsets = [0, 0], sizes = [16, 8], strides = [1, 1]} : vector<16x32xf32> to vector<16x8xf32>
    %210 = vector.shape_cast %209 : vector<16x8xf32> to vector<2x8x8xf32>
    "tpu.trace_start"() <{level = 10 : i32, message = "bqd,bkd->bqk"}> : () -> ()
    %cst_94 = arith.constant dense<0.000000e+00> : vector<2x8x8xf32>
    %211 = tpu.matmul %206, %208, %cst_94 {dimension_numbers = #tpu.dot_dimension_numbers<[2], [2], [1], [1], [0, 0, 0, 1, 1, 1], [0], [0]>} : vector<2x8x8xf32>, vector<2x8x8xf32>, vector<2x8x8xf32> -> vector<2x8x8xf32>
    "tpu.trace_stop"() : () -> ()
    %cst_95 = arith.constant 0.353553385 : f32
    %212 = vector.broadcast %cst_95 : f32 to vector<2x8x8xf32>
    %213 = arith.mulf %211, %212 : vector<2x8x8xf32>
    %cst_96 = arith.constant dense<0xFF800000> : vector<2x8xf32>
    %214 = vector.multi_reduction <maximumf>, %213, %cst_96 [2] : vector<2x8x8xf32> to vector<2x8xf32>
    %215 = vector.shape_cast %214 : vector<2x8xf32> to vector<2x8x1xf32>
    %216 = vector.broadcast %215 : vector<2x8x1xf32> to vector<2x8x8xf32>
    %217 = arith.subf %213, %216 : vector<2x8x8xf32>
    %218 = math.exp %217 : vector<2x8x8xf32>
    %cst_97 = arith.constant dense<0.000000e+00> : vector<2x8xf32>
    %219 = vector.multi_reduction <add>, %218, %cst_97 [2] : vector<2x8x8xf32> to vector<2x8xf32>
    %220 = vector.shape_cast %219 : vector<2x8xf32> to vector<2x8x1xf32>
    %221 = tpu.reciprocal %220 {approx = true} : vector<2x8x1xf32> -> vector<2x8x1xf32>
    %222 = vector.broadcast %221 : vector<2x8x1xf32> to vector<2x8x8xf32>
    %223 = arith.mulf %218, %222 : vector<2x8x8xf32>
    "tpu.trace_start"() <{level = 10 : i32, message = "bqk,bkd->bqd"}> : () -> ()
    %cst_98 = arith.constant dense<0.000000e+00> : vector<2x8x8xf32>
    %224 = tpu.matmul %223, %210, %cst_98 {dimension_numbers = #tpu.dot_dimension_numbers<[2], [1], [1], [2], [0, 0, 0, 1, 1, 2], [0], [0]>} : vector<2x8x8xf32>, vector<2x8x8xf32>, vector<2x8x8xf32> -> vector<2x8x8xf32>
    "tpu.trace_stop"() : () -> ()
    %225 = vector.shape_cast %224 : vector<2x8x8xf32> to vector<16x8xf32>
    %226 = vector.extract_strided_slice %195 {offsets = [0, 0], sizes = [8, 32], strides = [1, 1]} : vector<32x32xf32> to vector<8x32xf32>
    %cst_99 = arith.constant dense<0.000000e+00> : vector<16x32xf32>
    %227 = tpu.matmul %225, %226, %cst_99 {dimension_numbers = #tpu.dot_dimension_numbers<[1], [0], [0], [1], [0, 0, 1, 1], [], []>} : vector<16x8xf32>, vector<8x32xf32>, vector<16x32xf32> -> vector<16x32xf32>
    %228 = arith.addf %204, %227 : vector<16x32xf32>
    %229 = vector.extract_strided_slice %201 {offsets = [0, 8], sizes = [16, 8], strides = [1, 1]} : vector<16x32xf32> to vector<16x8xf32>
    %230 = vector.shape_cast %229 : vector<16x8xf32> to vector<2x8x8xf32>
    %231 = vector.extract_strided_slice %202 {offsets = [0, 8], sizes = [16, 8], strides = [1, 1]} : vector<16x32xf32> to vector<16x8xf32>
    %232 = vector.shape_cast %231 : vector<16x8xf32> to vector<2x8x8xf32>
    %233 = vector.extract_strided_slice %203 {offsets = [0, 8], sizes = [16, 8], strides = [1, 1]} : vector<16x32xf32> to vector<16x8xf32>
    %234 = vector.shape_cast %233 : vector<16x8xf32> to vector<2x8x8xf32>
    "tpu.trace_start"() <{level = 10 : i32, message = "bqd,bkd->bqk"}> : () -> ()
    %cst_100 = arith.constant dense<0.000000e+00> : vector<2x8x8xf32>
    %235 = tpu.matmul %230, %232, %cst_100 {dimension_numbers = #tpu.dot_dimension_numbers<[2], [2], [1], [1], [0, 0, 0, 1, 1, 1], [0], [0]>} : vector<2x8x8xf32>, vector<2x8x8xf32>, vector<2x8x8xf32> -> vector<2x8x8xf32>
    "tpu.trace_stop"() : () -> ()
    %cst_101 = arith.constant 0.353553385 : f32
    %236 = vector.broadcast %cst_101 : f32 to vector<2x8x8xf32>
    %237 = arith.mulf %235, %236 : vector<2x8x8xf32>
    %cst_102 = arith.constant dense<0xFF800000> : vector<2x8xf32>
    %238 = vector.multi_reduction <maximumf>, %237, %cst_102 [2] : vector<2x8x8xf32> to vector<2x8xf32>
    %239 = vector.shape_cast %238 : vector<2x8xf32> to vector<2x8x1xf32>
    %240 = vector.broadcast %239 : vector<2x8x1xf32> to vector<2x8x8xf32>
    %241 = arith.subf %237, %240 : vector<2x8x8xf32>
    %242 = math.exp %241 : vector<2x8x8xf32>
    %cst_103 = arith.constant dense<0.000000e+00> : vector<2x8xf32>
    %243 = vector.multi_reduction <add>, %242, %cst_103 [2] : vector<2x8x8xf32> to vector<2x8xf32>
    %244 = vector.shape_cast %243 : vector<2x8xf32> to vector<2x8x1xf32>
    %245 = tpu.reciprocal %244 {approx = true} : vector<2x8x1xf32> -> vector<2x8x1xf32>
    %246 = vector.broadcast %245 : vector<2x8x1xf32> to vector<2x8x8xf32>
    %247 = arith.mulf %242, %246 : vector<2x8x8xf32>
    "tpu.trace_start"() <{level = 10 : i32, message = "bqk,bkd->bqd"}> : () -> ()
    %cst_104 = arith.constant dense<0.000000e+00> : vector<2x8x8xf32>
    %248 = tpu.matmul %247, %234, %cst_104 {dimension_numbers = #tpu.dot_dimension_numbers<[2], [1], [1], [2], [0, 0, 0, 1, 1, 2], [0], [0]>} : vector<2x8x8xf32>, vector<2x8x8xf32>, vector<2x8x8xf32> -> vector<2x8x8xf32>
    "tpu.trace_stop"() : () -> ()
    %249 = vector.shape_cast %248 : vector<2x8x8xf32> to vector<16x8xf32>
    %250 = vector.extract_strided_slice %195 {offsets = [8, 0], sizes = [8, 32], strides = [1, 1]} : vector<32x32xf32> to vector<8x32xf32>
    %cst_105 = arith.constant dense<0.000000e+00> : vector<16x32xf32>
    %251 = tpu.matmul %249, %250, %cst_105 {dimension_numbers = #tpu.dot_dimension_numbers<[1], [0], [0], [1], [0, 0, 1, 1], [], []>} : vector<16x8xf32>, vector<8x32xf32>, vector<16x32xf32> -> vector<16x32xf32>
    %252 = arith.addf %228, %251 : vector<16x32xf32>
    %253 = vector.extract_strided_slice %201 {offsets = [0, 16], sizes = [16, 8], strides = [1, 1]} : vector<16x32xf32> to vector<16x8xf32>
    %254 = vector.shape_cast %253 : vector<16x8xf32> to vector<2x8x8xf32>
    %255 = vector.extract_strided_slice %202 {offsets = [0, 16], sizes = [16, 8], strides = [1, 1]} : vector<16x32xf32> to vector<16x8xf32>
    %256 = vector.shape_cast %255 : vector<16x8xf32> to vector<2x8x8xf32>
    %257 = vector.extract_strided_slice %203 {offsets = [0, 16], sizes = [16, 8], strides = [1, 1]} : vector<16x32xf32> to vector<16x8xf32>
    %258 = vector.shape_cast %257 : vector<16x8xf32> to vector<2x8x8xf32>
    "tpu.trace_start"() <{level = 10 : i32, message = "bqd,bkd->bqk"}> : () -> ()
    %cst_106 = arith.constant dense<0.000000e+00> : vector<2x8x8xf32>
    %259 = tpu.matmul %254, %256, %cst_106 {dimension_numbers = #tpu.dot_dimension_numbers<[2], [2], [1], [1], [0, 0, 0, 1, 1, 1], [0], [0]>} : vector<2x8x8xf32>, vector<2x8x8xf32>, vector<2x8x8xf32> -> vector<2x8x8xf32>
    "tpu.trace_stop"() : () -> ()
    %cst_107 = arith.constant 0.353553385 : f32
    %260 = vector.broadcast %cst_107 : f32 to vector<2x8x8xf32>
    %261 = arith.mulf %259, %260 : vector<2x8x8xf32>
    %cst_108 = arith.constant dense<0xFF800000> : vector<2x8xf32>
    %262 = vector.multi_reduction <maximumf>, %261, %cst_108 [2] : vector<2x8x8xf32> to vector<2x8xf32>
    %263 = vector.shape_cast %262 : vector<2x8xf32> to vector<2x8x1xf32>
    %264 = vector.broadcast %263 : vector<2x8x1xf32> to vector<2x8x8xf32>
    %265 = arith.subf %261, %264 : vector<2x8x8xf32>
    %266 = math.exp %265 : vector<2x8x8xf32>
    %cst_109 = arith.constant dense<0.000000e+00> : vector<2x8xf32>
    %267 = vector.multi_reduction <add>, %266, %cst_109 [2] : vector<2x8x8xf32> to vector<2x8xf32>
    %268 = vector.shape_cast %267 : vector<2x8xf32> to vector<2x8x1xf32>
    %269 = tpu.reciprocal %268 {approx = true} : vector<2x8x1xf32> -> vector<2x8x1xf32>
    %270 = vector.broadcast %269 : vector<2x8x1xf32> to vector<2x8x8xf32>
    %271 = arith.mulf %266, %270 : vector<2x8x8xf32>
    "tpu.trace_start"() <{level = 10 : i32, message = "bqk,bkd->bqd"}> : () -> ()
    %cst_110 = arith.constant dense<0.000000e+00> : vector<2x8x8xf32>
    %272 = tpu.matmul %271, %258, %cst_110 {dimension_numbers = #tpu.dot_dimension_numbers<[2], [1], [1], [2], [0, 0, 0, 1, 1, 2], [0], [0]>} : vector<2x8x8xf32>, vector<2x8x8xf32>, vector<2x8x8xf32> -> vector<2x8x8xf32>
    "tpu.trace_stop"() : () -> ()
    %273 = vector.shape_cast %272 : vector<2x8x8xf32> to vector<16x8xf32>
    %274 = vector.extract_strided_slice %195 {offsets = [16, 0], sizes = [8, 32], strides = [1, 1]} : vector<32x32xf32> to vector<8x32xf32>
    %cst_111 = arith.constant dense<0.000000e+00> : vector<16x32xf32>
    %275 = tpu.matmul %273, %274, %cst_111 {dimension_numbers = #tpu.dot_dimension_numbers<[1], [0], [0], [1], [0, 0, 1, 1], [], []>} : vector<16x8xf32>, vector<8x32xf32>, vector<16x32xf32> -> vector<16x32xf32>
    %276 = arith.addf %252, %275 : vector<16x32xf32>
    %277 = vector.extract_strided_slice %201 {offsets = [0, 24], sizes = [16, 8], strides = [1, 1]} : vector<16x32xf32> to vector<16x8xf32>
    %278 = vector.shape_cast %277 : vector<16x8xf32> to vector<2x8x8xf32>
    %279 = vector.extract_strided_slice %202 {offsets = [0, 24], sizes = [16, 8], strides = [1, 1]} : vector<16x32xf32> to vector<16x8xf32>
    %280 = vector.shape_cast %279 : vector<16x8xf32> to vector<2x8x8xf32>
    %281 = vector.extract_strided_slice %203 {offsets = [0, 24], sizes = [16, 8], strides = [1, 1]} : vector<16x32xf32> to vector<16x8xf32>
    %282 = vector.shape_cast %281 : vector<16x8xf32> to vector<2x8x8xf32>
    "tpu.trace_start"() <{level = 10 : i32, message = "bqd,bkd->bqk"}> : () -> ()
    %cst_112 = arith.constant dense<0.000000e+00> : vector<2x8x8xf32>
    %283 = tpu.matmul %278, %280, %cst_112 {dimension_numbers = #tpu.dot_dimension_numbers<[2], [2], [1], [1], [0, 0, 0, 1, 1, 1], [0], [0]>} : vector<2x8x8xf32>, vector<2x8x8xf32>, vector<2x8x8xf32> -> vector<2x8x8xf32>
    "tpu.trace_stop"() : () -> ()
    %cst_113 = arith.constant 0.353553385 : f32
    %284 = vector.broadcast %cst_113 : f32 to vector<2x8x8xf32>
    %285 = arith.mulf %283, %284 : vector<2x8x8xf32>
    %cst_114 = arith.constant dense<0xFF800000> : vector<2x8xf32>
    %286 = vector.multi_reduction <maximumf>, %285, %cst_114 [2] : vector<2x8x8xf32> to vector<2x8xf32>
    %287 = vector.shape_cast %286 : vector<2x8xf32> to vector<2x8x1xf32>
    %288 = vector.broadcast %287 : vector<2x8x1xf32> to vector<2x8x8xf32>
    %289 = arith.subf %285, %288 : vector<2x8x8xf32>
    %290 = math.exp %289 : vector<2x8x8xf32>
    %cst_115 = arith.constant dense<0.000000e+00> : vector<2x8xf32>
    %291 = vector.multi_reduction <add>, %290, %cst_115 [2] : vector<2x8x8xf32> to vector<2x8xf32>
    %292 = vector.shape_cast %291 : vector<2x8xf32> to vector<2x8x1xf32>
    %293 = tpu.reciprocal %292 {approx = true} : vector<2x8x1xf32> -> vector<2x8x1xf32>
    %294 = vector.broadcast %293 : vector<2x8x1xf32> to vector<2x8x8xf32>
    %295 = arith.mulf %290, %294 : vector<2x8x8xf32>
    "tpu.trace_start"() <{level = 10 : i32, message = "bqk,bkd->bqd"}> : () -> ()
    %cst_116 = arith.constant dense<0.000000e+00> : vector<2x8x8xf32>
    %296 = tpu.matmul %295, %282, %cst_116 {dimension_numbers = #tpu.dot_dimension_numbers<[2], [1], [1], [2], [0, 0, 0, 1, 1, 2], [0], [0]>} : vector<2x8x8xf32>, vector<2x8x8xf32>, vector<2x8x8xf32> -> vector<2x8x8xf32>
    "tpu.trace_stop"() : () -> ()
    %297 = vector.shape_cast %296 : vector<2x8x8xf32> to vector<16x8xf32>
    %298 = vector.extract_strided_slice %195 {offsets = [24, 0], sizes = [8, 32], strides = [1, 1]} : vector<32x32xf32> to vector<8x32xf32>
    %cst_117 = arith.constant dense<0.000000e+00> : vector<16x32xf32>
    %299 = tpu.matmul %297, %298, %cst_117 {dimension_numbers = #tpu.dot_dimension_numbers<[1], [0], [0], [1], [0, 0, 1, 1], [], []>} : vector<16x8xf32>, vector<8x32xf32>, vector<16x32xf32> -> vector<16x32xf32>
    %300 = arith.addf %276, %299 : vector<16x32xf32>
    %301 = vector.broadcast %197 : vector<1x32xf32> to vector<16x32xf32>
    %302 = arith.addf %300, %301 : vector<16x32xf32>
    %303 = arith.addf %302, %189 : vector<16x32xf32>
    %c1_118 = arith.constant 1 : index
    %c0_119 = arith.constant 0 : index
    %c0_120 = arith.constant 0 : index
    %304 = vector.load %arg7[%c1_118, %c0_119, %c0_120] : memref<2x1x32xf32, #tpu.memory_space<vmem>>, vector<1x1x32xf32>
    %305 = vector.shape_cast %304 : vector<1x1x32xf32> to vector<1x32xf32>
    %c1_121 = arith.constant 1 : index
    %c0_122 = arith.constant 0 : index
    %c0_123 = arith.constant 0 : index
    %306 = vector.load %arg8[%c1_121, %c0_122, %c0_123] : memref<2x1x32xf32, #tpu.memory_space<vmem>>, vector<1x1x32xf32>
    %307 = vector.shape_cast %306 : vector<1x1x32xf32> to vector<1x32xf32>
    %cst_124 = arith.constant dense<0.000000e+00> : vector<16xf32>
    %308 = vector.multi_reduction <add>, %303, %cst_124 [1] : vector<16x32xf32> to vector<16xf32>
    %309 = vector.shape_cast %308 : vector<16xf32> to vector<16x1xf32>
    %cst_125 = arith.constant 3.200000e+01 : f32
    %310 = vector.broadcast %cst_125 : f32 to vector<16x1xf32>
    %311 = arith.divf %309, %310 : vector<16x1xf32>
    %312 = vector.broadcast %311 : vector<16x1xf32> to vector<16x32xf32>
    %313 = arith.subf %303, %312 : vector<16x32xf32>
    %314 = arith.mulf %313, %313 : vector<16x32xf32>
    %cst_126 = arith.constant dense<0.000000e+00> : vector<16xf32>
    %315 = vector.multi_reduction <add>, %314, %cst_126 [1] : vector<16x32xf32> to vector<16xf32>
    %316 = vector.shape_cast %315 : vector<16xf32> to vector<16x1xf32>
    %cst_127 = arith.constant 3.200000e+01 : f32
    %317 = vector.broadcast %cst_127 : f32 to vector<16x1xf32>
    %318 = arith.divf %316, %317 : vector<16x1xf32>
    %319 = vector.broadcast %311 : vector<16x1xf32> to vector<16x32xf32>
    %320 = arith.subf %303, %319 : vector<16x32xf32>
    %cst_128 = arith.constant 9.99999974E-6 : f32
    %321 = vector.broadcast %cst_128 : f32 to vector<16x1xf32>
    %322 = arith.addf %318, %321 : vector<16x1xf32>
    %323 = math.rsqrt %322 : vector<16x1xf32>
    %324 = vector.broadcast %323 : vector<16x1xf32> to vector<16x32xf32>
    %325 = arith.mulf %320, %324 : vector<16x32xf32>
    %326 = vector.broadcast %305 : vector<1x32xf32> to vector<16x32xf32>
    %327 = arith.mulf %325, %326 : vector<16x32xf32>
    %328 = vector.broadcast %307 : vector<1x32xf32> to vector<16x32xf32>
    %329 = arith.addf %327, %328 : vector<16x32xf32>
    %c1_129 = arith.constant 1 : index
    %c0_130 = arith.constant 0 : index
    %c0_131 = arith.constant 0 : index
    %330 = vector.load %arg9[%c1_129, %c0_130, %c0_131] : memref<2x32x64xf32, #tpu.memory_space<vmem>>, vector<1x32x64xf32>
    %331 = vector.shape_cast %330 : vector<1x32x64xf32> to vector<32x64xf32>
    %cst_132 = arith.constant dense<0.000000e+00> : vector<16x64xf32>
    %332 = tpu.matmul %329, %331, %cst_132 {dimension_numbers = #tpu.dot_dimension_numbers<[1], [0], [0], [1], [0, 0, 1, 1], [], []>} : vector<16x32xf32>, vector<32x64xf32>, vector<16x64xf32> -> vector<16x64xf32>
    %c1_133 = arith.constant 1 : index
    %c0_134 = arith.constant 0 : index
    %c0_135 = arith.constant 0 : index
    %333 = vector.load %arg10[%c1_133, %c0_134, %c0_135] : memref<2x1x64xf32, #tpu.memory_space<vmem>>, vector<1x1x64xf32>
    %334 = vector.shape_cast %333 : vector<1x1x64xf32> to vector<1x64xf32>
    %335 = vector.broadcast %334 : vector<1x64xf32> to vector<16x64xf32>
    %336 = arith.addf %332, %335 : vector<16x64xf32>
    %cst_136 = arith.constant 0.000000e+00 : f32
    %337 = vector.broadcast %cst_136 : f32 to vector<16x64xf32>
    %338 = arith.maximumf %336, %337 : vector<16x64xf32>
    %c1_137 = arith.constant 1 : index
    %c0_138 = arith.constant 0 : index
    %c0_139 = arith.constant 0 : index
    %339 = vector.load %arg11[%c1_137, %c0_138, %c0_139] : memref<2x64x32xf32, #tpu.memory_space<vmem>>, vector<1x64x32xf32>
    %340 = vector.shape_cast %339 : vector<1x64x32xf32> to vector<64x32xf32>
    %cst_140 = arith.constant dense<0.000000e+00> : vector<16x32xf32>
    %341 = tpu.matmul %338, %340, %cst_140 {dimension_numbers = #tpu.dot_dimension_numbers<[1], [0], [0], [1], [0, 0, 1, 1], [], []>} : vector<16x64xf32>, vector<64x32xf32>, vector<16x32xf32> -> vector<16x32xf32>
    %c1_141 = arith.constant 1 : index
    %c0_142 = arith.constant 0 : index
    %c0_143 = arith.constant 0 : index
    %342 = vector.load %arg12[%c1_141, %c0_142, %c0_143] : memref<2x1x32xf32, #tpu.memory_space<vmem>>, vector<1x1x32xf32>
    %343 = vector.shape_cast %342 : vector<1x1x32xf32> to vector<1x32xf32>
    %344 = vector.broadcast %343 : vector<1x32xf32> to vector<16x32xf32>
    %345 = arith.addf %341, %344 : vector<16x32xf32>
    %346 = arith.addf %345, %329 : vector<16x32xf32>
    %c1_144 = arith.constant 1 : index
    %c0_145 = arith.constant 0 : index
    %c0_146 = arith.constant 0 : index
    %347 = vector.load %arg13[%c1_144, %c0_145, %c0_146] : memref<2x1x32xf32, #tpu.memory_space<vmem>>, vector<1x1x32xf32>
    %348 = vector.shape_cast %347 : vector<1x1x32xf32> to vector<1x32xf32>
    %c1_147 = arith.constant 1 : index
    %c0_148 = arith.constant 0 : index
    %c0_149 = arith.constant 0 : index
    %349 = vector.load %arg14[%c1_147, %c0_148, %c0_149] : memref<2x1x32xf32, #tpu.memory_space<vmem>>, vector<1x1x32xf32>
    %350 = vector.shape_cast %349 : vector<1x1x32xf32> to vector<1x32xf32>
    %cst_150 = arith.constant dense<0.000000e+00> : vector<16xf32>
    %351 = vector.multi_reduction <add>, %346, %cst_150 [1] : vector<16x32xf32> to vector<16xf32>
    %352 = vector.shape_cast %351 : vector<16xf32> to vector<16x1xf32>
    %cst_151 = arith.constant 3.200000e+01 : f32
    %353 = vector.broadcast %cst_151 : f32 to vector<16x1xf32>
    %354 = arith.divf %352, %353 : vector<16x1xf32>
    %355 = vector.broadcast %354 : vector<16x1xf32> to vector<16x32xf32>
    %356 = arith.subf %346, %355 : vector<16x32xf32>
    %357 = arith.mulf %356, %356 : vector<16x32xf32>
    %cst_152 = arith.constant dense<0.000000e+00> : vector<16xf32>
    %358 = vector.multi_reduction <add>, %357, %cst_152 [1] : vector<16x32xf32> to vector<16xf32>
    %359 = vector.shape_cast %358 : vector<16xf32> to vector<16x1xf32>
    %cst_153 = arith.constant 3.200000e+01 : f32
    %360 = vector.broadcast %cst_153 : f32 to vector<16x1xf32>
    %361 = arith.divf %359, %360 : vector<16x1xf32>
    %362 = vector.broadcast %354 : vector<16x1xf32> to vector<16x32xf32>
    %363 = arith.subf %346, %362 : vector<16x32xf32>
    %cst_154 = arith.constant 9.99999974E-6 : f32
    %364 = vector.broadcast %cst_154 : f32 to vector<16x1xf32>
    %365 = arith.addf %361, %364 : vector<16x1xf32>
    %366 = math.rsqrt %365 : vector<16x1xf32>
    %367 = vector.broadcast %366 : vector<16x1xf32> to vector<16x32xf32>
    %368 = arith.mulf %363, %367 : vector<16x32xf32>
    %369 = vector.broadcast %348 : vector<1x32xf32> to vector<16x32xf32>
    %370 = arith.mulf %368, %369 : vector<16x32xf32>
    %371 = vector.broadcast %350 : vector<1x32xf32> to vector<16x32xf32>
    %372 = arith.addf %370, %371 : vector<16x32xf32>
    %c0_155 = arith.constant 0 : index
    %c0_156 = arith.constant 0 : index
    %373 = vector.load %arg15[%c0_155, %c0_156] : memref<1x32xf32, #tpu.memory_space<vmem>>, vector<1x32xf32>
    %c0_157 = arith.constant 0 : index
    %c0_158 = arith.constant 0 : index
    %374 = vector.load %arg16[%c0_157, %c0_158] : memref<1x32xf32, #tpu.memory_space<vmem>>, vector<1x32xf32>
    %cst_159 = arith.constant dense<0.000000e+00> : vector<16xf32>
    %375 = vector.multi_reduction <add>, %372, %cst_159 [1] : vector<16x32xf32> to vector<16xf32>
    %376 = vector.shape_cast %375 : vector<16xf32> to vector<16x1xf32>
    %cst_160 = arith.constant 3.200000e+01 : f32
    %377 = vector.broadcast %cst_160 : f32 to vector<16x1xf32>
    %378 = arith.divf %376, %377 : vector<16x1xf32>
    %379 = vector.broadcast %378 : vector<16x1xf32> to vector<16x32xf32>
    %380 = arith.subf %372, %379 : vector<16x32xf32>
    %381 = arith.mulf %380, %380 : vector<16x32xf32>
    %cst_161 = arith.constant dense<0.000000e+00> : vector<16xf32>
    %382 = vector.multi_reduction <add>, %381, %cst_161 [1] : vector<16x32xf32> to vector<16xf32>
    %383 = vector.shape_cast %382 : vector<16xf32> to vector<16x1xf32>
    %cst_162 = arith.constant 3.200000e+01 : f32
    %384 = vector.broadcast %cst_162 : f32 to vector<16x1xf32>
    %385 = arith.divf %383, %384 : vector<16x1xf32>
    %386 = vector.broadcast %378 : vector<16x1xf32> to vector<16x32xf32>
    %387 = arith.subf %372, %386 : vector<16x32xf32>
    %cst_163 = arith.constant 9.99999974E-6 : f32
    %388 = vector.broadcast %cst_163 : f32 to vector<16x1xf32>
    %389 = arith.addf %385, %388 : vector<16x1xf32>
    %390 = math.rsqrt %389 : vector<16x1xf32>
    %391 = vector.broadcast %390 : vector<16x1xf32> to vector<16x32xf32>
    %392 = arith.mulf %387, %391 : vector<16x32xf32>
    %393 = vector.broadcast %373 : vector<1x32xf32> to vector<16x32xf32>
    %394 = arith.mulf %392, %393 : vector<16x32xf32>
    %395 = vector.broadcast %374 : vector<1x32xf32> to vector<16x32xf32>
    %396 = arith.addf %394, %395 : vector<16x32xf32>
    %397 = vector.shape_cast %396 : vector<16x32xf32> to vector<2x8x32xf32>
    %cst_164 = arith.constant 0.000000e+00 : f32
    %398 = vector.broadcast %cst_164 : f32 to vector<2x1xf32>
    %399 = vector.extract_strided_slice %397 {offsets = [0, 0, 0], sizes = [2, 1, 32], strides = [1, 1, 1]} : vector<2x8x32xf32> to vector<2x1x32xf32>
    %400 = vector.shape_cast %399 : vector<2x1x32xf32> to vector<2x32xf32>
    %c0_165 = arith.constant 0 : index
    %c0_166 = arith.constant 0 : index
    %c0_167 = arith.constant 0 : index
    %401 = vector.load %arg17[%c0_165, %c0_166, %c0_167] : memref<8x32x1xf32, #tpu.memory_space<vmem>>, vector<1x32x1xf32>
    %402 = vector.shape_cast %401 : vector<1x32x1xf32> to vector<32x1xf32>
    %cst_168 = arith.constant dense<0.000000e+00> : vector<2x1xf32>
    %403 = tpu.matmul %400, %402, %cst_168 {dimension_numbers = #tpu.dot_dimension_numbers<[1], [0], [0], [1], [0, 0, 1, 1], [], []>} : vector<2x32xf32>, vector<32x1xf32>, vector<2x1xf32> -> vector<2x1xf32>
    %404 = arith.addf %398, %403 : vector<2x1xf32>
    %405 = vector.extract_strided_slice %397 {offsets = [0, 1, 0], sizes = [2, 1, 32], strides = [1, 1, 1]} : vector<2x8x32xf32> to vector<2x1x32xf32>
    %406 = vector.shape_cast %405 : vector<2x1x32xf32> to vector<2x32xf32>
    %c1_169 = arith.constant 1 : index
    %c0_170 = arith.constant 0 : index
    %c0_171 = arith.constant 0 : index
    %407 = vector.load %arg17[%c1_169, %c0_170, %c0_171] : memref<8x32x1xf32, #tpu.memory_space<vmem>>, vector<1x32x1xf32>
    %408 = vector.shape_cast %407 : vector<1x32x1xf32> to vector<32x1xf32>
    %cst_172 = arith.constant dense<0.000000e+00> : vector<2x1xf32>
    %409 = tpu.matmul %406, %408, %cst_172 {dimension_numbers = #tpu.dot_dimension_numbers<[1], [0], [0], [1], [0, 0, 1, 1], [], []>} : vector<2x32xf32>, vector<32x1xf32>, vector<2x1xf32> -> vector<2x1xf32>
    %410 = arith.addf %404, %409 : vector<2x1xf32>
    %411 = vector.extract_strided_slice %397 {offsets = [0, 2, 0], sizes = [2, 1, 32], strides = [1, 1, 1]} : vector<2x8x32xf32> to vector<2x1x32xf32>
    %412 = vector.shape_cast %411 : vector<2x1x32xf32> to vector<2x32xf32>
    %c2 = arith.constant 2 : index
    %c0_173 = arith.constant 0 : index
    %c0_174 = arith.constant 0 : index
    %413 = vector.load %arg17[%c2, %c0_173, %c0_174] : memref<8x32x1xf32, #tpu.memory_space<vmem>>, vector<1x32x1xf32>
    %414 = vector.shape_cast %413 : vector<1x32x1xf32> to vector<32x1xf32>
    %cst_175 = arith.constant dense<0.000000e+00> : vector<2x1xf32>
    %415 = tpu.matmul %412, %414, %cst_175 {dimension_numbers = #tpu.dot_dimension_numbers<[1], [0], [0], [1], [0, 0, 1, 1], [], []>} : vector<2x32xf32>, vector<32x1xf32>, vector<2x1xf32> -> vector<2x1xf32>
    %416 = arith.addf %410, %415 : vector<2x1xf32>
    %417 = vector.extract_strided_slice %397 {offsets = [0, 3, 0], sizes = [2, 1, 32], strides = [1, 1, 1]} : vector<2x8x32xf32> to vector<2x1x32xf32>
    %418 = vector.shape_cast %417 : vector<2x1x32xf32> to vector<2x32xf32>
    %c3 = arith.constant 3 : index
    %c0_176 = arith.constant 0 : index
    %c0_177 = arith.constant 0 : index
    %419 = vector.load %arg17[%c3, %c0_176, %c0_177] : memref<8x32x1xf32, #tpu.memory_space<vmem>>, vector<1x32x1xf32>
    %420 = vector.shape_cast %419 : vector<1x32x1xf32> to vector<32x1xf32>
    %cst_178 = arith.constant dense<0.000000e+00> : vector<2x1xf32>
    %421 = tpu.matmul %418, %420, %cst_178 {dimension_numbers = #tpu.dot_dimension_numbers<[1], [0], [0], [1], [0, 0, 1, 1], [], []>} : vector<2x32xf32>, vector<32x1xf32>, vector<2x1xf32> -> vector<2x1xf32>
    %422 = arith.addf %416, %421 : vector<2x1xf32>
    %423 = vector.extract_strided_slice %397 {offsets = [0, 4, 0], sizes = [2, 1, 32], strides = [1, 1, 1]} : vector<2x8x32xf32> to vector<2x1x32xf32>
    %424 = vector.shape_cast %423 : vector<2x1x32xf32> to vector<2x32xf32>
    %c4 = arith.constant 4 : index
    %c0_179 = arith.constant 0 : index
    %c0_180 = arith.constant 0 : index
    %425 = vector.load %arg17[%c4, %c0_179, %c0_180] : memref<8x32x1xf32, #tpu.memory_space<vmem>>, vector<1x32x1xf32>
    %426 = vector.shape_cast %425 : vector<1x32x1xf32> to vector<32x1xf32>
    %cst_181 = arith.constant dense<0.000000e+00> : vector<2x1xf32>
    %427 = tpu.matmul %424, %426, %cst_181 {dimension_numbers = #tpu.dot_dimension_numbers<[1], [0], [0], [1], [0, 0, 1, 1], [], []>} : vector<2x32xf32>, vector<32x1xf32>, vector<2x1xf32> -> vector<2x1xf32>
    %428 = arith.addf %422, %427 : vector<2x1xf32>
    %429 = vector.extract_strided_slice %397 {offsets = [0, 5, 0], sizes = [2, 1, 32], strides = [1, 1, 1]} : vector<2x8x32xf32> to vector<2x1x32xf32>
    %430 = vector.shape_cast %429 : vector<2x1x32xf32> to vector<2x32xf32>
    %c5 = arith.constant 5 : index
    %c0_182 = arith.constant 0 : index
    %c0_183 = arith.constant 0 : index
    %431 = vector.load %arg17[%c5, %c0_182, %c0_183] : memref<8x32x1xf32, #tpu.memory_space<vmem>>, vector<1x32x1xf32>
    %432 = vector.shape_cast %431 : vector<1x32x1xf32> to vector<32x1xf32>
    %cst_184 = arith.constant dense<0.000000e+00> : vector<2x1xf32>
    %433 = tpu.matmul %430, %432, %cst_184 {dimension_numbers = #tpu.dot_dimension_numbers<[1], [0], [0], [1], [0, 0, 1, 1], [], []>} : vector<2x32xf32>, vector<32x1xf32>, vector<2x1xf32> -> vector<2x1xf32>
    %434 = arith.addf %428, %433 : vector<2x1xf32>
    %435 = vector.extract_strided_slice %397 {offsets = [0, 6, 0], sizes = [2, 1, 32], strides = [1, 1, 1]} : vector<2x8x32xf32> to vector<2x1x32xf32>
    %436 = vector.shape_cast %435 : vector<2x1x32xf32> to vector<2x32xf32>
    %c6 = arith.constant 6 : index
    %c0_185 = arith.constant 0 : index
    %c0_186 = arith.constant 0 : index
    %437 = vector.load %arg17[%c6, %c0_185, %c0_186] : memref<8x32x1xf32, #tpu.memory_space<vmem>>, vector<1x32x1xf32>
    %438 = vector.shape_cast %437 : vector<1x32x1xf32> to vector<32x1xf32>
    %cst_187 = arith.constant dense<0.000000e+00> : vector<2x1xf32>
    %439 = tpu.matmul %436, %438, %cst_187 {dimension_numbers = #tpu.dot_dimension_numbers<[1], [0], [0], [1], [0, 0, 1, 1], [], []>} : vector<2x32xf32>, vector<32x1xf32>, vector<2x1xf32> -> vector<2x1xf32>
    %440 = arith.addf %434, %439 : vector<2x1xf32>
    %441 = vector.extract_strided_slice %397 {offsets = [0, 7, 0], sizes = [2, 1, 32], strides = [1, 1, 1]} : vector<2x8x32xf32> to vector<2x1x32xf32>
    %442 = vector.shape_cast %441 : vector<2x1x32xf32> to vector<2x32xf32>
    %c7 = arith.constant 7 : index
    %c0_188 = arith.constant 0 : index
    %c0_189 = arith.constant 0 : index
    %443 = vector.load %arg17[%c7, %c0_188, %c0_189] : memref<8x32x1xf32, #tpu.memory_space<vmem>>, vector<1x32x1xf32>
    %444 = vector.shape_cast %443 : vector<1x32x1xf32> to vector<32x1xf32>
    %cst_190 = arith.constant dense<0.000000e+00> : vector<2x1xf32>
    %445 = tpu.matmul %442, %444, %cst_190 {dimension_numbers = #tpu.dot_dimension_numbers<[1], [0], [0], [1], [0, 0, 1, 1], [], []>} : vector<2x32xf32>, vector<32x1xf32>, vector<2x1xf32> -> vector<2x1xf32>
    %446 = arith.addf %440, %445 : vector<2x1xf32>
    %c0_191 = arith.constant 0 : index
    %c0_192 = arith.constant 0 : index
    %447 = vector.load %arg18[%c0_191, %c0_192] : memref<1x1xf32, #tpu.memory_space<vmem>>, vector<1x1xf32>
    %448 = vector.broadcast %447 : vector<1x1xf32> to vector<2x1xf32>
    %449 = arith.addf %446, %448 : vector<2x1xf32>
    %c0_193 = arith.constant 0 : index
    %c0_194 = arith.constant 0 : index
    %450 = vector.load %arg19[%c0_193, %c0_194] : memref<2x1xf32, #tpu.memory_space<vmem>>, vector<2x1xf32>
    tpu.vector_store %arg19[%c0_193, %c0_194], %449 {strides = array<i32>} : memref<2x1xf32, #tpu.memory_space<vmem>>, vector<2x1xf32>,
    return
  }
}

</mosaic_0001>

<llo_original>
// kernel: forward.1
$region0: #{forward.1}
  #allocation0 [shape = 'u32[]', space=smem, size = 0x4, offset = 0x4, fixed_abs, tag = 'smem constant byte address 0x4 - core index']
  #allocation1 [shape = 'u32[144,128]{1,0:T(1,128)}', space=vmem, size = 0x12000, scoped, tag = 'internal scratch']
  #allocation2 [shape = 'f32[1,1]{1,0:T(1,128)S(1)}', space=vmem, size = 0x200, scoped, tag = 'scoped memory for forward.1']
  %s0 = inlined_call_operand.vmem [shape: f32[2,8,73], index: 0, kind: input, shape index: {}]
  %s1 = inlined_call_operand.vmem [shape: f32[73,32], index: 1, kind: input, shape index: {}]
  %s2 = inlined_call_operand.vmem [shape: f32[1,32], index: 2, kind: input, shape index: {}]
  %s3 = inlined_call_operand.vmem [shape: f32[2,32,96], index: 3, kind: input, shape index: {}]
  %s4 = inlined_call_operand.vmem [shape: f32[2,1,96], index: 4, kind: input, shape index: {}]
  %s5 = inlined_call_operand.vmem [shape: f32[2,32,32], index: 5, kind: input, shape index: {}]
  %s6 = inlined_call_operand.vmem [shape: f32[2,1,32], index: 6, kind: input, shape index: {}]
  %s7 = inlined_call_operand.vmem [shape: f32[2,1,32], index: 7, kind: input, shape index: {}]
  %s8 = inlined_call_operand.vmem [shape: f32[2,1,32], index: 8, kind: input, shape index: {}]
  %s9 = inlined_call_operand.vmem [shape: f32[2,32,64], index: 9, kind: input, shape index: {}]
  %s10 = inlined_call_operand.vmem [shape: f32[2,1,64], index: 10, kind: input, shape index: {}]
  %s11 = inlined_call_operand.vmem [shape: f32[2,64,32], index: 11, kind: input, shape index: {}]
  %s12 = inlined_call_operand.vmem [shape: f32[2,1,32], index: 12, kind: input, shape index: {}]
  %s13 = inlined_call_operand.vmem [shape: f32[2,1,32], index: 13, kind: input, shape index: {}]
  %s14 = inlined_call_operand.vmem [shape: f32[2,1,32], index: 14, kind: input, shape index: {}]
  %s15 = inlined_call_operand.vmem [shape: f32[1,32], index: 15, kind: input, shape index: {}]
  %s16 = inlined_call_operand.vmem [shape: f32[1,32], index: 16, kind: input, shape index: {}]
  %s17 = inlined_call_operand.vmem [shape: f32[8,32,1], index: 17, kind: input, shape index: {}]
  %s18 = inlined_call_operand.<no memory space> [shape: f32[1,1], index: 18, kind: input, shape index: {}]
  %s19 = inlined_call_operand.vmem [shape: f32[2,1], index: 19, kind: output, shape index: {}]
  %s20 = sld [smem:[#allocation0]]
  $region86: #{forward.1} parent=0
    _
  %s22 = ssub.s32 1, %s20
  %s23 = scalar_select 0, %s22, %s20
  %v24 = vstv %s18
  %25 = vst [vmem:[#allocation2] sm:$0x1] %v24
  // Predicated region
  $region2: #{forward.1} parent=0 // pred_check
    _
  $region3: #{forward.1} parent=0 // pred_check_branch
    %27 = sbr.rel (0) target = $region5
  $region4: #{forward.1} parent=0 // pred_region
    _
  $region5: #{forward.1} parent=0 // pred_fallthru
    _
  // Predicated region
  $region6: #{forward.1} parent=0 // pred_check
    _
  $region7: #{forward.1} parent=0 // pred_check_branch
    %29 = sbr.rel (0) target = $region9
  $region8: #{forward.1} parent=0 // pred_region
    _
  $region9: #{forward.1} parent=0 // pred_fallthru
    _
  // Predicated region
  $region10: #{forward.1} parent=0 // pred_check
    _
  $region11: #{forward.1} parent=0 // pred_check_branch
    %31 = sbr.rel (0) target = $region13
  $region12: #{forward.1} parent=0 // pred_region
    _
  $region13: #{forward.1} parent=0 // pred_fallthru
    _
  // Predicated region
  $region14: #{forward.1} parent=0 // pred_check
    _
  $region15: #{forward.1} parent=0 // pred_check_branch
    %33 = sbr.rel (0) target = $region17
  $region16: #{forward.1} parent=0 // pred_region
    _
  $region17: #{forward.1} parent=0 // pred_fallthru
    _
  // Predicated region
  $region18: #{forward.1} parent=0 // pred_check
    _
  $region19: #{forward.1} parent=0 // pred_check_branch
    %35 = sbr.rel (0) target = $region21
  $region20: #{forward.1} parent=0 // pred_region
    _
  $region21: #{forward.1} parent=0 // pred_fallthru
    _
  // Predicated region
  $region22: #{forward.1} parent=0 // pred_check
    _
  $region23: #{forward.1} parent=0 // pred_check_branch
    %37 = sbr.rel (0) target = $region25
  $region24: #{forward.1} parent=0 // pred_region
    _
  $region25: #{forward.1} parent=0 // pred_fallthru
    _
  // Predicated region
  $region26: #{forward.1} parent=0 // pred_check
    _
  $region27: #{forward.1} parent=0 // pred_check_branch
    %39 = sbr.rel (0) target = $region29
  $region28: #{forward.1} parent=0 // pred_region
    _
  $region29: #{forward.1} parent=0 // pred_fallthru
    _
  // Predicated region
  $region30: #{forward.1} parent=0 // pred_check
    _
  $region31: #{forward.1} parent=0 // pred_check_branch
    %41 = sbr.rel (0) target = $region33
  $region32: #{forward.1} parent=0 // pred_region
    _
  $region33: #{forward.1} parent=0 // pred_fallthru
    _
  // Predicated region
  $region34: #{forward.1} parent=0 // pred_check
    _
  $region35: #{forward.1} parent=0 // pred_check_branch
    %43 = sbr.rel (0) target = $region37
  $region36: #{forward.1} parent=0 // pred_region
    _
  $region37: #{forward.1} parent=0 // pred_fallthru
    _
  // Predicated region
  $region38: #{forward.1} parent=0 // pred_check
    _
  $region39: #{forward.1} parent=0 // pred_check_branch
    %45 = sbr.rel (0) target = $region41
  $region40: #{forward.1} parent=0 // pred_region
    _
  $region41: #{forward.1} parent=0 // pred_fallthru
    _
  // Predicated region
  $region42: #{forward.1} parent=0 // pred_check
    _
  $region43: #{forward.1} parent=0 // pred_check_branch
    %47 = sbr.rel (0) target = $region45
  $region44: #{forward.1} parent=0 // pred_region
    _
  $region45: #{forward.1} parent=0 // pred_fallthru
    _
  // Predicated region
  $region46: #{forward.1} parent=0 // pred_check
    _
  $region47: #{forward.1} parent=0 // pred_check_branch
    %49 = sbr.rel (0) target = $region49
  $region48: #{forward.1} parent=0 // pred_region
    _
  $region49: #{forward.1} parent=0 // pred_fallthru
    _
  // Predicated region
  $region50: #{forward.1} parent=0 // pred_check
    _
  $region51: #{forward.1} parent=0 // pred_check_branch
    %51 = sbr.rel (0) target = $region53
  $region52: #{forward.1} parent=0 // pred_region
    _
  $region53: #{forward.1} parent=0 // pred_fallthru
    _
  // Predicated region
  $region54: #{forward.1} parent=0 // pred_check
    _
  $region55: #{forward.1} parent=0 // pred_check_branch
    %53 = sbr.rel (0) target = $region57
  $region56: #{forward.1} parent=0 // pred_region
    _
  $region57: #{forward.1} parent=0 // pred_fallthru
    _
  // Predicated region
  $region58: #{forward.1} parent=0 // pred_check
    _
  $region59: #{forward.1} parent=0 // pred_check_branch
    %55 = sbr.rel (0) target = $region61
  $region60: #{forward.1} parent=0 // pred_region
    _
  $region61: #{forward.1} parent=0 // pred_fallthru
    _
  // Predicated region
  $region62: #{forward.1} parent=0 // pred_check
    _
  $region63: #{forward.1} parent=0 // pred_check_branch
    %57 = sbr.rel (0) target = $region65
  $region64: #{forward.1} parent=0 // pred_region
    _
  $region65: #{forward.1} parent=0 // pred_fallthru
    _
  // Predicated region
  $region66: #{forward.1} parent=0 // pred_check
    _
  $region67: #{forward.1} parent=0 // pred_check_branch
    %59 = sbr.rel (0) target = $region69
  $region68: #{forward.1} parent=0 // pred_region
    _
  $region69: #{forward.1} parent=0 // pred_fallthru
    _
  // Predicated region
  $region70: #{forward.1} parent=0 // pred_check
    _
  $region71: #{forward.1} parent=0 // pred_check_branch
    %61 = sbr.rel (0) target = $region73
  $region72: #{forward.1} parent=0 // pred_region
    _
  $region73: #{forward.1} parent=0 // pred_fallthru
    _
  // Predicated region
  $region74: #{forward.1} parent=0 // pred_check
    _
  $region75: #{forward.1} parent=0 // pred_check_branch
    %63 = sbr.rel (0) target = $region77
  $region76: #{forward.1} parent=0 // pred_region
    _
  $region77: #{forward.1} parent=0 // pred_fallthru
    _
  %v64 = vld [vmem:[%s0] sm:$0xff]
  %v65 = vld [vmem:[%s0 + $0x8] sm:$0xff]
  %v66 = vld [vmem:[%s1] sm:$0xff]
  %v67 = vld [vmem:[%s1 + $0x8] sm:$0xff]
  %v68 = vld [vmem:[%s1 + $0x10] sm:$0xff]
  %v69 = vld [vmem:[%s1 + $0x18] sm:$0xff]
  %v70 = vld [vmem:[%s1 + $0x20] sm:$0xff]
  %v71 = vld [vmem:[%s1 + $0x28] sm:$0xff]
  %v72 = vld [vmem:[%s1 + $0x30] sm:$0xff]
  %v73 = vld [vmem:[%s1 + $0x38] sm:$0xff]
  %v74 = vld [vmem:[%s1 + $0x40] sm:$0xff]
  %v75 = vld [vmem:[%s1 + $0x48] sm:$0x1]
  %v76 = vld [vmem:[%s2] sm:$0x1]
  %v78 = vlaneseq
  %v79 = vshrl.u32 %v78, 7
  %v80 = vsub.s32 0, %v79
  %v81 = vrot.slane %v76, %v80
  %vm83 = vcmask 596992
  %v85 = vsel %vm83, %v64, 0
  %v88 = vsel %vm83, %v65, 0
  %vm90 = vcmask 1040384
  %v92 = vsel %vm90, %v75, 0
  %94 = vmatprep.subr.mxu0 0.0
  %95 = vmatpush1.msra.mxu0 %v66
  %96 = vmatprep.subr.mxu0 0.0
  %97 = vmatpush1.msra.mxu0 %v67
  %98 = vmatprep.subr.mxu0 0.0
  %99 = vmatpush1.msra.mxu0 %v68
  %100 = vmatprep.subr.mxu0 0.0
  %101 = vmatpush1.msra.mxu0 %v69
  %102 = vmatprep.subr.mxu0 0.0
  %103 = vmatpush1.msra.mxu0 %v70
  %104 = vmatprep.subr.mxu0 0.0
  %105 = vmatpush1.msra.mxu0 %v71
  %106 = vmatprep.subr.mxu0 0.0
  %107 = vmatpush1.msra.mxu0 %v72
  %108 = vmatprep.subr.mxu0 0.0
  %109 = vmatpush1.msra.mxu0 %v73
  %110 = vmatprep.subr.mxu0 0.0
  %111 = vmatpush1.msra.mxu0 %v74
  %112 = vmatprep.subr.mxu0 0.0
  %113 = vmatpush1.msra.mxu0 %v92
  %114 = vmatprep.subr.mxu0 0.0
  %115 = vmatpush1.msra.mxu0 0.0
  %116 = vmatprep.subr.mxu0 0.0
  %117 = vmatpush1.msra.mxu0 0.0
  %118 = vmatprep.subr.mxu0 0.0
  %119 = vmatpush1.msra.mxu0 0.0
  %120 = vmatprep.subr.mxu0 0.0
  %121 = vmatpush1.msra.mxu0 0.0
  %122 = vmatprep.subr.mxu0 0.0
  %123 = vmatpush1.msra.mxu0 0.0
  %124 = vmatprep.subr.mxu0 0.0
  %125 = vmatpush1.msra.mxu0 0.0
  %126 = vmatprep.subr.mxu0 0.0
  %127 = vmatpush1.msra.mxu0 0.0
  %128 = vmatprep.subr.mxu0 0.0
  %129 = vmatpush1.msra.mxu0 0.0
  %130 = vmatprep.subr.mxu0 0.0
  %131 = vmatpush1.msra.mxu0 0.0
  %132 = vmatprep.subr.mxu0 0.0
  %133 = vmatpush1.msra.mxu0 0.0
  %134 = vmatprep.subr.mxu0 0.0
  %135 = vmatpush1.msra.mxu0 0.0
  %136 = vmatprep.subr.mxu0 0.0
  %137 = vmatpush1.msra.mxu0 0.0
  %138 = vmatprep.subr.mxu0 0.0
  %139 = vmatpush1.msra.mxu0 0.0
  %140 = vmatprep.subr.mxu0 0.0
  %141 = vmatpush1.msra.mxu0 0.0
  %142 = vmatprep.subr.mxu0 0.0
  %143 = vmatpush1.msra.mxu0 0.0
  %144 = vmatprep.subr.mxu0 0.0
  %145 = vmatpush1.msra.mxu0 0.0
  %146 = vmatprep.subr.mxu0 0.0
  %147 = vmatpush1.msra.mxu0 0.0
  %148 = vmatprep.subr.mxu0 0.0
  %149 = vmatpush1.msra.mxu0 0.0
  %150 = vmatprep.subr.mxu0 0.0
  %151 = vmatpush1.msra.mxu0 0.0
  %152 = vmatprep.subr.mxu0 0.0
  %153 = vmatpush1.msra.mxu0 0.0
  %154 = vmatprep.subr.mxu0 0.0
  %155 = vmatpush1.msra.mxu0 0.0
  %156 = vmatprep.subr.mxu0 0.0
  %157 = vmatpush1.msra.mxu0 0.0
  %158 = vmatprep.mubr.f32.mxu0 0.0
  %159 = vmatmul.mubr.f32.gmra.mrb[0].mxu0 %v85
  %v160 = vpop.f32.mrb[0].mxu0
  %v161 = vadd.f32 %v81, %v160
  %v162 = vpop.f32.mrb[0].mxu0
  %163 = vmatprep.mubr.f32.mxu0 0.0
  %164 = vmatmul.mubr.f32.gmra.mrb[0].mxu0 %v88
  %v165 = vpop.f32.mrb[0].mxu0
  %v166 = vadd.f32 %v81, %v165
  %v167 = vpop.f32.mrb[0].mxu0
  %168 = vdwg.mxu0
  %v169 = vld [vmem:[%s3] sm:$0xff]
  %v170 = vld [vmem:[%s3 + $0x8] sm:$0xff]
  %v171 = vld [vmem:[%s3 + $0x10] sm:$0xff]
  %v172 = vld [vmem:[%s3 + $0x18] sm:$0xff]
  %v173 = vld [vmem:[%s4] sm:$0x1]
  %v174 = vld [vmem:[%s5] sm:$0xff]
  %v175 = vld [vmem:[%s5 + $0x8] sm:$0xff]
  %v176 = vld [vmem:[%s5 + $0x10] sm:$0xff]
  %v177 = vld [vmem:[%s5 + $0x18] sm:$0xff]
  %v178 = vld [vmem:[%s6] sm:$0x1]
  %v180 = vlaneseq
  %v181 = vshrl.u32 %v180, 7
  %v182 = vsub.s32 0, %v181
  %v183 = vrot.slane %v173, %v182
  %vm185 = vcmask 261120
  %v187 = vsel %vm185, %v161, 0
  %v190 = vsel %vm185, %v166, 0
  %192 = vmatprep.subr.mxu0 0.0
  %193 = vmatpush1.msra.mxu0 %v169
  %194 = vmatprep.subr.mxu0 0.0
  %195 = vmatpush1.msra.mxu0 %v170
  %196 = vmatprep.subr.mxu0 0.0
  %197 = vmatpush1.msra.mxu0 %v171
  %198 = vmatprep.subr.mxu0 0.0
  %199 = vmatpush1.msra.mxu0 %v172
  %200 = vmatprep.subr.mxu0 0.0
  %201 = vmatpush1.msra.mxu0 0.0
  %202 = vmatprep.subr.mxu0 0.0
  %203 = vmatpush1.msra.mxu0 0.0
  %204 = vmatprep.subr.mxu0 0.0
  %205 = vmatpush1.msra.mxu0 0.0
  %206 = vmatprep.subr.mxu0 0.0
  %207 = vmatpush1.msra.mxu0 0.0
  %208 = vmatprep.subr.mxu0 0.0
  %209 = vmatpush1.msra.mxu0 0.0
  %210 = vmatprep.subr.mxu0 0.0
  %211 = vmatpush1.msra.mxu0 0.0
  %212 = vmatprep.subr.mxu0 0.0
  %213 = vmatpush1.msra.mxu0 0.0
  %214 = vmatprep.subr.mxu0 0.0
  %215 = vmatpush1.msra.mxu0 0.0
  %216 = vmatprep.subr.mxu0 0.0
  %217 = vmatpush1.msra.mxu0 0.0
  %218 = vmatprep.subr.mxu0 0.0
  %219 = vmatpush1.msra.mxu0 0.0
  %220 = vmatprep.subr.mxu0 0.0
  %221 = vmatpush1.msra.mxu0 0.0
  %222 = vmatprep.subr.mxu0 0.0
  %223 = vmatpush1.msra.mxu0 0.0
  %224 = vmatprep.subr.mxu0 0.0
  %225 = vmatpush1.msra.mxu0 0.0
  %226 = vmatprep.subr.mxu0 0.0
  %227 = vmatpush1.msra.mxu0 0.0
  %228 = vmatprep.subr.mxu0 0.0
  %229 = vmatpush1.msra.mxu0 0.0
  %230 = vmatprep.subr.mxu0 0.0
  %231 = vmatpush1.msra.mxu0 0.0
  %232 = vmatprep.subr.mxu0 0.0
  %233 = vmatpush1.msra.mxu0 0.0
  %234 = vmatprep.subr.mxu0 0.0
  %235 = vmatpush1.msra.mxu0 0.0
  %236 = vmatprep.subr.mxu0 0.0
  %237 = vmatpush1.msra.mxu0 0.0
  %238 = vmatprep.subr.mxu0 0.0
  %239 = vmatpush1.msra.mxu0 0.0
  %240 = vmatprep.subr.mxu0 0.0
  %241 = vmatpush1.msra.mxu0 0.0
  %242 = vmatprep.subr.mxu0 0.0
  %243 = vmatpush1.msra.mxu0 0.0
  %244 = vmatprep.subr.mxu0 0.0
  %245 = vmatpush1.msra.mxu0 0.0
  %246 = vmatprep.subr.mxu0 0.0
  %247 = vmatpush1.msra.mxu0 0.0
  %248 = vmatprep.subr.mxu0 0.0
  %249 = vmatpush1.msra.mxu0 0.0
  %250 = vmatprep.subr.mxu0 0.0
  %251 = vmatpush1.msra.mxu0 0.0
  %252 = vmatprep.subr.mxu0 0.0
  %253 = vmatpush1.msra.mxu0 0.0
  %254 = vmatprep.subr.mxu0 0.0
  %255 = vmatpush1.msra.mxu0 0.0
  %256 = vmatprep.mubr.f32.mxu0 0.0
  %257 = vmatmul.mubr.f32.gmra.mrb[0].mxu0 %v187
  %v258 = vpop.f32.mrb[0].mxu0
  %v259 = vadd.f32 %v183, %v258
  %v260 = vpop.f32.mrb[0].mxu0
  %261 = vmatprep.mubr.f32.mxu0 0.0
  %262 = vmatmul.mubr.f32.gmra.mrb[0].mxu0 %v190
  %v263 = vpop.f32.mrb[0].mxu0
  %v264 = vadd.f32 %v183, %v263
  %v265 = vpop.f32.mrb[0].mxu0
  %266 = vdwg.mxu0
  %268 = vrot.lane.b32.xlu0 %v259, 96
  %v269 = vpop.permute.xlu0 %268
  %vm270 = vcmask 64512
  %v271 = vsel %vm270, %v259, 0
  %v273 = vsel %vm270, %v269, 0
  %275 = vmatprep.subr.mxu0 0.0
  %276 = vmatpush1.xpose.msra.mxu0 %v273
  %277 = vmatprep.subr.mxu0 0.0
  %278 = vmatpush1.xpose.msra.mxu0 0.0
  %279 = vmatprep.subr.mxu0 0.0
  %280 = vmatpush1.xpose.msra.mxu0 0.0
  %281 = vmatprep.subr.mxu0 0.0
  %282 = vmatpush1.xpose.msra.mxu0 0.0
  %283 = vmatprep.subr.mxu0 0.0
  %284 = vmatpush1.xpose.msra.mxu0 0.0
  %285 = vmatprep.subr.mxu0 0.0
  %286 = vmatpush1.xpose.msra.mxu0 0.0
  %287 = vmatprep.subr.mxu0 0.0
  %288 = vmatpush1.xpose.msra.mxu0 0.0
  %289 = vmatprep.subr.mxu0 0.0
  %290 = vmatpush1.xpose.msra.mxu0 0.0
  %291 = vmatprep.subr.mxu0 0.0
  %292 = vmatpush1.xpose.msra.mxu0 0.0
  %293 = vmatprep.subr.mxu0 0.0
  %294 = vmatpush1.xpose.msra.mxu0 0.0
  %295 = vmatprep.subr.mxu0 0.0
  %296 = vmatpush1.xpose.msra.mxu0 0.0
  %297 = vmatprep.subr.mxu0 0.0
  %298 = vmatpush1.xpose.msra.mxu0 0.0
  %299 = vmatprep.subr.mxu0 0.0
  %300 = vmatpush1.xpose.msra.mxu0 0.0
  %301 = vmatprep.subr.mxu0 0.0
  %302 = vmatpush1.xpose.msra.mxu0 0.0
  %303 = vmatprep.subr.mxu0 0.0
  %304 = vmatpush1.xpose.msra.mxu0 0.0
  %305 = vmatprep.subr.mxu0 0.0
  %306 = vmatpush1.xpose.msra.mxu0 0.0
  %307 = vmatprep.subr.mxu0 0.0
  %308 = vmatpush1.xpose.msra.mxu0 0.0
  %309 = vmatprep.subr.mxu0 0.0
  %310 = vmatpush1.xpose.msra.mxu0 0.0
  %311 = vmatprep.subr.mxu0 0.0
  %312 = vmatpush1.xpose.msra.mxu0 0.0
  %313 = vmatprep.subr.mxu0 0.0
  %314 = vmatpush1.xpose.msra.mxu0 0.0
  %315 = vmatprep.subr.mxu0 0.0
  %316 = vmatpush1.xpose.msra.mxu0 0.0
  %317 = vmatprep.subr.mxu0 0.0
  %318 = vmatpush1.xpose.msra.mxu0 0.0
  %319 = vmatprep.subr.mxu0 0.0
  %320 = vmatpush1.xpose.msra.mxu0 0.0
  %321 = vmatprep.subr.mxu0 0.0
  %322 = vmatpush1.xpose.msra.mxu0 0.0
  %323 = vmatprep.subr.mxu0 0.0
  %324 = vmatpush1.xpose.msra.mxu0 0.0
  %325 = vmatprep.subr.mxu0 0.0
  %326 = vmatpush1.xpose.msra.mxu0 0.0
  %327 = vmatprep.subr.mxu0 0.0
  %328 = vmatpush1.xpose.msra.mxu0 0.0
  %329 = vmatprep.subr.mxu0 0.0
  %330 = vmatpush1.xpose.msra.mxu0 0.0
  %331 = vmatprep.subr.mxu0 0.0
  %332 = vmatpush1.xpose.msra.mxu0 0.0
  %333 = vmatprep.subr.mxu0 0.0
  %334 = vmatpush1.xpose.msra.mxu0 0.0
  %335 = vmatprep.subr.mxu0 0.0
  %336 = vmatpush1.xpose.msra.mxu0 0.0
  %337 = vmatprep.subr.mxu0 0.0
  %338 = vmatpush1.xpose.msra.mxu0 0.0
  %339 = vmatprep.mubr.f32.mxu0 0.0
  %340 = vmatmul.mubr.f32.gmra.mrb[0].mxu0 %v271
  %v341 = vpop.f32.mrb[0].mxu0
  %v342 = vadd.f32 0.0, %v341
  %v343 = vpop.f32.mrb[0].mxu0
  %344 = vdwg.mxu0
  %346 = vrot.lane.b32.xlu0 %v264, 96
  %v347 = vpop.permute.xlu0 %346
  %v348 = vsel %vm270, %v264, 0
  %v350 = vsel %vm270, %v347, 0
  %352 = vmatprep.subr.mxu0 0.0
  %353 = vmatpush1.xpose.msra.mxu0 %v350
  %354 = vmatprep.subr.mxu0 0.0
  %355 = vmatpush1.xpose.msra.mxu0 0.0
  %356 = vmatprep.subr.mxu0 0.0
  %357 = vmatpush1.xpose.msra.mxu0 0.0
  %358 = vmatprep.subr.mxu0 0.0
  %359 = vmatpush1.xpose.msra.mxu0 0.0
  %360 = vmatprep.subr.mxu0 0.0
  %361 = vmatpush1.xpose.msra.mxu0 0.0
  %362 = vmatprep.subr.mxu0 0.0
  %363 = vmatpush1.xpose.msra.mxu0 0.0
  %364 = vmatprep.subr.mxu0 0.0
  %365 = vmatpush1.xpose.msra.mxu0 0.0
  %366 = vmatprep.subr.mxu0 0.0
  %367 = vmatpush1.xpose.msra.mxu0 0.0
  %368 = vmatprep.subr.mxu0 0.0
  %369 = vmatpush1.xpose.msra.mxu0 0.0
  %370 = vmatprep.subr.mxu0 0.0
  %371 = vmatpush1.xpose.msra.mxu0 0.0
  %372 = vmatprep.subr.mxu0 0.0
  %373 = vmatpush1.xpose.msra.mxu0 0.0
  %374 = vmatprep.subr.mxu0 0.0
  %375 = vmatpush1.xpose.msra.mxu0 0.0
  %376 = vmatprep.subr.mxu0 0.0
  %377 = vmatpush1.xpose.msra.mxu0 0.0
  %378 = vmatprep.subr.mxu0 0.0
  %379 = vmatpush1.xpose.msra.mxu0 0.0
  %380 = vmatprep.subr.mxu0 0.0
  %381 = vmatpush1.xpose.msra.mxu0 0.0
  %382 = vmatprep.subr.mxu0 0.0
  %383 = vmatpush1.xpose.msra.mxu0 0.0
  %384 = vmatprep.subr.mxu0 0.0
  %385 = vmatpush1.xpose.msra.mxu0 0.0
  %386 = vmatprep.subr.mxu0 0.0
  %387 = vmatpush1.xpose.msra.mxu0 0.0
  %388 = vmatprep.subr.mxu0 0.0
  %389 = vmatpush1.xpose.msra.mxu0 0.0
  %390 = vmatprep.subr.mxu0 0.0
  %391 = vmatpush1.xpose.msra.mxu0 0.0
  %392 = vmatprep.subr.mxu0 0.0
  %393 = vmatpush1.xpose.msra.mxu0 0.0
  %394 = vmatprep.subr.mxu0 0.0
  %395 = vmatpush1.xpose.msra.mxu0 0.0
  %396 = vmatprep.subr.mxu0 0.0
  %397 = vmatpush1.xpose.msra.mxu0 0.0
  %398 = vmatprep.subr.mxu0 0.0
  %399 = vmatpush1.xpose.msra.mxu0 0.0
  %400 = vmatprep.subr.mxu0 0.0
  %401 = vmatpush1.xpose.msra.mxu0 0.0
  %402 = vmatprep.subr.mxu0 0.0
  %403 = vmatpush1.xpose.msra.mxu0 0.0
  %404 = vmatprep.subr.mxu0 0.0
  %405 = vmatpush1.xpose.msra.mxu0 0.0
  %406 = vmatprep.subr.mxu0 0.0
  %407 = vmatpush1.xpose.msra.mxu0 0.0
  %408 = vmatprep.subr.mxu0 0.0
  %409 = vmatpush1.xpose.msra.mxu0 0.0
  %410 = vmatprep.subr.mxu0 0.0
  %411 = vmatpush1.xpose.msra.mxu0 0.0
  %412 = vmatprep.subr.mxu0 0.0
  %413 = vmatpush1.xpose.msra.mxu0 0.0
  %414 = vmatprep.subr.mxu0 0.0
  %415 = vmatpush1.xpose.msra.mxu0 0.0
  %416 = vmatprep.mubr.f32.mxu0 0.0
  %417 = vmatmul.mubr.f32.gmra.mrb[0].mxu0 %v348
  %v418 = vpop.f32.mrb[0].mxu0
  %v419 = vadd.f32 0.0, %v418
  %v420 = vpop.f32.mrb[0].mxu0
  %421 = vdwg.mxu0
  %v422 = vmul.f32 %v342, 0.35355338
  %v423 = vmul.f32 %v419, 0.35355338
  %v424 = vsel %vm270, %v422, -inf
  %425 = vmax.xlane.f32.xlu0 %v424
  %v426 = vpop.xlane.xlu0 %425
  %v427 = vsel %vm270, %v423, -inf
  %428 = vmax.xlane.f32.xlu0 %v427
  %v429 = vpop.xlane.xlu0 %428
  %v430 = vsub.f32 %v422, %v426
  %v431 = vsub.f32 %v423, %v429
  %v432 = vmul.f32 %v430, 1.442695
  %v433 = vpow.pop %v432
  %v434 = vmul.f32 %v431, 1.442695
  %v435 = vpow.pop %v434
  %v436 = vsel %vm270, %v433, 0.0
  %437 = vadd.xlane.f32.xlu0 %v436
  %v438 = vpop.xlane.xlu0 %437
  %v439 = vsel %vm270, %v435, 0.0
  %440 = vadd.xlane.f32.xlu0 %v439
  %v441 = vpop.xlane.xlu0 %440
  %v442 = vrcp.pop %v438
  %v443 = vrcp.pop %v441
  %v444 = vmul.f32 %v433, %v442
  %v445 = vmul.f32 %v435, %v443
  %446 = vrot.lane.b32.xlu0 %v259, 64
  %v447 = vpop.permute.xlu0 %446
  %v450 = vsel %vm270, %v444, 0
  %452 = vmatprep.subr.mxu0 0.0
  %453 = vmatpush1.msra.mxu0 %v447
  %454 = vmatprep.subr.mxu0 0.0
  %455 = vmatpush1.msra.mxu0 0.0
  %456 = vmatprep.subr.mxu0 0.0
  %457 = vmatpush1.msra.mxu0 0.0
  %458 = vmatprep.subr.mxu0 0.0
  %459 = vmatpush1.msra.mxu0 0.0
  %460 = vmatprep.subr.mxu0 0.0
  %461 = vmatpush1.msra.mxu0 0.0
  %462 = vmatprep.subr.mxu0 0.0
  %463 = vmatpush1.msra.mxu0 0.0
  %464 = vmatprep.subr.mxu0 0.0
  %465 = vmatpush1.msra.mxu0 0.0
  %466 = vmatprep.subr.mxu0 0.0
  %467 = vmatpush1.msra.mxu0 0.0
  %468 = vmatprep.subr.mxu0 0.0
  %469 = vmatpush1.msra.mxu0 0.0
  %470 = vmatprep.subr.mxu0 0.0
  %471 = vmatpush1.msra.mxu0 0.0
  %472 = vmatprep.subr.mxu0 0.0
  %473 = vmatpush1.msra.mxu0 0.0
  %474 = vmatprep.subr.mxu0 0.0
  %475 = vmatpush1.msra.mxu0 0.0
  %476 = vmatprep.subr.mxu0 0.0
  %477 = vmatpush1.msra.mxu0 0.0
  %478 = vmatprep.subr.mxu0 0.0
  %479 = vmatpush1.msra.mxu0 0.0
  %480 = vmatprep.subr.mxu0 0.0
  %481 = vmatpush1.msra.mxu0 0.0
  %482 = vmatprep.subr.mxu0 0.0
  %483 = vmatpush1.msra.mxu0 0.0
  %484 = vmatprep.subr.mxu0 0.0
  %485 = vmatpush1.msra.mxu0 0.0
  %486 = vmatprep.subr.mxu0 0.0
  %487 = vmatpush1.msra.mxu0 0.0
  %488 = vmatprep.subr.mxu0 0.0
  %489 = vmatpush1.msra.mxu0 0.0
  %490 = vmatprep.subr.mxu0 0.0
  %491 = vmatpush1.msra.mxu0 0.0
  %492 = vmatprep.subr.mxu0 0.0
  %493 = vmatpush1.msra.mxu0 0.0
  %494 = vmatprep.subr.mxu0 0.0
  %495 = vmatpush1.msra.mxu0 0.0
  %496 = vmatprep.subr.mxu0 0.0
  %497 = vmatpush1.msra.mxu0 0.0
  %498 = vmatprep.subr.mxu0 0.0
  %499 = vmatpush1.msra.mxu0 0.0
  %500 = vmatprep.subr.mxu0 0.0
  %501 = vmatpush1.msra.mxu0 0.0
  %502 = vmatprep.subr.mxu0 0.0
  %503 = vmatpush1.msra.mxu0 0.0
  %504 = vmatprep.subr.mxu0 0.0
  %505 = vmatpush1.msra.mxu0 0.0
  %506 = vmatprep.subr.mxu0 0.0
  %507 = vmatpush1.msra.mxu0 0.0
  %508 = vmatprep.subr.mxu0 0.0
  %509 = vmatpush1.msra.mxu0 0.0
  %510 = vmatprep.subr.mxu0 0.0
  %511 = vmatpush1.msra.mxu0 0.0
  %512 = vmatprep.subr.mxu0 0.0
  %513 = vmatpush1.msra.mxu0 0.0
  %514 = vmatprep.subr.mxu0 0.0
  %515 = vmatpush1.msra.mxu0 0.0
  %516 = vmatprep.mubr.f32.mxu0 0.0
  %517 = vmatmul.mubr.f32.gmra.mrb[0].mxu0 %v450
  %v518 = vpop.f32.mrb[0].mxu0
  %v519 = vadd.f32 0.0, %v518
  %v520 = vpop.f32.mrb[0].mxu0
  %521 = vdwg.mxu0
  %522 = vrot.lane.b32.xlu0 %v264, 64
  %v523 = vpop.permute.xlu0 %522
  %v526 = vsel %vm270, %v445, 0
  %528 = vmatprep.subr.mxu0 0.0
  %529 = vmatpush1.msra.mxu0 %v523
  %530 = vmatprep.subr.mxu0 0.0
  %531 = vmatpush1.msra.mxu0 0.0
  %532 = vmatprep.subr.mxu0 0.0
  %533 = vmatpush1.msra.mxu0 0.0
  %534 = vmatprep.subr.mxu0 0.0
  %535 = vmatpush1.msra.mxu0 0.0
  %536 = vmatprep.subr.mxu0 0.0
  %537 = vmatpush1.msra.mxu0 0.0
  %538 = vmatprep.subr.mxu0 0.0
  %539 = vmatpush1.msra.mxu0 0.0
  %540 = vmatprep.subr.mxu0 0.0
  %541 = vmatpush1.msra.mxu0 0.0
  %542 = vmatprep.subr.mxu0 0.0
  %543 = vmatpush1.msra.mxu0 0.0
  %544 = vmatprep.subr.mxu0 0.0
  %545 = vmatpush1.msra.mxu0 0.0
  %546 = vmatprep.subr.mxu0 0.0
  %547 = vmatpush1.msra.mxu0 0.0
  %548 = vmatprep.subr.mxu0 0.0
  %549 = vmatpush1.msra.mxu0 0.0
  %550 = vmatprep.subr.mxu0 0.0
  %551 = vmatpush1.msra.mxu0 0.0
  %552 = vmatprep.subr.mxu0 0.0
  %553 = vmatpush1.msra.mxu0 0.0
  %554 = vmatprep.subr.mxu0 0.0
  %555 = vmatpush1.msra.mxu0 0.0
  %556 = vmatprep.subr.mxu0 0.0
  %557 = vmatpush1.msra.mxu0 0.0
  %558 = vmatprep.subr.mxu0 0.0
  %559 = vmatpush1.msra.mxu0 0.0
  %560 = vmatprep.subr.mxu0 0.0
  %561 = vmatpush1.msra.mxu0 0.0
  %562 = vmatprep.subr.mxu0 0.0
  %563 = vmatpush1.msra.mxu0 0.0
  %564 = vmatprep.subr.mxu0 0.0
  %565 = vmatpush1.msra.mxu0 0.0
  %566 = vmatprep.subr.mxu0 0.0
  %567 = vmatpush1.msra.mxu0 0.0
  %568 = vmatprep.subr.mxu0 0.0
  %569 = vmatpush1.msra.mxu0 0.0
  %570 = vmatprep.subr.mxu0 0.0
  %571 = vmatpush1.msra.mxu0 0.0
  %572 = vmatprep.subr.mxu0 0.0
  %573 = vmatpush1.msra.mxu0 0.0
  %574 = vmatprep.subr.mxu0 0.0
  %575 = vmatpush1.msra.mxu0 0.0
  %576 = vmatprep.subr.mxu0 0.0
  %577 = vmatpush1.msra.mxu0 0.0
  %578 = vmatprep.subr.mxu0 0.0
  %579 = vmatpush1.msra.mxu0 0.0
  %580 = vmatprep.subr.mxu0 0.0
  %581 = vmatpush1.msra.mxu0 0.0
  %582 = vmatprep.subr.mxu0 0.0
  %583 = vmatpush1.msra.mxu0 0.0
  %584 = vmatprep.subr.mxu0 0.0
  %585 = vmatpush1.msra.mxu0 0.0
  %586 = vmatprep.subr.mxu0 0.0
  %587 = vmatpush1.msra.mxu0 0.0
  %588 = vmatprep.subr.mxu0 0.0
  %589 = vmatpush1.msra.mxu0 0.0
  %590 = vmatprep.subr.mxu0 0.0
  %591 = vmatpush1.msra.mxu0 0.0
  %592 = vmatprep.mubr.f32.mxu0 0.0
  %593 = vmatmul.mubr.f32.gmra.mrb[0].mxu0 %v526
  %v594 = vpop.f32.mrb[0].mxu0
  %v595 = vadd.f32 0.0, %v594
  %v596 = vpop.f32.mrb[0].mxu0
  %597 = vdwg.mxu0
  %598 = vrot.lane.b32.xlu0 %v259, 120
  %v599 = vpop.permute.xlu0 %598
  %600 = vrot.lane.b32.xlu0 %v259, 88
  %v601 = vpop.permute.xlu0 %600
  %v602 = vsel %vm270, %v599, 0
  %v604 = vsel %vm270, %v601, 0
  %606 = vmatprep.subr.mxu0 0.0
  %607 = vmatpush1.xpose.msra.mxu0 %v604
  %608 = vmatprep.subr.mxu0 0.0
  %609 = vmatpush1.xpose.msra.mxu0 0.0
  %610 = vmatprep.subr.mxu0 0.0
  %611 = vmatpush1.xpose.msra.mxu0 0.0
  %612 = vmatprep.subr.mxu0 0.0
  %613 = vmatpush1.xpose.msra.mxu0 0.0
  %614 = vmatprep.subr.mxu0 0.0
  %615 = vmatpush1.xpose.msra.mxu0 0.0
  %616 = vmatprep.subr.mxu0 0.0
  %617 = vmatpush1.xpose.msra.mxu0 0.0
  %618 = vmatprep.subr.mxu0 0.0
  %619 = vmatpush1.xpose.msra.mxu0 0.0
  %620 = vmatprep.subr.mxu0 0.0
  %621 = vmatpush1.xpose.msra.mxu0 0.0
  %622 = vmatprep.subr.mxu0 0.0
  %623 = vmatpush1.xpose.msra.mxu0 0.0
  %624 = vmatprep.subr.mxu0 0.0
  %625 = vmatpush1.xpose.msra.mxu0 0.0
  %626 = vmatprep.subr.mxu0 0.0
  %627 = vmatpush1.xpose.msra.mxu0 0.0
  %628 = vmatprep.subr.mxu0 0.0
  %629 = vmatpush1.xpose.msra.mxu0 0.0
  %630 = vmatprep.subr.mxu0 0.0
  %631 = vmatpush1.xpose.msra.mxu0 0.0
  %632 = vmatprep.subr.mxu0 0.0
  %633 = vmatpush1.xpose.msra.mxu0 0.0
  %634 = vmatprep.subr.mxu0 0.0
  %635 = vmatpush1.xpose.msra.mxu0 0.0
  %636 = vmatprep.subr.mxu0 0.0
  %637 = vmatpush1.xpose.msra.mxu0 0.0
  %638 = vmatprep.subr.mxu0 0.0
  %639 = vmatpush1.xpose.msra.mxu0 0.0
  %640 = vmatprep.subr.mxu0 0.0
  %641 = vmatpush1.xpose.msra.mxu0 0.0
  %642 = vmatprep.subr.mxu0 0.0
  %643 = vmatpush1.xpose.msra.mxu0 0.0
  %644 = vmatprep.subr.mxu0 0.0
  %645 = vmatpush1.xpose.msra.mxu0 0.0
  %646 = vmatprep.subr.mxu0 0.0
  %647 = vmatpush1.xpose.msra.mxu0 0.0
  %648 = vmatprep.subr.mxu0 0.0
  %649 = vmatpush1.xpose.msra.mxu0 0.0
  %650 = vmatprep.subr.mxu0 0.0
  %651 = vmatpush1.xpose.msra.mxu0 0.0
  %652 = vmatprep.subr.mxu0 0.0
  %653 = vmatpush1.xpose.msra.mxu0 0.0
  %654 = vmatprep.subr.mxu0 0.0
  %655 = vmatpush1.xpose.msra.mxu0 0.0
  %656 = vmatprep.subr.mxu0 0.0
  %657 = vmatpush1.xpose.msra.mxu0 0.0
  %658 = vmatprep.subr.mxu0 0.0
  %659 = vmatpush1.xpose.msra.mxu0 0.0
  %660 = vmatprep.subr.mxu0 0.0
  %661 = vmatpush1.xpose.msra.mxu0 0.0
  %662 = vmatprep.subr.mxu0 0.0
  %663 = vmatpush1.xpose.msra.mxu0 0.0
  %664 = vmatprep.subr.mxu0 0.0
  %665 = vmatpush1.xpose.msra.mxu0 0.0
  %666 = vmatprep.subr.mxu0 0.0
  %667 = vmatpush1.xpose.msra.mxu0 0.0
  %668 = vmatprep.subr.mxu0 0.0
  %669 = vmatpush1.xpose.msra.mxu0 0.0
  %670 = vmatprep.mubr.f32.mxu0 0.0
  %671 = vmatmul.mubr.f32.gmra.mrb[0].mxu0 %v602
  %v672 = vpop.f32.mrb[0].mxu0
  %v673 = vadd.f32 0.0, %v672
  %v674 = vpop.f32.mrb[0].mxu0
  %675 = vdwg.mxu0
  %676 = vrot.lane.b32.xlu0 %v264, 120
  %v677 = vpop.permute.xlu0 %676
  %678 = vrot.lane.b32.xlu0 %v264, 88
  %v679 = vpop.permute.xlu0 %678
  %v680 = vsel %vm270, %v677, 0
  %v682 = vsel %vm270, %v679, 0
  %684 = vmatprep.subr.mxu0 0.0
  %685 = vmatpush1.xpose.msra.mxu0 %v682
  %686 = vmatprep.subr.mxu0 0.0
  %687 = vmatpush1.xpose.msra.mxu0 0.0
  %688 = vmatprep.subr.mxu0 0.0
  %689 = vmatpush1.xpose.msra.mxu0 0.0
  %690 = vmatprep.subr.mxu0 0.0
  %691 = vmatpush1.xpose.msra.mxu0 0.0
  %692 = vmatprep.subr.mxu0 0.0
  %693 = vmatpush1.xpose.msra.mxu0 0.0
  %694 = vmatprep.subr.mxu0 0.0
  %695 = vmatpush1.xpose.msra.mxu0 0.0
  %696 = vmatprep.subr.mxu0 0.0
  %697 = vmatpush1.xpose.msra.mxu0 0.0
  %698 = vmatprep.subr.mxu0 0.0
  %699 = vmatpush1.xpose.msra.mxu0 0.0
  %700 = vmatprep.subr.mxu0 0.0
  %701 = vmatpush1.xpose.msra.mxu0 0.0
  %702 = vmatprep.subr.mxu0 0.0
  %703 = vmatpush1.xpose.msra.mxu0 0.0
  %704 = vmatprep.subr.mxu0 0.0
  %705 = vmatpush1.xpose.msra.mxu0 0.0
  %706 = vmatprep.subr.mxu0 0.0
  %707 = vmatpush1.xpose.msra.mxu0 0.0
  %708 = vmatprep.subr.mxu0 0.0
  %709 = vmatpush1.xpose.msra.mxu0 0.0
  %710 = vmatprep.subr.mxu0 0.0
  %711 = vmatpush1.xpose.msra.mxu0 0.0
  %712 = vmatprep.subr.mxu0 0.0
  %713 = vmatpush1.xpose.msra.mxu0 0.0
  %714 = vmatprep.subr.mxu0 0.0
  %715 = vmatpush1.xpose.msra.mxu0 0.0
  %716 = vmatprep.subr.mxu0 0.0
  %717 = vmatpush1.xpose.msra.mxu0 0.0
  %718 = vmatprep.subr.mxu0 0.0
  %719 = vmatpush1.xpose.msra.mxu0 0.0
  %720 = vmatprep.subr.mxu0 0.0
  %721 = vmatpush1.xpose.msra.mxu0 0.0
  %722 = vmatprep.subr.mxu0 0.0
  %723 = vmatpush1.xpose.msra.mxu0 0.0
  %724 = vmatprep.subr.mxu0 0.0
  %725 = vmatpush1.xpose.msra.mxu0 0.0
  %726 = vmatprep.subr.mxu0 0.0
  %727 = vmatpush1.xpose.msra.mxu0 0.0
  %728 = vmatprep.subr.mxu0 0.0
  %729 = vmatpush1.xpose.msra.mxu0 0.0
  %730 = vmatprep.subr.mxu0 0.0
  %731 = vmatpush1.xpose.msra.mxu0 0.0
  %732 = vmatprep.subr.mxu0 0.0
  %733 = vmatpush1.xpose.msra.mxu0 0.0
  %734 = vmatprep.subr.mxu0 0.0
  %735 = vmatpush1.xpose.msra.mxu0 0.0
  %736 = vmatprep.subr.mxu0 0.0
  %737 = vmatpush1.xpose.msra.mxu0 0.0
  %738 = vmatprep.subr.mxu0 0.0
  %739 = vmatpush1.xpose.msra.mxu0 0.0
  %740 = vmatprep.subr.mxu0 0.0
  %741 = vmatpush1.xpose.msra.mxu0 0.0
  %742 = vmatprep.subr.mxu0 0.0
  %743 = vmatpush1.xpose.msra.mxu0 0.0
  %744 = vmatprep.subr.mxu0 0.0
  %745 = vmatpush1.xpose.msra.mxu0 0.0
  %746 = vmatprep.subr.mxu0 0.0
  %747 = vmatpush1.xpose.msra.mxu0 0.0
  %748 = vmatprep.mubr.f32.mxu0 0.0
  %749 = vmatmul.mubr.f32.gmra.mrb[0].mxu0 %v680
  %v750 = vpop.f32.mrb[0].mxu0
  %v751 = vadd.f32 0.0, %v750
  %v752 = vpop.f32.mrb[0].mxu0
  %753 = vdwg.mxu0
  %v754 = vmul.f32 %v673, 0.35355338
  %v755 = vmul.f32 %v751, 0.35355338
  %v756 = vsel %vm270, %v754, -inf
  %757 = vmax.xlane.f32.xlu0 %v756
  %v758 = vpop.xlane.xlu0 %757
  %v759 = vsel %vm270, %v755, -inf
  %760 = vmax.xlane.f32.xlu0 %v759
  %v761 = vpop.xlane.xlu0 %760
  %v762 = vsub.f32 %v754, %v758
  %v763 = vsub.f32 %v755, %v761
  %v764 = vmul.f32 %v762, 1.442695
  %v765 = vpow.pop %v764
  %v766 = vmul.f32 %v763, 1.442695
  %v767 = vpow.pop %v766
  %v768 = vsel %vm270, %v765, 0.0
  %769 = vadd.xlane.f32.xlu0 %v768
  %v770 = vpop.xlane.xlu0 %769
  %v771 = vsel %vm270, %v767, 0.0
  %772 = vadd.xlane.f32.xlu0 %v771
  %v773 = vpop.xlane.xlu0 %772
  %v774 = vrcp.pop %v770
  %v775 = vrcp.pop %v773
  %v776 = vmul.f32 %v765, %v774
  %v777 = vmul.f32 %v767, %v775
  %778 = vrot.lane.b32.xlu0 %v259, 56
  %v779 = vpop.permute.xlu0 %778
  %v782 = vsel %vm270, %v776, 0
  %784 = vmatprep.subr.mxu0 0.0
  %785 = vmatpush1.msra.mxu0 %v779
  %786 = vmatprep.subr.mxu0 0.0
  %787 = vmatpush1.msra.mxu0 0.0
  %788 = vmatprep.subr.mxu0 0.0
  %789 = vmatpush1.msra.mxu0 0.0
  %790 = vmatprep.subr.mxu0 0.0
  %791 = vmatpush1.msra.mxu0 0.0
  %792 = vmatprep.subr.mxu0 0.0
  %793 = vmatpush1.msra.mxu0 0.0
  %794 = vmatprep.subr.mxu0 0.0
  %795 = vmatpush1.msra.mxu0 0.0
  %796 = vmatprep.subr.mxu0 0.0
  %797 = vmatpush1.msra.mxu0 0.0
  %798 = vmatprep.subr.mxu0 0.0
  %799 = vmatpush1.msra.mxu0 0.0
  %800 = vmatprep.subr.mxu0 0.0
  %801 = vmatpush1.msra.mxu0 0.0
  %802 = vmatprep.subr.mxu0 0.0
  %803 = vmatpush1.msra.mxu0 0.0
  %804 = vmatprep.subr.mxu0 0.0
  %805 = vmatpush1.msra.mxu0 0.0
  %806 = vmatprep.subr.mxu0 0.0
  %807 = vmatpush1.msra.mxu0 0.0
  %808 = vmatprep.subr.mxu0 0.0
  %809 = vmatpush1.msra.mxu0 0.0
  %810 = vmatprep.subr.mxu0 0.0
  %811 = vmatpush1.msra.mxu0 0.0
  %812 = vmatprep.subr.mxu0 0.0
  %813 = vmatpush1.msra.mxu0 0.0
  %814 = vmatprep.subr.mxu0 0.0
  %815 = vmatpush1.msra.mxu0 0.0
  %816 = vmatprep.subr.mxu0 0.0
  %817 = vmatpush1.msra.mxu0 0.0
  %818 = vmatprep.subr.mxu0 0.0
  %819 = vmatpush1.msra.mxu0 0.0
  %820 = vmatprep.subr.mxu0 0.0
  %821 = vmatpush1.msra.mxu0 0.0
  %822 = vmatprep.subr.mxu0 0.0
  %823 = vmatpush1.msra.mxu0 0.0
  %824 = vmatprep.subr.mxu0 0.0
  %825 = vmatpush1.msra.mxu0 0.0
  %826 = vmatprep.subr.mxu0 0.0
  %827 = vmatpush1.msra.mxu0 0.0
  %828 = vmatprep.subr.mxu0 0.0
  %829 = vmatpush1.msra.mxu0 0.0
  %830 = vmatprep.subr.mxu0 0.0
  %831 = vmatpush1.msra.mxu0 0.0
  %832 = vmatprep.subr.mxu0 0.0
  %833 = vmatpush1.msra.mxu0 0.0
  %834 = vmatprep.subr.mxu0 0.0
  %835 = vmatpush1.msra.mxu0 0.0
  %836 = vmatprep.subr.mxu0 0.0
  %837 = vmatpush1.msra.mxu0 0.0
  %838 = vmatprep.subr.mxu0 0.0
  %839 = vmatpush1.msra.mxu0 0.0
  %840 = vmatprep.subr.mxu0 0.0
  %841 = vmatpush1.msra.mxu0 0.0
  %842 = vmatprep.subr.mxu0 0.0
  %843 = vmatpush1.msra.mxu0 0.0
  %844 = vmatprep.subr.mxu0 0.0
  %845 = vmatpush1.msra.mxu0 0.0
  %846 = vmatprep.subr.mxu0 0.0
  %847 = vmatpush1.msra.mxu0 0.0
  %848 = vmatprep.mubr.f32.mxu0 0.0
  %849 = vmatmul.mubr.f32.gmra.mrb[0].mxu0 %v782
  %v850 = vpop.f32.mrb[0].mxu0
  %v851 = vadd.f32 0.0, %v850
  %v852 = vpop.f32.mrb[0].mxu0
  %853 = vdwg.mxu0
  %854 = vrot.lane.b32.xlu0 %v264, 56
  %v855 = vpop.permute.xlu0 %854
  %v858 = vsel %vm270, %v777, 0
  %860 = vmatprep.subr.mxu0 0.0
  %861 = vmatpush1.msra.mxu0 %v855
  %862 = vmatprep.subr.mxu0 0.0
  %863 = vmatpush1.msra.mxu0 0.0
  %864 = vmatprep.subr.mxu0 0.0
  %865 = vmatpush1.msra.mxu0 0.0
  %866 = vmatprep.subr.mxu0 0.0
  %867 = vmatpush1.msra.mxu0 0.0
  %868 = vmatprep.subr.mxu0 0.0
  %869 = vmatpush1.msra.mxu0 0.0
  %870 = vmatprep.subr.mxu0 0.0
  %871 = vmatpush1.msra.mxu0 0.0
  %872 = vmatprep.subr.mxu0 0.0
  %873 = vmatpush1.msra.mxu0 0.0
  %874 = vmatprep.subr.mxu0 0.0
  %875 = vmatpush1.msra.mxu0 0.0
  %876 = vmatprep.subr.mxu0 0.0
  %877 = vmatpush1.msra.mxu0 0.0
  %878 = vmatprep.subr.mxu0 0.0
  %879 = vmatpush1.msra.mxu0 0.0
  %880 = vmatprep.subr.mxu0 0.0
  %881 = vmatpush1.msra.mxu0 0.0
  %882 = vmatprep.subr.mxu0 0.0
  %883 = vmatpush1.msra.mxu0 0.0
  %884 = vmatprep.subr.mxu0 0.0
  %885 = vmatpush1.msra.mxu0 0.0
  %886 = vmatprep.subr.mxu0 0.0
  %887 = vmatpush1.msra.mxu0 0.0
  %888 = vmatprep.subr.mxu0 0.0
  %889 = vmatpush1.msra.mxu0 0.0
  %890 = vmatprep.subr.mxu0 0.0
  %891 = vmatpush1.msra.mxu0 0.0
  %892 = vmatprep.subr.mxu0 0.0
  %893 = vmatpush1.msra.mxu0 0.0
  %894 = vmatprep.subr.mxu0 0.0
  %895 = vmatpush1.msra.mxu0 0.0
  %896 = vmatprep.subr.mxu0 0.0
  %897 = vmatpush1.msra.mxu0 0.0
  %898 = vmatprep.subr.mxu0 0.0
  %899 = vmatpush1.msra.mxu0 0.0
  %900 = vmatprep.subr.mxu0 0.0
  %901 = vmatpush1.msra.mxu0 0.0
  %902 = vmatprep.subr.mxu0 0.0
  %903 = vmatpush1.msra.mxu0 0.0
  %904 = vmatprep.subr.mxu0 0.0
  %905 = vmatpush1.msra.mxu0 0.0
  %906 = vmatprep.subr.mxu0 0.0
  %907 = vmatpush1.msra.mxu0 0.0
  %908 = vmatprep.subr.mxu0 0.0
  %909 = vmatpush1.msra.mxu0 0.0
  %910 = vmatprep.subr.mxu0 0.0
  %911 = vmatpush1.msra.mxu0 0.0
  %912 = vmatprep.subr.mxu0 0.0
  %913 = vmatpush1.msra.mxu0 0.0
  %914 = vmatprep.subr.mxu0 0.0
  %915 = vmatpush1.msra.mxu0 0.0
  %916 = vmatprep.subr.mxu0 0.0
  %917 = vmatpush1.msra.mxu0 0.0
  %918 = vmatprep.subr.mxu0 0.0
  %919 = vmatpush1.msra.mxu0 0.0
  %920 = vmatprep.subr.mxu0 0.0
  %921 = vmatpush1.msra.mxu0 0.0
  %922 = vmatprep.subr.mxu0 0.0
  %923 = vmatpush1.msra.mxu0 0.0
  %924 = vmatprep.mubr.f32.mxu0 0.0
  %925 = vmatmul.mubr.f32.gmra.mrb[0].mxu0 %v858
  %v926 = vpop.f32.mrb[0].mxu0
  %v927 = vadd.f32 0.0, %v926
  %v928 = vpop.f32.mrb[0].mxu0
  %929 = vdwg.mxu0
  %v931 = vsel %vm270, %v851, 0
  %v934 = vsel %vm270, %v927, 0
  %936 = vmatprep.subr.mxu0 0.0
  %937 = vmatpush1.msra.mxu0 %v175
  %938 = vmatprep.subr.mxu0 0.0
  %939 = vmatpush1.msra.mxu0 0.0
  %940 = vmatprep.subr.mxu0 0.0
  %941 = vmatpush1.msra.mxu0 0.0
  %942 = vmatprep.subr.mxu0 0.0
  %943 = vmatpush1.msra.mxu0 0.0
  %944 = vmatprep.subr.mxu0 0.0
  %945 = vmatpush1.msra.mxu0 0.0
  %946 = vmatprep.subr.mxu0 0.0
  %947 = vmatpush1.msra.mxu0 0.0
  %948 = vmatprep.subr.mxu0 0.0
  %949 = vmatpush1.msra.mxu0 0.0
  %950 = vmatprep.subr.mxu0 0.0
  %951 = vmatpush1.msra.mxu0 0.0
  %952 = vmatprep.subr.mxu0 0.0
  %953 = vmatpush1.msra.mxu0 0.0
  %954 = vmatprep.subr.mxu0 0.0
  %955 = vmatpush1.msra.mxu0 0.0
  %956 = vmatprep.subr.mxu0 0.0
  %957 = vmatpush1.msra.mxu0 0.0
  %958 = vmatprep.subr.mxu0 0.0
  %959 = vmatpush1.msra.mxu0 0.0
  %960 = vmatprep.subr.mxu0 0.0
  %961 = vmatpush1.msra.mxu0 0.0
  %962 = vmatprep.subr.mxu0 0.0
  %963 = vmatpush1.msra.mxu0 0.0
  %964 = vmatprep.subr.mxu0 0.0
  %965 = vmatpush1.msra.mxu0 0.0
  %966 = vmatprep.subr.mxu0 0.0
  %967 = vmatpush1.msra.mxu0 0.0
  %968 = vmatprep.subr.mxu0 0.0
  %969 = vmatpush1.msra.mxu0 0.0
  %970 = vmatprep.subr.mxu0 0.0
  %971 = vmatpush1.msra.mxu0 0.0
  %972 = vmatprep.subr.mxu0 0.0
  %973 = vmatpush1.msra.mxu0 0.0
  %974 = vmatprep.subr.mxu0 0.0
  %975 = vmatpush1.msra.mxu0 0.0
  %976 = vmatprep.subr.mxu0 0.0
  %977 = vmatpush1.msra.mxu0 0.0
  %978 = vmatprep.subr.mxu0 0.0
  %979 = vmatpush1.msra.mxu0 0.0
  %980 = vmatprep.subr.mxu0 0.0
  %981 = vmatpush1.msra.mxu0 0.0
  %982 = vmatprep.subr.mxu0 0.0
  %983 = vmatpush1.msra.mxu0 0.0
  %984 = vmatprep.subr.mxu0 0.0
  %985 = vmatpush1.msra.mxu0 0.0
  %986 = vmatprep.subr.mxu0 0.0
  %987 = vmatpush1.msra.mxu0 0.0
  %988 = vmatprep.subr.mxu0 0.0
  %989 = vmatpush1.msra.mxu0 0.0
  %990 = vmatprep.subr.mxu0 0.0
  %991 = vmatpush1.msra.mxu0 0.0
  %992 = vmatprep.subr.mxu0 0.0
  %993 = vmatpush1.msra.mxu0 0.0
  %994 = vmatprep.subr.mxu0 0.0
  %995 = vmatpush1.msra.mxu0 0.0
  %996 = vmatprep.subr.mxu0 0.0
  %997 = vmatpush1.msra.mxu0 0.0
  %998 = vmatprep.subr.mxu0 0.0
  %999 = vmatpush1.msra.mxu0 0.0
  %1000 = vmatprep.mubr.f32.mxu0 0.0
  %1001 = vmatmul.mubr.f32.gmra.mrb[0].mxu0 %v931
  %v1002 = vpop.f32.mrb[0].mxu0
  %v1003 = vadd.f32 0.0, %v1002
  %v1004 = vpop.f32.mrb[0].mxu0
  %1005 = vmatprep.mubr.f32.mxu0 0.0
  %1006 = vmatmul.mubr.f32.gmra.mrb[0].mxu0 %v934
  %v1007 = vpop.f32.mrb[0].mxu0
  %v1008 = vadd.f32 0.0, %v1007
  %v1009 = vpop.f32.mrb[0].mxu0
  %1010 = vdwg.mxu0
  %v1012 = vsel %vm270, %v519, 0
  %v1015 = vsel %vm270, %v595, 0
  %1017 = vmatprep.subr.mxu0 0.0
  %1018 = vmatpush1.msra.mxu0 %v174
  %1019 = vmatprep.subr.mxu0 0.0
  %1020 = vmatpush1.msra.mxu0 0.0
  %1021 = vmatprep.subr.mxu0 0.0
  %1022 = vmatpush1.msra.mxu0 0.0
  %1023 = vmatprep.subr.mxu0 0.0
  %1024 = vmatpush1.msra.mxu0 0.0
  %1025 = vmatprep.subr.mxu0 0.0
  %1026 = vmatpush1.msra.mxu0 0.0
  %1027 = vmatprep.subr.mxu0 0.0
  %1028 = vmatpush1.msra.mxu0 0.0
  %1029 = vmatprep.subr.mxu0 0.0
  %1030 = vmatpush1.msra.mxu0 0.0
  %1031 = vmatprep.subr.mxu0 0.0
  %1032 = vmatpush1.msra.mxu0 0.0
  %1033 = vmatprep.subr.mxu0 0.0
  %1034 = vmatpush1.msra.mxu0 0.0
  %1035 = vmatprep.subr.mxu0 0.0
  %1036 = vmatpush1.msra.mxu0 0.0
  %1037 = vmatprep.subr.mxu0 0.0
  %1038 = vmatpush1.msra.mxu0 0.0
  %1039 = vmatprep.subr.mxu0 0.0
  %1040 = vmatpush1.msra.mxu0 0.0
  %1041 = vmatprep.subr.mxu0 0.0
  %1042 = vmatpush1.msra.mxu0 0.0
  %1043 = vmatprep.subr.mxu0 0.0
  %1044 = vmatpush1.msra.mxu0 0.0
  %1045 = vmatprep.subr.mxu0 0.0
  %1046 = vmatpush1.msra.mxu0 0.0
  %1047 = vmatprep.subr.mxu0 0.0
  %1048 = vmatpush1.msra.mxu0 0.0
  %1049 = vmatprep.subr.mxu0 0.0
  %1050 = vmatpush1.msra.mxu0 0.0
  %1051 = vmatprep.subr.mxu0 0.0
  %1052 = vmatpush1.msra.mxu0 0.0
  %1053 = vmatprep.subr.mxu0 0.0
  %1054 = vmatpush1.msra.mxu0 0.0
  %1055 = vmatprep.subr.mxu0 0.0
  %1056 = vmatpush1.msra.mxu0 0.0
  %1057 = vmatprep.subr.mxu0 0.0
  %1058 = vmatpush1.msra.mxu0 0.0
  %1059 = vmatprep.subr.mxu0 0.0
  %1060 = vmatpush1.msra.mxu0 0.0
  %1061 = vmatprep.subr.mxu0 0.0
  %1062 = vmatpush1.msra.mxu0 0.0
  %1063 = vmatprep.subr.mxu0 0.0
  %1064 = vmatpush1.msra.mxu0 0.0
  %1065 = vmatprep.subr.mxu0 0.0
  %1066 = vmatpush1.msra.mxu0 0.0
  %1067 = vmatprep.subr.mxu0 0.0
  %1068 = vmatpush1.msra.mxu0 0.0
  %1069 = vmatprep.subr.mxu0 0.0
  %1070 = vmatpush1.msra.mxu0 0.0
  %1071 = vmatprep.subr.mxu0 0.0
  %1072 = vmatpush1.msra.mxu0 0.0
  %1073 = vmatprep.subr.mxu0 0.0
  %1074 = vmatpush1.msra.mxu0 0.0
  %1075 = vmatprep.subr.mxu0 0.0
  %1076 = vmatpush1.msra.mxu0 0.0
  %1077 = vmatprep.subr.mxu0 0.0
  %1078 = vmatpush1.msra.mxu0 0.0
  %1079 = vmatprep.subr.mxu0 0.0
  %1080 = vmatpush1.msra.mxu0 0.0
  %1081 = vmatprep.mubr.f32.mxu0 0.0
  %1082 = vmatmul.mubr.f32.gmra.mrb[0].mxu0 %v1012
  %v1083 = vpop.f32.mrb[0].mxu0
  %v1084 = vadd.f32 %v1003, %v1083
  %v1085 = vpop.f32.mrb[0].mxu0
  %1086 = vmatprep.mubr.f32.mxu0 0.0
  %1087 = vmatmul.mubr.f32.gmra.mrb[0].mxu0 %v1015
  %v1088 = vpop.f32.mrb[0].mxu0
  %v1089 = vadd.f32 %v1008, %v1088
  %v1090 = vpop.f32.mrb[0].mxu0
  %1091 = vdwg.mxu0
  %1092 = vrot.lane.b32.xlu0 %v259, 112
  %v1093 = vpop.permute.xlu0 %1092
  %1094 = vrot.lane.b32.xlu0 %v259, 80
  %v1095 = vpop.permute.xlu0 %1094
  %v1096 = vsel %vm270, %v1093, 0
  %v1098 = vsel %vm270, %v1095, 0
  %1100 = vmatprep.subr.mxu0 0.0
  %1101 = vmatpush1.xpose.msra.mxu0 %v1098
  %1102 = vmatprep.subr.mxu0 0.0
  %1103 = vmatpush1.xpose.msra.mxu0 0.0
  %1104 = vmatprep.subr.mxu0 0.0
  %1105 = vmatpush1.xpose.msra.mxu0 0.0
  %1106 = vmatprep.subr.mxu0 0.0
  %1107 = vmatpush1.xpose.msra.mxu0 0.0
  %1108 = vmatprep.subr.mxu0 0.0
  %1109 = vmatpush1.xpose.msra.mxu0 0.0
  %1110 = vmatprep.subr.mxu0 0.0
  %1111 = vmatpush1.xpose.msra.mxu0 0.0
  %1112 = vmatprep.subr.mxu0 0.0
  %1113 = vmatpush1.xpose.msra.mxu0 0.0
  %1114 = vmatprep.subr.mxu0 0.0
  %1115 = vmatpush1.xpose.msra.mxu0 0.0
  %1116 = vmatprep.subr.mxu0 0.0
  %1117 = vmatpush1.xpose.msra.mxu0 0.0
  %1118 = vmatprep.subr.mxu0 0.0
  %1119 = vmatpush1.xpose.msra.mxu0 0.0
  %1120 = vmatprep.subr.mxu0 0.0
  %1121 = vmatpush1.xpose.msra.mxu0 0.0
  %1122 = vmatprep.subr.mxu0 0.0
  %1123 = vmatpush1.xpose.msra.mxu0 0.0
  %1124 = vmatprep.subr.mxu0 0.0
  %1125 = vmatpush1.xpose.msra.mxu0 0.0
  %1126 = vmatprep.subr.mxu0 0.0
  %1127 = vmatpush1.xpose.msra.mxu0 0.0
  %1128 = vmatprep.subr.mxu0 0.0
  %1129 = vmatpush1.xpose.msra.mxu0 0.0
  %1130 = vmatprep.subr.mxu0 0.0
  %1131 = vmatpush1.xpose.msra.mxu0 0.0
  %1132 = vmatprep.subr.mxu0 0.0
  %1133 = vmatpush1.xpose.msra.mxu0 0.0
  %1134 = vmatprep.subr.mxu0 0.0
  %1135 = vmatpush1.xpose.msra.mxu0 0.0
  %1136 = vmatprep.subr.mxu0 0.0
  %1137 = vmatpush1.xpose.msra.mxu0 0.0
  %1138 = vmatprep.subr.mxu0 0.0
  %1139 = vmatpush1.xpose.msra.mxu0 0.0
  %1140 = vmatprep.subr.mxu0 0.0
  %1141 = vmatpush1.xpose.msra.mxu0 0.0
  %1142 = vmatprep.subr.mxu0 0.0
  %1143 = vmatpush1.xpose.msra.mxu0 0.0
  %1144 = vmatprep.subr.mxu0 0.0
  %1145 = vmatpush1.xpose.msra.mxu0 0.0
  %1146 = vmatprep.subr.mxu0 0.0
  %1147 = vmatpush1.xpose.msra.mxu0 0.0
  %1148 = vmatprep.subr.mxu0 0.0
  %1149 = vmatpush1.xpose.msra.mxu0 0.0
  %1150 = vmatprep.subr.mxu0 0.0
  %1151 = vmatpush1.xpose.msra.mxu0 0.0
  %1152 = vmatprep.subr.mxu0 0.0
  %1153 = vmatpush1.xpose.msra.mxu0 0.0
  %1154 = vmatprep.subr.mxu0 0.0
  %1155 = vmatpush1.xpose.msra.mxu0 0.0
  %1156 = vmatprep.subr.mxu0 0.0
  %1157 = vmatpush1.xpose.msra.mxu0 0.0
  %1158 = vmatprep.subr.mxu0 0.0
  %1159 = vmatpush1.xpose.msra.mxu0 0.0
  %1160 = vmatprep.subr.mxu0 0.0
  %1161 = vmatpush1.xpose.msra.mxu0 0.0
  %1162 = vmatprep.subr.mxu0 0.0
  %1163 = vmatpush1.xpose.msra.mxu0 0.0
  %1164 = vmatprep.mubr.f32.mxu0 0.0
  %1165 = vmatmul.mubr.f32.gmra.mrb[0].mxu0 %v1096
  %v1166 = vpop.f32.mrb[0].mxu0
  %v1167 = vadd.f32 0.0, %v1166
  %v1168 = vpop.f32.mrb[0].mxu0
  %1169 = vdwg.mxu0
  %1170 = vrot.lane.b32.xlu0 %v264, 112
  %v1171 = vpop.permute.xlu0 %1170
  %1172 = vrot.lane.b32.xlu0 %v264, 80
  %v1173 = vpop.permute.xlu0 %1172
  %v1174 = vsel %vm270, %v1171, 0
  %v1176 = vsel %vm270, %v1173, 0
  %1178 = vmatprep.subr.mxu0 0.0
  %1179 = vmatpush1.xpose.msra.mxu0 %v1176
  %1180 = vmatprep.subr.mxu0 0.0
  %1181 = vmatpush1.xpose.msra.mxu0 0.0
  %1182 = vmatprep.subr.mxu0 0.0
  %1183 = vmatpush1.xpose.msra.mxu0 0.0
  %1184 = vmatprep.subr.mxu0 0.0
  %1185 = vmatpush1.xpose.msra.mxu0 0.0
  %1186 = vmatprep.subr.mxu0 0.0
  %1187 = vmatpush1.xpose.msra.mxu0 0.0
  %1188 = vmatprep.subr.mxu0 0.0
  %1189 = vmatpush1.xpose.msra.mxu0 0.0
  %1190 = vmatprep.subr.mxu0 0.0
  %1191 = vmatpush1.xpose.msra.mxu0 0.0
  %1192 = vmatprep.subr.mxu0 0.0
  %1193 = vmatpush1.xpose.msra.mxu0 0.0
  %1194 = vmatprep.subr.mxu0 0.0
  %1195 = vmatpush1.xpose.msra.mxu0 0.0
  %1196 = vmatprep.subr.mxu0 0.0
  %1197 = vmatpush1.xpose.msra.mxu0 0.0
  %1198 = vmatprep.subr.mxu0 0.0
  %1199 = vmatpush1.xpose.msra.mxu0 0.0
  %1200 = vmatprep.subr.mxu0 0.0
  %1201 = vmatpush1.xpose.msra.mxu0 0.0
  %1202 = vmatprep.subr.mxu0 0.0
  %1203 = vmatpush1.xpose.msra.mxu0 0.0
  %1204 = vmatprep.subr.mxu0 0.0
  %1205 = vmatpush1.xpose.msra.mxu0 0.0
  %1206 = vmatprep.subr.mxu0 0.0
  %1207 = vmatpush1.xpose.msra.mxu0 0.0
  %1208 = vmatprep.subr.mxu0 0.0
  %1209 = vmatpush1.xpose.msra.mxu0 0.0
  %1210 = vmatprep.subr.mxu0 0.0
  %1211 = vmatpush1.xpose.msra.mxu0 0.0
  %1212 = vmatprep.subr.mxu0 0.0
  %1213 = vmatpush1.xpose.msra.mxu0 0.0
  %1214 = vmatprep.subr.mxu0 0.0
  %1215 = vmatpush1.xpose.msra.mxu0 0.0
  %1216 = vmatprep.subr.mxu0 0.0
  %1217 = vmatpush1.xpose.msra.mxu0 0.0
  %1218 = vmatprep.subr.mxu0 0.0
  %1219 = vmatpush1.xpose.msra.mxu0 0.0
  %1220 = vmatprep.subr.mxu0 0.0
  %1221 = vmatpush1.xpose.msra.mxu0 0.0
  %1222 = vmatprep.subr.mxu0 0.0
  %1223 = vmatpush1.xpose.msra.mxu0 0.0
  %1224 = vmatprep.subr.mxu0 0.0
  %1225 = vmatpush1.xpose.msra.mxu0 0.0
  %1226 = vmatprep.subr.mxu0 0.0
  %1227 = vmatpush1.xpose.msra.mxu0 0.0
  %1228 = vmatprep.subr.mxu0 0.0
  %1229 = vmatpush1.xpose.msra.mxu0 0.0
  %1230 = vmatprep.subr.mxu0 0.0
  %1231 = vmatpush1.xpose.msra.mxu0 0.0
  %1232 = vmatprep.subr.mxu0 0.0
  %1233 = vmatpush1.xpose.msra.mxu0 0.0
  %1234 = vmatprep.subr.mxu0 0.0
  %1235 = vmatpush1.xpose.msra.mxu0 0.0
  %1236 = vmatprep.subr.mxu0 0.0
  %1237 = vmatpush1.xpose.msra.mxu0 0.0
  %1238 = vmatprep.subr.mxu0 0.0
  %1239 = vmatpush1.xpose.msra.mxu0 0.0
  %1240 = vmatprep.subr.mxu0 0.0
  %1241 = vmatpush1.xpose.msra.mxu0 0.0
  %1242 = vmatprep.mubr.f32.mxu0 0.0
  %1243 = vmatmul.mubr.f32.gmra.mrb[0].mxu0 %v1174
  %v1244 = vpop.f32.mrb[0].mxu0
  %v1245 = vadd.f32 0.0, %v1244
  %v1246 = vpop.f32.mrb[0].mxu0
  %1247 = vdwg.mxu0
  %v1248 = vmul.f32 %v1167, 0.35355338
  %v1249 = vmul.f32 %v1245, 0.35355338
  %v1250 = vsel %vm270, %v1248, -inf
  %1251 = vmax.xlane.f32.xlu0 %v1250
  %v1252 = vpop.xlane.xlu0 %1251
  %v1253 = vsel %vm270, %v1249, -inf
  %1254 = vmax.xlane.f32.xlu0 %v1253
  %v1255 = vpop.xlane.xlu0 %1254
  %v1256 = vsub.f32 %v1248, %v1252
  %v1257 = vsub.f32 %v1249, %v1255
  %v1258 = vmul.f32 %v1256, 1.442695
  %v1259 = vpow.pop %v1258
  %v1260 = vmul.f32 %v1257, 1.442695
  %v1261 = vpow.pop %v1260
  %v1262 = vsel %vm270, %v1259, 0.0
  %1263 = vadd.xlane.f32.xlu0 %v1262
  %v1264 = vpop.xlane.xlu0 %1263
  %v1265 = vsel %vm270, %v1261, 0.0
  %1266 = vadd.xlane.f32.xlu0 %v1265
  %v1267 = vpop.xlane.xlu0 %1266
  %v1268 = vrcp.pop %v1264
  %v1269 = vrcp.pop %v1267
  %v1270 = vmul.f32 %v1259, %v1268
  %v1271 = vmul.f32 %v1261, %v1269
  %1272 = vrot.lane.b32.xlu0 %v259, 48
  %v1273 = vpop.permute.xlu0 %1272
  %v1276 = vsel %vm270, %v1270, 0
  %1278 = vmatprep.subr.mxu0 0.0
  %1279 = vmatpush1.msra.mxu0 %v1273
  %1280 = vmatprep.subr.mxu0 0.0
  %1281 = vmatpush1.msra.mxu0 0.0
  %1282 = vmatprep.subr.mxu0 0.0
  %1283 = vmatpush1.msra.mxu0 0.0
  %1284 = vmatprep.subr.mxu0 0.0
  %1285 = vmatpush1.msra.mxu0 0.0
  %1286 = vmatprep.subr.mxu0 0.0
  %1287 = vmatpush1.msra.mxu0 0.0
  %1288 = vmatprep.subr.mxu0 0.0
  %1289 = vmatpush1.msra.mxu0 0.0
  %1290 = vmatprep.subr.mxu0 0.0
  %1291 = vmatpush1.msra.mxu0 0.0
  %1292 = vmatprep.subr.mxu0 0.0
  %1293 = vmatpush1.msra.mxu0 0.0
  %1294 = vmatprep.subr.mxu0 0.0
  %1295 = vmatpush1.msra.mxu0 0.0
  %1296 = vmatprep.subr.mxu0 0.0
  %1297 = vmatpush1.msra.mxu0 0.0
  %1298 = vmatprep.subr.mxu0 0.0
  %1299 = vmatpush1.msra.mxu0 0.0
  %1300 = vmatprep.subr.mxu0 0.0
  %1301 = vmatpush1.msra.mxu0 0.0
  %1302 = vmatprep.subr.mxu0 0.0
  %1303 = vmatpush1.msra.mxu0 0.0
  %1304 = vmatprep.subr.mxu0 0.0
  %1305 = vmatpush1.msra.mxu0 0.0
  %1306 = vmatprep.subr.mxu0 0.0
  %1307 = vmatpush1.msra.mxu0 0.0
  %1308 = vmatprep.subr.mxu0 0.0
  %1309 = vmatpush1.msra.mxu0 0.0
  %1310 = vmatprep.subr.mxu0 0.0
  %1311 = vmatpush1.msra.mxu0 0.0
  %1312 = vmatprep.subr.mxu0 0.0
  %1313 = vmatpush1.msra.mxu0 0.0
  %1314 = vmatprep.subr.mxu0 0.0
  %1315 = vmatpush1.msra.mxu0 0.0
  %1316 = vmatprep.subr.mxu0 0.0
  %1317 = vmatpush1.msra.mxu0 0.0
  %1318 = vmatprep.subr.mxu0 0.0
  %1319 = vmatpush1.msra.mxu0 0.0
  %1320 = vmatprep.subr.mxu0 0.0
  %1321 = vmatpush1.msra.mxu0 0.0
  %1322 = vmatprep.subr.mxu0 0.0
  %1323 = vmatpush1.msra.mxu0 0.0
  %1324 = vmatprep.subr.mxu0 0.0
  %1325 = vmatpush1.msra.mxu0 0.0
  %1326 = vmatprep.subr.mxu0 0.0
  %1327 = vmatpush1.msra.mxu0 0.0
  %1328 = vmatprep.subr.mxu0 0.0
  %1329 = vmatpush1.msra.mxu0 0.0
  %1330 = vmatprep.subr.mxu0 0.0
  %1331 = vmatpush1.msra.mxu0 0.0
  %1332 = vmatprep.subr.mxu0 0.0
  %1333 = vmatpush1.msra.mxu0 0.0
  %1334 = vmatprep.subr.mxu0 0.0
  %1335 = vmatpush1.msra.mxu0 0.0
  %1336 = vmatprep.subr.mxu0 0.0
  %1337 = vmatpush1.msra.mxu0 0.0
  %1338 = vmatprep.subr.mxu0 0.0
  %1339 = vmatpush1.msra.mxu0 0.0
  %1340 = vmatprep.subr.mxu0 0.0
  %1341 = vmatpush1.msra.mxu0 0.0
  %1342 = vmatprep.mubr.f32.mxu0 0.0
  %1343 = vmatmul.mubr.f32.gmra.mrb[0].mxu0 %v1276
  %v1344 = vpop.f32.mrb[0].mxu0
  %v1345 = vadd.f32 0.0, %v1344
  %v1346 = vpop.f32.mrb[0].mxu0
  %1347 = vdwg.mxu0
  %1348 = vrot.lane.b32.xlu0 %v264, 48
  %v1349 = vpop.permute.xlu0 %1348
  %v1352 = vsel %vm270, %v1271, 0
  %1354 = vmatprep.subr.mxu0 0.0
  %1355 = vmatpush1.msra.mxu0 %v1349
  %1356 = vmatprep.subr.mxu0 0.0
  %1357 = vmatpush1.msra.mxu0 0.0
  %1358 = vmatprep.subr.mxu0 0.0
  %1359 = vmatpush1.msra.mxu0 0.0
  %1360 = vmatprep.subr.mxu0 0.0
  %1361 = vmatpush1.msra.mxu0 0.0
  %1362 = vmatprep.subr.mxu0 0.0
  %1363 = vmatpush1.msra.mxu0 0.0
  %1364 = vmatprep.subr.mxu0 0.0
  %1365 = vmatpush1.msra.mxu0 0.0
  %1366 = vmatprep.subr.mxu0 0.0
  %1367 = vmatpush1.msra.mxu0 0.0
  %1368 = vmatprep.subr.mxu0 0.0
  %1369 = vmatpush1.msra.mxu0 0.0
  %1370 = vmatprep.subr.mxu0 0.0
  %1371 = vmatpush1.msra.mxu0 0.0
  %1372 = vmatprep.subr.mxu0 0.0
  %1373 = vmatpush1.msra.mxu0 0.0
  %1374 = vmatprep.subr.mxu0 0.0
  %1375 = vmatpush1.msra.mxu0 0.0
  %1376 = vmatprep.subr.mxu0 0.0
  %1377 = vmatpush1.msra.mxu0 0.0
  %1378 = vmatprep.subr.mxu0 0.0
  %1379 = vmatpush1.msra.mxu0 0.0
  %1380 = vmatprep.subr.mxu0 0.0
  %1381 = vmatpush1.msra.mxu0 0.0
  %1382 = vmatprep.subr.mxu0 0.0
  %1383 = vmatpush1.msra.mxu0 0.0
  %1384 = vmatprep.subr.mxu0 0.0
  %1385 = vmatpush1.msra.mxu0 0.0
  %1386 = vmatprep.subr.mxu0 0.0
  %1387 = vmatpush1.msra.mxu0 0.0
  %1388 = vmatprep.subr.mxu0 0.0
  %1389 = vmatpush1.msra.mxu0 0.0
  %1390 = vmatprep.subr.mxu0 0.0
  %1391 = vmatpush1.msra.mxu0 0.0
  %1392 = vmatprep.subr.mxu0 0.0
  %1393 = vmatpush1.msra.mxu0 0.0
  %1394 = vmatprep.subr.mxu0 0.0
  %1395 = vmatpush1.msra.mxu0 0.0
  %1396 = vmatprep.subr.mxu0 0.0
  %1397 = vmatpush1.msra.mxu0 0.0
  %1398 = vmatprep.subr.mxu0 0.0
  %1399 = vmatpush1.msra.mxu0 0.0
  %1400 = vmatprep.subr.mxu0 0.0
  %1401 = vmatpush1.msra.mxu0 0.0
  %1402 = vmatprep.subr.mxu0 0.0
  %1403 = vmatpush1.msra.mxu0 0.0
  %1404 = vmatprep.subr.mxu0 0.0
  %1405 = vmatpush1.msra.mxu0 0.0
  %1406 = vmatprep.subr.mxu0 0.0
  %1407 = vmatpush1.msra.mxu0 0.0
  %1408 = vmatprep.subr.mxu0 0.0
  %1409 = vmatpush1.msra.mxu0 0.0
  %1410 = vmatprep.subr.mxu0 0.0
  %1411 = vmatpush1.msra.mxu0 0.0
  %1412 = vmatprep.subr.mxu0 0.0
  %1413 = vmatpush1.msra.mxu0 0.0
  %1414 = vmatprep.subr.mxu0 0.0
  %1415 = vmatpush1.msra.mxu0 0.0
  %1416 = vmatprep.subr.mxu0 0.0
  %1417 = vmatpush1.msra.mxu0 0.0
  %1418 = vmatprep.mubr.f32.mxu0 0.0
  %1419 = vmatmul.mubr.f32.gmra.mrb[0].mxu0 %v1352
  %v1420 = vpop.f32.mrb[0].mxu0
  %v1421 = vadd.f32 0.0, %v1420
  %v1422 = vpop.f32.mrb[0].mxu0
  %1423 = vdwg.mxu0
  %v1425 = vsel %vm270, %v1345, 0
  %v1428 = vsel %vm270, %v1421, 0
  %1430 = vmatprep.subr.mxu0 0.0
  %1431 = vmatpush1.msra.mxu0 %v176
  %1432 = vmatprep.subr.mxu0 0.0
  %1433 = vmatpush1.msra.mxu0 0.0
  %1434 = vmatprep.subr.mxu0 0.0
  %1435 = vmatpush1.msra.mxu0 0.0
  %1436 = vmatprep.subr.mxu0 0.0
  %1437 = vmatpush1.msra.mxu0 0.0
  %1438 = vmatprep.subr.mxu0 0.0
  %1439 = vmatpush1.msra.mxu0 0.0
  %1440 = vmatprep.subr.mxu0 0.0
  %1441 = vmatpush1.msra.mxu0 0.0
  %1442 = vmatprep.subr.mxu0 0.0
  %1443 = vmatpush1.msra.mxu0 0.0
  %1444 = vmatprep.subr.mxu0 0.0
  %1445 = vmatpush1.msra.mxu0 0.0
  %1446 = vmatprep.subr.mxu0 0.0
  %1447 = vmatpush1.msra.mxu0 0.0
  %1448 = vmatprep.subr.mxu0 0.0
  %1449 = vmatpush1.msra.mxu0 0.0
  %1450 = vmatprep.subr.mxu0 0.0
  %1451 = vmatpush1.msra.mxu0 0.0
  %1452 = vmatprep.subr.mxu0 0.0
  %1453 = vmatpush1.msra.mxu0 0.0
  %1454 = vmatprep.subr.mxu0 0.0
  %1455 = vmatpush1.msra.mxu0 0.0
  %1456 = vmatprep.subr.mxu0 0.0
  %1457 = vmatpush1.msra.mxu0 0.0
  %1458 = vmatprep.subr.mxu0 0.0
  %1459 = vmatpush1.msra.mxu0 0.0
  %1460 = vmatprep.subr.mxu0 0.0
  %1461 = vmatpush1.msra.mxu0 0.0
  %1462 = vmatprep.subr.mxu0 0.0
  %1463 = vmatpush1.msra.mxu0 0.0
  %1464 = vmatprep.subr.mxu0 0.0
  %1465 = vmatpush1.msra.mxu0 0.0
  %1466 = vmatprep.subr.mxu0 0.0
  %1467 = vmatpush1.msra.mxu0 0.0
  %1468 = vmatprep.subr.mxu0 0.0
  %1469 = vmatpush1.msra.mxu0 0.0
  %1470 = vmatprep.subr.mxu0 0.0
  %1471 = vmatpush1.msra.mxu0 0.0
  %1472 = vmatprep.subr.mxu0 0.0
  %1473 = vmatpush1.msra.mxu0 0.0
  %1474 = vmatprep.subr.mxu0 0.0
  %1475 = vmatpush1.msra.mxu0 0.0
  %1476 = vmatprep.subr.mxu0 0.0
  %1477 = vmatpush1.msra.mxu0 0.0
  %1478 = vmatprep.subr.mxu0 0.0
  %1479 = vmatpush1.msra.mxu0 0.0
  %1480 = vmatprep.subr.mxu0 0.0
  %1481 = vmatpush1.msra.mxu0 0.0
  %1482 = vmatprep.subr.mxu0 0.0
  %1483 = vmatpush1.msra.mxu0 0.0
  %1484 = vmatprep.subr.mxu0 0.0
  %1485 = vmatpush1.msra.mxu0 0.0
  %1486 = vmatprep.subr.mxu0 0.0
  %1487 = vmatpush1.msra.mxu0 0.0
  %1488 = vmatprep.subr.mxu0 0.0
  %1489 = vmatpush1.msra.mxu0 0.0
  %1490 = vmatprep.subr.mxu0 0.0
  %1491 = vmatpush1.msra.mxu0 0.0
  %1492 = vmatprep.subr.mxu0 0.0
  %1493 = vmatpush1.msra.mxu0 0.0
  %1494 = vmatprep.mubr.f32.mxu0 0.0
  %1495 = vmatmul.mubr.f32.gmra.mrb[0].mxu0 %v1425
  %v1496 = vpop.f32.mrb[0].mxu0
  %v1497 = vadd.f32 0.0, %v1496
  %v1498 = vpop.f32.mrb[0].mxu0
  %1499 = vmatprep.mubr.f32.mxu0 0.0
  %1500 = vmatmul.mubr.f32.gmra.mrb[0].mxu0 %v1428
  %v1501 = vpop.f32.mrb[0].mxu0
  %v1502 = vadd.f32 0.0, %v1501
  %v1503 = vpop.f32.mrb[0].mxu0
  %1504 = vdwg.mxu0
  %v1505 = vadd.f32 %v1084, %v1497
  %v1506 = vadd.f32 %v1089, %v1502
  %1507 = vrot.lane.b32.xlu0 %v259, 104
  %v1508 = vpop.permute.xlu0 %1507
  %1509 = vrot.lane.b32.xlu0 %v259, 72
  %v1510 = vpop.permute.xlu0 %1509
  %v1511 = vsel %vm270, %v1508, 0
  %v1513 = vsel %vm270, %v1510, 0
  %1515 = vmatprep.subr.mxu0 0.0
  %1516 = vmatpush1.xpose.msra.mxu0 %v1513
  %1517 = vmatprep.subr.mxu0 0.0
  %1518 = vmatpush1.xpose.msra.mxu0 0.0
  %1519 = vmatprep.subr.mxu0 0.0
  %1520 = vmatpush1.xpose.msra.mxu0 0.0
  %1521 = vmatprep.subr.mxu0 0.0
  %1522 = vmatpush1.xpose.msra.mxu0 0.0
  %1523 = vmatprep.subr.mxu0 0.0
  %1524 = vmatpush1.xpose.msra.mxu0 0.0
  %1525 = vmatprep.subr.mxu0 0.0
  %1526 = vmatpush1.xpose.msra.mxu0 0.0
  %1527 = vmatprep.subr.mxu0 0.0
  %1528 = vmatpush1.xpose.msra.mxu0 0.0
  %1529 = vmatprep.subr.mxu0 0.0
  %1530 = vmatpush1.xpose.msra.mxu0 0.0
  %1531 = vmatprep.subr.mxu0 0.0
  %1532 = vmatpush1.xpose.msra.mxu0 0.0
  %1533 = vmatprep.subr.mxu0 0.0
  %1534 = vmatpush1.xpose.msra.mxu0 0.0
  %1535 = vmatprep.subr.mxu0 0.0
  %1536 = vmatpush1.xpose.msra.mxu0 0.0
  %1537 = vmatprep.subr.mxu0 0.0
  %1538 = vmatpush1.xpose.msra.mxu0 0.0
  %1539 = vmatprep.subr.mxu0 0.0
  %1540 = vmatpush1.xpose.msra.mxu0 0.0
  %1541 = vmatprep.subr.mxu0 0.0
  %1542 = vmatpush1.xpose.msra.mxu0 0.0
  %1543 = vmatprep.subr.mxu0 0.0
  %1544 = vmatpush1.xpose.msra.mxu0 0.0
  %1545 = vmatprep.subr.mxu0 0.0
  %1546 = vmatpush1.xpose.msra.mxu0 0.0
  %1547 = vmatprep.subr.mxu0 0.0
  %1548 = vmatpush1.xpose.msra.mxu0 0.0
  %1549 = vmatprep.subr.mxu0 0.0
  %1550 = vmatpush1.xpose.msra.mxu0 0.0
  %1551 = vmatprep.subr.mxu0 0.0
  %1552 = vmatpush1.xpose.msra.mxu0 0.0
  %1553 = vmatprep.subr.mxu0 0.0
  %1554 = vmatpush1.xpose.msra.mxu0 0.0
  %1555 = vmatprep.subr.mxu0 0.0
  %1556 = vmatpush1.xpose.msra.mxu0 0.0
  %1557 = vmatprep.subr.mxu0 0.0
  %1558 = vmatpush1.xpose.msra.mxu0 0.0
  %1559 = vmatprep.subr.mxu0 0.0
  %1560 = vmatpush1.xpose.msra.mxu0 0.0
  %1561 = vmatprep.subr.mxu0 0.0
  %1562 = vmatpush1.xpose.msra.mxu0 0.0
  %1563 = vmatprep.subr.mxu0 0.0
  %1564 = vmatpush1.xpose.msra.mxu0 0.0
  %1565 = vmatprep.subr.mxu0 0.0
  %1566 = vmatpush1.xpose.msra.mxu0 0.0
  %1567 = vmatprep.subr.mxu0 0.0
  %1568 = vmatpush1.xpose.msra.mxu0 0.0
  %1569 = vmatprep.subr.mxu0 0.0
  %1570 = vmatpush1.xpose.msra.mxu0 0.0
  %1571 = vmatprep.subr.mxu0 0.0
  %1572 = vmatpush1.xpose.msra.mxu0 0.0
  %1573 = vmatprep.subr.mxu0 0.0
  %1574 = vmatpush1.xpose.msra.mxu0 0.0
  %1575 = vmatprep.subr.mxu0 0.0
  %1576 = vmatpush1.xpose.msra.mxu0 0.0
  %1577 = vmatprep.subr.mxu0 0.0
  %1578 = vmatpush1.xpose.msra.mxu0 0.0
  %1579 = vmatprep.mubr.f32.mxu0 0.0
  %1580 = vmatmul.mubr.f32.gmra.mrb[0].mxu0 %v1511
  %v1581 = vpop.f32.mrb[0].mxu0
  %v1582 = vadd.f32 0.0, %v1581
  %v1583 = vpop.f32.mrb[0].mxu0
  %1584 = vdwg.mxu0
  %1585 = vrot.lane.b32.xlu0 %v264, 104
  %v1586 = vpop.permute.xlu0 %1585
  %1587 = vrot.lane.b32.xlu0 %v264, 72
  %v1588 = vpop.permute.xlu0 %1587
  %v1589 = vsel %vm270, %v1586, 0
  %v1591 = vsel %vm270, %v1588, 0
  %1593 = vmatprep.subr.mxu0 0.0
  %1594 = vmatpush1.xpose.msra.mxu0 %v1591
  %1595 = vmatprep.subr.mxu0 0.0
  %1596 = vmatpush1.xpose.msra.mxu0 0.0
  %1597 = vmatprep.subr.mxu0 0.0
  %1598 = vmatpush1.xpose.msra.mxu0 0.0
  %1599 = vmatprep.subr.mxu0 0.0
  %1600 = vmatpush1.xpose.msra.mxu0 0.0
  %1601 = vmatprep.subr.mxu0 0.0
  %1602 = vmatpush1.xpose.msra.mxu0 0.0
  %1603 = vmatprep.subr.mxu0 0.0
  %1604 = vmatpush1.xpose.msra.mxu0 0.0
  %1605 = vmatprep.subr.mxu0 0.0
  %1606 = vmatpush1.xpose.msra.mxu0 0.0
  %1607 = vmatprep.subr.mxu0 0.0
  %1608 = vmatpush1.xpose.msra.mxu0 0.0
  %1609 = vmatprep.subr.mxu0 0.0
  %1610 = vmatpush1.xpose.msra.mxu0 0.0
  %1611 = vmatprep.subr.mxu0 0.0
  %1612 = vmatpush1.xpose.msra.mxu0 0.0
  %1613 = vmatprep.subr.mxu0 0.0
  %1614 = vmatpush1.xpose.msra.mxu0 0.0
  %1615 = vmatprep.subr.mxu0 0.0
  %1616 = vmatpush1.xpose.msra.mxu0 0.0
  %1617 = vmatprep.subr.mxu0 0.0
  %1618 = vmatpush1.xpose.msra.mxu0 0.0
  %1619 = vmatprep.subr.mxu0 0.0
  %1620 = vmatpush1.xpose.msra.mxu0 0.0
  %1621 = vmatprep.subr.mxu0 0.0
  %1622 = vmatpush1.xpose.msra.mxu0 0.0
  %1623 = vmatprep.subr.mxu0 0.0
  %1624 = vmatpush1.xpose.msra.mxu0 0.0
  %1625 = vmatprep.subr.mxu0 0.0
  %1626 = vmatpush1.xpose.msra.mxu0 0.0
  %1627 = vmatprep.subr.mxu0 0.0
  %1628 = vmatpush1.xpose.msra.mxu0 0.0
  %1629 = vmatprep.subr.mxu0 0.0
  %1630 = vmatpush1.xpose.msra.mxu0 0.0
  %1631 = vmatprep.subr.mxu0 0.0
  %1632 = vmatpush1.xpose.msra.mxu0 0.0
  %1633 = vmatprep.subr.mxu0 0.0
  %1634 = vmatpush1.xpose.msra.mxu0 0.0
  %1635 = vmatprep.subr.mxu0 0.0
  %1636 = vmatpush1.xpose.msra.mxu0 0.0
  %1637 = vmatprep.subr.mxu0 0.0
  %1638 = vmatpush1.xpose.msra.mxu0 0.0
  %1639 = vmatprep.subr.mxu0 0.0
  %1640 = vmatpush1.xpose.msra.mxu0 0.0
  %1641 = vmatprep.subr.mxu0 0.0
  %1642 = vmatpush1.xpose.msra.mxu0 0.0
  %1643 = vmatprep.subr.mxu0 0.0
  %1644 = vmatpush1.xpose.msra.mxu0 0.0
  %1645 = vmatprep.subr.mxu0 0.0
  %1646 = vmatpush1.xpose.msra.mxu0 0.0
  %1647 = vmatprep.subr.mxu0 0.0
  %1648 = vmatpush1.xpose.msra.mxu0 0.0
  %1649 = vmatprep.subr.mxu0 0.0
  %1650 = vmatpush1.xpose.msra.mxu0 0.0
  %1651 = vmatprep.subr.mxu0 0.0
  %1652 = vmatpush1.xpose.msra.mxu0 0.0
  %1653 = vmatprep.subr.mxu0 0.0
  %1654 = vmatpush1.xpose.msra.mxu0 0.0
  %1655 = vmatprep.subr.mxu0 0.0
  %1656 = vmatpush1.xpose.msra.mxu0 0.0
  %1657 = vmatprep.mubr.f32.mxu0 0.0
  %1658 = vmatmul.mubr.f32.gmra.mrb[0].mxu0 %v1589
  %v1659 = vpop.f32.mrb[0].mxu0
  %v1660 = vadd.f32 0.0, %v1659
  %v1661 = vpop.f32.mrb[0].mxu0
  %1662 = vdwg.mxu0
  %v1663 = vmul.f32 %v1582, 0.35355338
  %v1664 = vmul.f32 %v1660, 0.35355338
  %v1665 = vsel %vm270, %v1663, -inf
  %1666 = vmax.xlane.f32.xlu0 %v1665
  %v1667 = vpop.xlane.xlu0 %1666
  %v1668 = vsel %vm270, %v1664, -inf
  %1669 = vmax.xlane.f32.xlu0 %v1668
  %v1670 = vpop.xlane.xlu0 %1669
  %v1671 = vsub.f32 %v1663, %v1667
  %v1672 = vsub.f32 %v1664, %v1670
  %v1673 = vmul.f32 %v1671, 1.442695
  %v1674 = vpow.pop %v1673
  %v1675 = vmul.f32 %v1672, 1.442695
  %v1676 = vpow.pop %v1675
  %v1677 = vsel %vm270, %v1674, 0.0
  %1678 = vadd.xlane.f32.xlu0 %v1677
  %v1679 = vpop.xlane.xlu0 %1678
  %v1680 = vsel %vm270, %v1676, 0.0
  %1681 = vadd.xlane.f32.xlu0 %v1680
  %v1682 = vpop.xlane.xlu0 %1681
  %v1683 = vrcp.pop %v1679
  %v1684 = vrcp.pop %v1682
  %v1685 = vmul.f32 %v1674, %v1683
  %v1686 = vmul.f32 %v1676, %v1684
  %1687 = vrot.lane.b32.xlu0 %v259, 40
  %v1688 = vpop.permute.xlu0 %1687
  %v1691 = vsel %vm270, %v1685, 0
  %1693 = vmatprep.subr.mxu0 0.0
  %1694 = vmatpush1.msra.mxu0 %v1688
  %1695 = vmatprep.subr.mxu0 0.0
  %1696 = vmatpush1.msra.mxu0 0.0
  %1697 = vmatprep.subr.mxu0 0.0
  %1698 = vmatpush1.msra.mxu0 0.0
  %1699 = vmatprep.subr.mxu0 0.0
  %1700 = vmatpush1.msra.mxu0 0.0
  %1701 = vmatprep.subr.mxu0 0.0
  %1702 = vmatpush1.msra.mxu0 0.0
  %1703 = vmatprep.subr.mxu0 0.0
  %1704 = vmatpush1.msra.mxu0 0.0
  %1705 = vmatprep.subr.mxu0 0.0
  %1706 = vmatpush1.msra.mxu0 0.0
  %1707 = vmatprep.subr.mxu0 0.0
  %1708 = vmatpush1.msra.mxu0 0.0
  %1709 = vmatprep.subr.mxu0 0.0
  %1710 = vmatpush1.msra.mxu0 0.0
  %1711 = vmatprep.subr.mxu0 0.0
  %1712 = vmatpush1.msra.mxu0 0.0
  %1713 = vmatprep.subr.mxu0 0.0
  %1714 = vmatpush1.msra.mxu0 0.0
  %1715 = vmatprep.subr.mxu0 0.0
  %1716 = vmatpush1.msra.mxu0 0.0
  %1717 = vmatprep.subr.mxu0 0.0
  %1718 = vmatpush1.msra.mxu0 0.0
  %1719 = vmatprep.subr.mxu0 0.0
  %1720 = vmatpush1.msra.mxu0 0.0
  %1721 = vmatprep.subr.mxu0 0.0
  %1722 = vmatpush1.msra.mxu0 0.0
  %1723 = vmatprep.subr.mxu0 0.0
  %1724 = vmatpush1.msra.mxu0 0.0
  %1725 = vmatprep.subr.mxu0 0.0
  %1726 = vmatpush1.msra.mxu0 0.0
  %1727 = vmatprep.subr.mxu0 0.0
  %1728 = vmatpush1.msra.mxu0 0.0
  %1729 = vmatprep.subr.mxu0 0.0
  %1730 = vmatpush1.msra.mxu0 0.0
  %1731 = vmatprep.subr.mxu0 0.0
  %1732 = vmatpush1.msra.mxu0 0.0
  %1733 = vmatprep.subr.mxu0 0.0
  %1734 = vmatpush1.msra.mxu0 0.0
  %1735 = vmatprep.subr.mxu0 0.0
  %1736 = vmatpush1.msra.mxu0 0.0
  %1737 = vmatprep.subr.mxu0 0.0
  %1738 = vmatpush1.msra.mxu0 0.0
  %1739 = vmatprep.subr.mxu0 0.0
  %1740 = vmatpush1.msra.mxu0 0.0
  %1741 = vmatprep.subr.mxu0 0.0
  %1742 = vmatpush1.msra.mxu0 0.0
  %1743 = vmatprep.subr.mxu0 0.0
  %1744 = vmatpush1.msra.mxu0 0.0
  %1745 = vmatprep.subr.mxu0 0.0
  %1746 = vmatpush1.msra.mxu0 0.0
  %1747 = vmatprep.subr.mxu0 0.0
  %1748 = vmatpush1.msra.mxu0 0.0
  %1749 = vmatprep.subr.mxu0 0.0
  %1750 = vmatpush1.msra.mxu0 0.0
  %1751 = vmatprep.subr.mxu0 0.0
  %1752 = vmatpush1.msra.mxu0 0.0
  %1753 = vmatprep.subr.mxu0 0.0
  %1754 = vmatpush1.msra.mxu0 0.0
  %1755 = vmatprep.subr.mxu0 0.0
  %1756 = vmatpush1.msra.mxu0 0.0
  %1757 = vmatprep.mubr.f32.mxu0 0.0
  %1758 = vmatmul.mubr.f32.gmra.mrb[0].mxu0 %v1691
  %v1759 = vpop.f32.mrb[0].mxu0
  %v1760 = vadd.f32 0.0, %v1759
  %v1761 = vpop.f32.mrb[0].mxu0
  %1762 = vdwg.mxu0
  %1763 = vrot.lane.b32.xlu0 %v264, 40
  %v1764 = vpop.permute.xlu0 %1763
  %v1767 = vsel %vm270, %v1686, 0
  %1769 = vmatprep.subr.mxu0 0.0
  %1770 = vmatpush1.msra.mxu0 %v1764
  %1771 = vmatprep.subr.mxu0 0.0
  %1772 = vmatpush1.msra.mxu0 0.0
  %1773 = vmatprep.subr.mxu0 0.0
  %1774 = vmatpush1.msra.mxu0 0.0
  %1775 = vmatprep.subr.mxu0 0.0
  %1776 = vmatpush1.msra.mxu0 0.0
  %1777 = vmatprep.subr.mxu0 0.0
  %1778 = vmatpush1.msra.mxu0 0.0
  %1779 = vmatprep.subr.mxu0 0.0
  %1780 = vmatpush1.msra.mxu0 0.0
  %1781 = vmatprep.subr.mxu0 0.0
  %1782 = vmatpush1.msra.mxu0 0.0
  %1783 = vmatprep.subr.mxu0 0.0
  %1784 = vmatpush1.msra.mxu0 0.0
  %1785 = vmatprep.subr.mxu0 0.0
  %1786 = vmatpush1.msra.mxu0 0.0
  %1787 = vmatprep.subr.mxu0 0.0
  %1788 = vmatpush1.msra.mxu0 0.0
  %1789 = vmatprep.subr.mxu0 0.0
  %1790 = vmatpush1.msra.mxu0 0.0
  %1791 = vmatprep.subr.mxu0 0.0
  %1792 = vmatpush1.msra.mxu0 0.0
  %1793 = vmatprep.subr.mxu0 0.0
  %1794 = vmatpush1.msra.mxu0 0.0
  %1795 = vmatprep.subr.mxu0 0.0
  %1796 = vmatpush1.msra.mxu0 0.0
  %1797 = vmatprep.subr.mxu0 0.0
  %1798 = vmatpush1.msra.mxu0 0.0
  %1799 = vmatprep.subr.mxu0 0.0
  %1800 = vmatpush1.msra.mxu0 0.0
  %1801 = vmatprep.subr.mxu0 0.0
  %1802 = vmatpush1.msra.mxu0 0.0
  %1803 = vmatprep.subr.mxu0 0.0
  %1804 = vmatpush1.msra.mxu0 0.0
  %1805 = vmatprep.subr.mxu0 0.0
  %1806 = vmatpush1.msra.mxu0 0.0
  %1807 = vmatprep.subr.mxu0 0.0
  %1808 = vmatpush1.msra.mxu0 0.0
  %1809 = vmatprep.subr.mxu0 0.0
  %1810 = vmatpush1.msra.mxu0 0.0
  %1811 = vmatprep.subr.mxu0 0.0
  %1812 = vmatpush1.msra.mxu0 0.0
  %1813 = vmatprep.subr.mxu0 0.0
  %1814 = vmatpush1.msra.mxu0 0.0
  %1815 = vmatprep.subr.mxu0 0.0
  %1816 = vmatpush1.msra.mxu0 0.0
  %1817 = vmatprep.subr.mxu0 0.0
  %1818 = vmatpush1.msra.mxu0 0.0
  %1819 = vmatprep.subr.mxu0 0.0
  %1820 = vmatpush1.msra.mxu0 0.0
  %1821 = vmatprep.subr.mxu0 0.0
  %1822 = vmatpush1.msra.mxu0 0.0
  %1823 = vmatprep.subr.mxu0 0.0
  %1824 = vmatpush1.msra.mxu0 0.0
  %1825 = vmatprep.subr.mxu0 0.0
  %1826 = vmatpush1.msra.mxu0 0.0
  %1827 = vmatprep.subr.mxu0 0.0
  %1828 = vmatpush1.msra.mxu0 0.0
  %1829 = vmatprep.subr.mxu0 0.0
  %1830 = vmatpush1.msra.mxu0 0.0
  %1831 = vmatprep.subr.mxu0 0.0
  %1832 = vmatpush1.msra.mxu0 0.0
  %1833 = vmatprep.mubr.f32.mxu0 0.0
  %1834 = vmatmul.mubr.f32.gmra.mrb[0].mxu0 %v1767
  %v1835 = vpop.f32.mrb[0].mxu0
  %v1836 = vadd.f32 0.0, %v1835
  %v1837 = vpop.f32.mrb[0].mxu0
  %1838 = vdwg.mxu0
  %v1840 = vsel %vm270, %v1760, 0
  %v1843 = vsel %vm270, %v1836, 0
  %1845 = vmatprep.subr.mxu0 0.0
  %1846 = vmatpush1.msra.mxu0 %v177
  %1847 = vmatprep.subr.mxu0 0.0
  %1848 = vmatpush1.msra.mxu0 0.0
  %1849 = vmatprep.subr.mxu0 0.0
  %1850 = vmatpush1.msra.mxu0 0.0
  %1851 = vmatprep.subr.mxu0 0.0
  %1852 = vmatpush1.msra.mxu0 0.0
  %1853 = vmatprep.subr.mxu0 0.0
  %1854 = vmatpush1.msra.mxu0 0.0
  %1855 = vmatprep.subr.mxu0 0.0
  %1856 = vmatpush1.msra.mxu0 0.0
  %1857 = vmatprep.subr.mxu0 0.0
  %1858 = vmatpush1.msra.mxu0 0.0
  %1859 = vmatprep.subr.mxu0 0.0
  %1860 = vmatpush1.msra.mxu0 0.0
  %1861 = vmatprep.subr.mxu0 0.0
  %1862 = vmatpush1.msra.mxu0 0.0
  %1863 = vmatprep.subr.mxu0 0.0
  %1864 = vmatpush1.msra.mxu0 0.0
  %1865 = vmatprep.subr.mxu0 0.0
  %1866 = vmatpush1.msra.mxu0 0.0
  %1867 = vmatprep.subr.mxu0 0.0
  %1868 = vmatpush1.msra.mxu0 0.0
  %1869 = vmatprep.subr.mxu0 0.0
  %1870 = vmatpush1.msra.mxu0 0.0
  %1871 = vmatprep.subr.mxu0 0.0
  %1872 = vmatpush1.msra.mxu0 0.0
  %1873 = vmatprep.subr.mxu0 0.0
  %1874 = vmatpush1.msra.mxu0 0.0
  %1875 = vmatprep.subr.mxu0 0.0
  %1876 = vmatpush1.msra.mxu0 0.0
  %1877 = vmatprep.subr.mxu0 0.0
  %1878 = vmatpush1.msra.mxu0 0.0
  %1879 = vmatprep.subr.mxu0 0.0
  %1880 = vmatpush1.msra.mxu0 0.0
  %1881 = vmatprep.subr.mxu0 0.0
  %1882 = vmatpush1.msra.mxu0 0.0
  %1883 = vmatprep.subr.mxu0 0.0
  %1884 = vmatpush1.msra.mxu0 0.0
  %1885 = vmatprep.subr.mxu0 0.0
  %1886 = vmatpush1.msra.mxu0 0.0
  %1887 = vmatprep.subr.mxu0 0.0
  %1888 = vmatpush1.msra.mxu0 0.0
  %1889 = vmatprep.subr.mxu0 0.0
  %1890 = vmatpush1.msra.mxu0 0.0
  %1891 = vmatprep.subr.mxu0 0.0
  %1892 = vmatpush1.msra.mxu0 0.0
  %1893 = vmatprep.subr.mxu0 0.0
  %1894 = vmatpush1.msra.mxu0 0.0
  %1895 = vmatprep.subr.mxu0 0.0
  %1896 = vmatpush1.msra.mxu0 0.0
  %1897 = vmatprep.subr.mxu0 0.0
  %1898 = vmatpush1.msra.mxu0 0.0
  %1899 = vmatprep.subr.mxu0 0.0
  %1900 = vmatpush1.msra.mxu0 0.0
  %1901 = vmatprep.subr.mxu0 0.0
  %1902 = vmatpush1.msra.mxu0 0.0
  %1903 = vmatprep.subr.mxu0 0.0
  %1904 = vmatpush1.msra.mxu0 0.0
  %1905 = vmatprep.subr.mxu0 0.0
  %1906 = vmatpush1.msra.mxu0 0.0
  %1907 = vmatprep.subr.mxu0 0.0
  %1908 = vmatpush1.msra.mxu0 0.0
  %1909 = vmatprep.mubr.f32.mxu0 0.0
  %1910 = vmatmul.mubr.f32.gmra.mrb[0].mxu0 %v1840
  %v1911 = vpop.f32.mrb[0].mxu0
  %v1912 = vadd.f32 0.0, %v1911
  %v1913 = vpop.f32.mrb[0].mxu0
  %1914 = vmatprep.mubr.f32.mxu0 0.0
  %1915 = vmatmul.mubr.f32.gmra.mrb[0].mxu0 %v1843
  %v1916 = vpop.f32.mrb[0].mxu0
  %v1917 = vadd.f32 0.0, %v1916
  %v1918 = vpop.f32.mrb[0].mxu0
  %1919 = vdwg.mxu0
  %v1920 = vadd.f32 %v1505, %v1912
  %v1921 = vadd.f32 %v1506, %v1917
  %v1923 = vlaneseq
  %v1924 = vshrl.u32 %v1923, 7
  %v1925 = vsub.s32 0, %v1924
  %v1926 = vrot.slane %v178, %v1925
  %v1928 = vadd.f32 %v1920, %v1926
  %v1929 = vadd.f32 %v1921, %v1926
  %v1930 = vadd.f32 %v1928, %v161
  %v1931 = vadd.f32 %v1929, %v166
  %v1932 = vld [vmem:[%s7] sm:$0x1]
  %v1933 = vld [vmem:[%s8] sm:$0x1]
  %v1934 = vsel %vm185, %v1930, 0.0
  %1935 = vadd.xlane.f32.xlu0 %v1934
  %v1936 = vpop.xlane.xlu0 %1935
  %v1937 = vsel %vm185, %v1931, 0.0
  %1938 = vadd.xlane.f32.xlu0 %v1937
  %v1939 = vpop.xlane.xlu0 %1938
  %v1940 = vrcp.pop 32.0
  %v1941 = vmul.f32 %v1936, %v1940
  %v1942 = vmul.f32 %v1939, %v1940
  %v1943 = vsub.f32 %v1930, %v1941
  %v1944 = vsub.f32 %v1931, %v1942
  %v1945 = vmul.f32 %v1943, %v1943
  %v1946 = vmul.f32 %v1944, %v1944
  %v1947 = vsel %vm185, %v1945, 0.0
  %1948 = vadd.xlane.f32.xlu0 %v1947
  %v1949 = vpop.xlane.xlu0 %1948
  %v1950 = vsel %vm185, %v1946, 0.0
  %1951 = vadd.xlane.f32.xlu0 %v1950
  %v1952 = vpop.xlane.xlu0 %1951
  %v1953 = vmul.f32 %v1949, %v1940
  %v1954 = vmul.f32 %v1952, %v1940
  %v1955 = vadd.f32 %v1953, 1e-05
  %v1956 = vadd.f32 %v1954, 1e-05
  %v1957 = vrsqrt.pop %v1955
  %v1958 = vrsqrt.pop %v1956
  %v1959 = vmul.f32 %v1943, %v1957
  %v1960 = vmul.f32 %v1944, %v1958
  %v1962 = vlaneseq
  %v1963 = vshrl.u32 %v1962, 7
  %v1964 = vsub.s32 0, %v1963
  %v1965 = vrot.slane %v1932, %v1964
  %v1967 = vmul.f32 %v1959, %v1965
  %v1968 = vmul.f32 %v1960, %v1965
  %v1970 = vlaneseq
  %v1971 = vshrl.u32 %v1970, 7
  %v1972 = vsub.s32 0, %v1971
  %v1973 = vrot.slane %v1933, %v1972
  %v1975 = vadd.f32 %v1967, %v1973
  %v1976 = vadd.f32 %v1968, %v1973
  %v1977 = vld [vmem:[%s9] sm:$0xff]
  %v1978 = vld [vmem:[%s9 + $0x8] sm:$0xff]
  %v1979 = vld [vmem:[%s9 + $0x10] sm:$0xff]
  %v1980 = vld [vmem:[%s9 + $0x18] sm:$0xff]
  %v1981 = vld [vmem:[%s10] sm:$0x1]
  %v1983 = vlaneseq
  %v1984 = vshrl.u32 %v1983, 7
  %v1985 = vsub.s32 0, %v1984
  %v1986 = vrot.slane %v1981, %v1985
  %v1989 = vsel %vm185, %v1975, 0
  %v1992 = vsel %vm185, %v1976, 0
  %1994 = vmatprep.subr.mxu0 0.0
  %1995 = vmatpush1.msra.mxu0 %v1977
  %1996 = vmatprep.subr.mxu0 0.0
  %1997 = vmatpush1.msra.mxu0 %v1978
  %1998 = vmatprep.subr.mxu0 0.0
  %1999 = vmatpush1.msra.mxu0 %v1979
  %2000 = vmatprep.subr.mxu0 0.0
  %2001 = vmatpush1.msra.mxu0 %v1980
  %2002 = vmatprep.subr.mxu0 0.0
  %2003 = vmatpush1.msra.mxu0 0.0
  %2004 = vmatprep.subr.mxu0 0.0
  %2005 = vmatpush1.msra.mxu0 0.0
  %2006 = vmatprep.subr.mxu0 0.0
  %2007 = vmatpush1.msra.mxu0 0.0
  %2008 = vmatprep.subr.mxu0 0.0
  %2009 = vmatpush1.msra.mxu0 0.0
  %2010 = vmatprep.subr.mxu0 0.0
  %2011 = vmatpush1.msra.mxu0 0.0
  %2012 = vmatprep.subr.mxu0 0.0
  %2013 = vmatpush1.msra.mxu0 0.0
  %2014 = vmatprep.subr.mxu0 0.0
  %2015 = vmatpush1.msra.mxu0 0.0
  %2016 = vmatprep.subr.mxu0 0.0
  %2017 = vmatpush1.msra.mxu0 0.0
  %2018 = vmatprep.subr.mxu0 0.0
  %2019 = vmatpush1.msra.mxu0 0.0
  %2020 = vmatprep.subr.mxu0 0.0
  %2021 = vmatpush1.msra.mxu0 0.0
  %2022 = vmatprep.subr.mxu0 0.0
  %2023 = vmatpush1.msra.mxu0 0.0
  %2024 = vmatprep.subr.mxu0 0.0
  %2025 = vmatpush1.msra.mxu0 0.0
  %2026 = vmatprep.subr.mxu0 0.0
  %2027 = vmatpush1.msra.mxu0 0.0
  %2028 = vmatprep.subr.mxu0 0.0
  %2029 = vmatpush1.msra.mxu0 0.0
  %2030 = vmatprep.subr.mxu0 0.0
  %2031 = vmatpush1.msra.mxu0 0.0
  %2032 = vmatprep.subr.mxu0 0.0
  %2033 = vmatpush1.msra.mxu0 0.0
  %2034 = vmatprep.subr.mxu0 0.0
  %2035 = vmatpush1.msra.mxu0 0.0
  %2036 = vmatprep.subr.mxu0 0.0
  %2037 = vmatpush1.msra.mxu0 0.0
  %2038 = vmatprep.subr.mxu0 0.0
  %2039 = vmatpush1.msra.mxu0 0.0
  %2040 = vmatprep.subr.mxu0 0.0
  %2041 = vmatpush1.msra.mxu0 0.0
  %2042 = vmatprep.subr.mxu0 0.0
  %2043 = vmatpush1.msra.mxu0 0.0
  %2044 = vmatprep.subr.mxu0 0.0
  %2045 = vmatpush1.msra.mxu0 0.0
  %2046 = vmatprep.subr.mxu0 0.0
  %2047 = vmatpush1.msra.mxu0 0.0
  %2048 = vmatprep.subr.mxu0 0.0
  %2049 = vmatpush1.msra.mxu0 0.0
  %2050 = vmatprep.subr.mxu0 0.0
  %2051 = vmatpush1.msra.mxu0 0.0
  %2052 = vmatprep.subr.mxu0 0.0
  %2053 = vmatpush1.msra.mxu0 0.0
  %2054 = vmatprep.subr.mxu0 0.0
  %2055 = vmatpush1.msra.mxu0 0.0
  %2056 = vmatprep.subr.mxu0 0.0
  %2057 = vmatpush1.msra.mxu0 0.0
  %2058 = vmatprep.mubr.f32.mxu0 0.0
  %2059 = vmatmul.mubr.f32.gmra.mrb[0].mxu0 %v1989
  %v2060 = vpop.f32.mrb[0].mxu0
  %v2061 = vadd.f32 %v1986, %v2060
  %v2062 = vpop.f32.mrb[0].mxu0
  %2063 = vmatprep.mubr.f32.mxu0 0.0
  %2064 = vmatmul.mubr.f32.gmra.mrb[0].mxu0 %v1992
  %v2065 = vpop.f32.mrb[0].mxu0
  %v2066 = vadd.f32 %v1986, %v2065
  %v2067 = vpop.f32.mrb[0].mxu0
  %2068 = vdwg.mxu0
  %v2069 = vmax.f32 %v2061, 0.0
  %v2070 = vmax.f32 %v2066, 0.0
  %v2071 = vld [vmem:[%s11] sm:$0xff]
  %v2072 = vld [vmem:[%s11 + $0x8] sm:$0xff]
  %v2073 = vld [vmem:[%s11 + $0x10] sm:$0xff]
  %v2074 = vld [vmem:[%s11 + $0x18] sm:$0xff]
  %v2075 = vld [vmem:[%s11 + $0x20] sm:$0xff]
  %v2076 = vld [vmem:[%s11 + $0x28] sm:$0xff]
  %v2077 = vld [vmem:[%s11 + $0x30] sm:$0xff]
  %v2078 = vld [vmem:[%s11 + $0x38] sm:$0xff]
  %v2079 = vld [vmem:[%s12] sm:$0x1]
  %v2081 = vlaneseq
  %v2082 = vshrl.u32 %v2081, 7
  %v2083 = vsub.s32 0, %v2082
  %v2084 = vrot.slane %v2079, %v2083
  %vm2086 = vcmask 523264
  %v2088 = vsel %vm2086, %v2069, 0
  %v2091 = vsel %vm2086, %v2070, 0
  %2093 = vmatprep.subr.mxu0 0.0
  %2094 = vmatpush1.msra.mxu0 %v2071
  %2095 = vmatprep.subr.mxu0 0.0
  %2096 = vmatpush1.msra.mxu0 %v2072
  %2097 = vmatprep.subr.mxu0 0.0
  %2098 = vmatpush1.msra.mxu0 %v2073
  %2099 = vmatprep.subr.mxu0 0.0
  %2100 = vmatpush1.msra.mxu0 %v2074
  %2101 = vmatprep.subr.mxu0 0.0
  %2102 = vmatpush1.msra.mxu0 %v2075
  %2103 = vmatprep.subr.mxu0 0.0
  %2104 = vmatpush1.msra.mxu0 %v2076
  %2105 = vmatprep.subr.mxu0 0.0
  %2106 = vmatpush1.msra.mxu0 %v2077
  %2107 = vmatprep.subr.mxu0 0.0
  %2108 = vmatpush1.msra.mxu0 %v2078
  %2109 = vmatprep.subr.mxu0 0.0
  %2110 = vmatpush1.msra.mxu0 0.0
  %2111 = vmatprep.subr.mxu0 0.0
  %2112 = vmatpush1.msra.mxu0 0.0
  %2113 = vmatprep.subr.mxu0 0.0
  %2114 = vmatpush1.msra.mxu0 0.0
  %2115 = vmatprep.subr.mxu0 0.0
  %2116 = vmatpush1.msra.mxu0 0.0
  %2117 = vmatprep.subr.mxu0 0.0
  %2118 = vmatpush1.msra.mxu0 0.0
  %2119 = vmatprep.subr.mxu0 0.0
  %2120 = vmatpush1.msra.mxu0 0.0
  %2121 = vmatprep.subr.mxu0 0.0
  %2122 = vmatpush1.msra.mxu0 0.0
  %2123 = vmatprep.subr.mxu0 0.0
  %2124 = vmatpush1.msra.mxu0 0.0
  %2125 = vmatprep.subr.mxu0 0.0
  %2126 = vmatpush1.msra.mxu0 0.0
  %2127 = vmatprep.subr.mxu0 0.0
  %2128 = vmatpush1.msra.mxu0 0.0
  %2129 = vmatprep.subr.mxu0 0.0
  %2130 = vmatpush1.msra.mxu0 0.0
  %2131 = vmatprep.subr.mxu0 0.0
  %2132 = vmatpush1.msra.mxu0 0.0
  %2133 = vmatprep.subr.mxu0 0.0
  %2134 = vmatpush1.msra.mxu0 0.0
  %2135 = vmatprep.subr.mxu0 0.0
  %2136 = vmatpush1.msra.mxu0 0.0
  %2137 = vmatprep.subr.mxu0 0.0
  %2138 = vmatpush1.msra.mxu0 0.0
  %2139 = vmatprep.subr.mxu0 0.0
  %2140 = vmatpush1.msra.mxu0 0.0
  %2141 = vmatprep.subr.mxu0 0.0
  %2142 = vmatpush1.msra.mxu0 0.0
  %2143 = vmatprep.subr.mxu0 0.0
  %2144 = vmatpush1.msra.mxu0 0.0
  %2145 = vmatprep.subr.mxu0 0.0
  %2146 = vmatpush1.msra.mxu0 0.0
  %2147 = vmatprep.subr.mxu0 0.0
  %2148 = vmatpush1.msra.mxu0 0.0
  %2149 = vmatprep.subr.mxu0 0.0
  %2150 = vmatpush1.msra.mxu0 0.0
  %2151 = vmatprep.subr.mxu0 0.0
  %2152 = vmatpush1.msra.mxu0 0.0
  %2153 = vmatprep.subr.mxu0 0.0
  %2154 = vmatpush1.msra.mxu0 0.0
  %2155 = vmatprep.subr.mxu0 0.0
  %2156 = vmatpush1.msra.mxu0 0.0
  %2157 = vmatprep.mubr.f32.mxu0 0.0
  %2158 = vmatmul.mubr.f32.gmra.mrb[0].mxu0 %v2088
  %v2159 = vpop.f32.mrb[0].mxu0
  %v2160 = vadd.f32 %v2084, %v2159
  %v2161 = vpop.f32.mrb[0].mxu0
  %2162 = vmatprep.mubr.f32.mxu0 0.0
  %2163 = vmatmul.mubr.f32.gmra.mrb[0].mxu0 %v2091
  %v2164 = vpop.f32.mrb[0].mxu0
  %v2165 = vadd.f32 %v2084, %v2164
  %v2166 = vpop.f32.mrb[0].mxu0
  %2167 = vdwg.mxu0
  %v2168 = vadd.f32 %v2160, %v1975
  %v2169 = vadd.f32 %v2165, %v1976
  %v2170 = vld [vmem:[%s13] sm:$0x1]
  %v2171 = vld [vmem:[%s14] sm:$0x1]
  %v2172 = vsel %vm185, %v2168, 0.0
  %2173 = vadd.xlane.f32.xlu0 %v2172
  %v2174 = vpop.xlane.xlu0 %2173
  %v2175 = vsel %vm185, %v2169, 0.0
  %2176 = vadd.xlane.f32.xlu0 %v2175
  %v2177 = vpop.xlane.xlu0 %2176
  %v2178 = vmul.f32 %v2174, %v1940
  %v2179 = vmul.f32 %v2177, %v1940
  %v2180 = vsub.f32 %v2168, %v2178
  %v2181 = vsub.f32 %v2169, %v2179
  %v2182 = vmul.f32 %v2180, %v2180
  %v2183 = vmul.f32 %v2181, %v2181
  %v2184 = vsel %vm185, %v2182, 0.0
  %2185 = vadd.xlane.f32.xlu0 %v2184
  %v2186 = vpop.xlane.xlu0 %2185
  %v2187 = vsel %vm185, %v2183, 0.0
  %2188 = vadd.xlane.f32.xlu0 %v2187
  %v2189 = vpop.xlane.xlu0 %2188
  %v2190 = vmul.f32 %v2186, %v1940
  %v2191 = vmul.f32 %v2189, %v1940
  %v2192 = vadd.f32 %v2190, 1e-05
  %v2193 = vadd.f32 %v2191, 1e-05
  %v2194 = vrsqrt.pop %v2192
  %v2195 = vrsqrt.pop %v2193
  %v2196 = vmul.f32 %v2180, %v2194
  %v2197 = vmul.f32 %v2181, %v2195
  %v2199 = vlaneseq
  %v2200 = vshrl.u32 %v2199, 7
  %v2201 = vsub.s32 0, %v2200
  %v2202 = vrot.slane %v2170, %v2201
  %v2204 = vmul.f32 %v2196, %v2202
  %v2205 = vmul.f32 %v2197, %v2202
  %v2207 = vlaneseq
  %v2208 = vshrl.u32 %v2207, 7
  %v2209 = vsub.s32 0, %v2208
  %v2210 = vrot.slane %v2171, %v2209
  %v2212 = vadd.f32 %v2204, %v2210
  %v2213 = vadd.f32 %v2205, %v2210
  %s2214 = scalar_lea.vmem %s3, 32
  %v2215 = vld [vmem:[%s2214] sm:$0xff]
  %v2216 = vld [vmem:[%s2214 + $0x8] sm:$0xff]
  %v2217 = vld [vmem:[%s2214 + $0x10] sm:$0xff]
  %v2218 = vld [vmem:[%s2214 + $0x18] sm:$0xff]
  %s2219 = scalar_lea.vmem %s4, 1
  %v2220 = vld [vmem:[%s2219] sm:$0x1]
  %s2221 = scalar_lea.vmem %s5, 32
  %v2222 = vld [vmem:[%s2221] sm:$0xff]
  %v2223 = vld [vmem:[%s2221 + $0x8] sm:$0xff]
  %v2224 = vld [vmem:[%s2221 + $0x10] sm:$0xff]
  %v2225 = vld [vmem:[%s2221 + $0x18] sm:$0xff]
  %s2226 = scalar_lea.vmem %s6, 1
  %v2227 = vld [vmem:[%s2226] sm:$0x1]
  %v2229 = vlaneseq
  %v2230 = vshrl.u32 %v2229, 7
  %v2231 = vsub.s32 0, %v2230
  %v2232 = vrot.slane %v2220, %v2231
  %v2235 = vsel %vm185, %v2212, 0
  %v2238 = vsel %vm185, %v2213, 0
  %2240 = vmatprep.subr.mxu0 0.0
  %2241 = vmatpush1.msra.mxu0 %v2215
  %2242 = vmatprep.subr.mxu0 0.0
  %2243 = vmatpush1.msra.mxu0 %v2216
  %2244 = vmatprep.subr.mxu0 0.0
  %2245 = vmatpush1.msra.mxu0 %v2217
  %2246 = vmatprep.subr.mxu0 0.0
  %2247 = vmatpush1.msra.mxu0 %v2218
  %2248 = vmatprep.subr.mxu0 0.0
  %2249 = vmatpush1.msra.mxu0 0.0
  %2250 = vmatprep.subr.mxu0 0.0
  %2251 = vmatpush1.msra.mxu0 0.0
  %2252 = vmatprep.subr.mxu0 0.0
  %2253 = vmatpush1.msra.mxu0 0.0
  %2254 = vmatprep.subr.mxu0 0.0
  %2255 = vmatpush1.msra.mxu0 0.0
  %2256 = vmatprep.subr.mxu0 0.0
  %2257 = vmatpush1.msra.mxu0 0.0
  %2258 = vmatprep.subr.mxu0 0.0
  %2259 = vmatpush1.msra.mxu0 0.0
  %2260 = vmatprep.subr.mxu0 0.0
  %2261 = vmatpush1.msra.mxu0 0.0
  %2262 = vmatprep.subr.mxu0 0.0
  %2263 = vmatpush1.msra.mxu0 0.0
  %2264 = vmatprep.subr.mxu0 0.0
  %2265 = vmatpush1.msra.mxu0 0.0
  %2266 = vmatprep.subr.mxu0 0.0
  %2267 = vmatpush1.msra.mxu0 0.0
  %2268 = vmatprep.subr.mxu0 0.0
  %2269 = vmatpush1.msra.mxu0 0.0
  %2270 = vmatprep.subr.mxu0 0.0
  %2271 = vmatpush1.msra.mxu0 0.0
  %2272 = vmatprep.subr.mxu0 0.0
  %2273 = vmatpush1.msra.mxu0 0.0
  %2274 = vmatprep.subr.mxu0 0.0
  %2275 = vmatpush1.msra.mxu0 0.0
  %2276 = vmatprep.subr.mxu0 0.0
  %2277 = vmatpush1.msra.mxu0 0.0
  %2278 = vmatprep.subr.mxu0 0.0
  %2279 = vmatpush1.msra.mxu0 0.0
  %2280 = vmatprep.subr.mxu0 0.0
  %2281 = vmatpush1.msra.mxu0 0.0
  %2282 = vmatprep.subr.mxu0 0.0
  %2283 = vmatpush1.msra.mxu0 0.0
  %2284 = vmatprep.subr.mxu0 0.0
  %2285 = vmatpush1.msra.mxu0 0.0
  %2286 = vmatprep.subr.mxu0 0.0
  %2287 = vmatpush1.msra.mxu0 0.0
  %2288 = vmatprep.subr.mxu0 0.0
  %2289 = vmatpush1.msra.mxu0 0.0
  %2290 = vmatprep.subr.mxu0 0.0
  %2291 = vmatpush1.msra.mxu0 0.0
  %2292 = vmatprep.subr.mxu0 0.0
  %2293 = vmatpush1.msra.mxu0 0.0
  %2294 = vmatprep.subr.mxu0 0.0
  %2295 = vmatpush1.msra.mxu0 0.0
  %2296 = vmatprep.subr.mxu0 0.0
  %2297 = vmatpush1.msra.mxu0 0.0
  %2298 = vmatprep.subr.mxu0 0.0
  %2299 = vmatpush1.msra.mxu0 0.0
  %2300 = vmatprep.subr.mxu0 0.0
  %2301 = vmatpush1.msra.mxu0 0.0
  %2302 = vmatprep.subr.mxu0 0.0
  %2303 = vmatpush1.msra.mxu0 0.0
  %2304 = vmatprep.mubr.f32.mxu0 0.0
  %2305 = vmatmul.mubr.f32.gmra.mrb[0].mxu0 %v2235
  %v2306 = vpop.f32.mrb[0].mxu0
  %v2307 = vadd.f32 %v2232, %v2306
  %v2308 = vpop.f32.mrb[0].mxu0
  %2309 = vmatprep.mubr.f32.mxu0 0.0
  %2310 = vmatmul.mubr.f32.gmra.mrb[0].mxu0 %v2238
  %v2311 = vpop.f32.mrb[0].mxu0
  %v2312 = vadd.f32 %v2232, %v2311
  %v2313 = vpop.f32.mrb[0].mxu0
  %2314 = vdwg.mxu0
  %2316 = vrot.lane.b32.xlu0 %v2307, 96
  %v2317 = vpop.permute.xlu0 %2316
  %v2318 = vsel %vm270, %v2307, 0
  %v2320 = vsel %vm270, %v2317, 0
  %2322 = vmatprep.subr.mxu0 0.0
  %2323 = vmatpush1.xpose.msra.mxu0 %v2320
  %2324 = vmatprep.subr.mxu0 0.0
  %2325 = vmatpush1.xpose.msra.mxu0 0.0
  %2326 = vmatprep.subr.mxu0 0.0
  %2327 = vmatpush1.xpose.msra.mxu0 0.0
  %2328 = vmatprep.subr.mxu0 0.0
  %2329 = vmatpush1.xpose.msra.mxu0 0.0
  %2330 = vmatprep.subr.mxu0 0.0
  %2331 = vmatpush1.xpose.msra.mxu0 0.0
  %2332 = vmatprep.subr.mxu0 0.0
  %2333 = vmatpush1.xpose.msra.mxu0 0.0
  %2334 = vmatprep.subr.mxu0 0.0
  %2335 = vmatpush1.xpose.msra.mxu0 0.0
  %2336 = vmatprep.subr.mxu0 0.0
  %2337 = vmatpush1.xpose.msra.mxu0 0.0
  %2338 = vmatprep.subr.mxu0 0.0
  %2339 = vmatpush1.xpose.msra.mxu0 0.0
  %2340 = vmatprep.subr.mxu0 0.0
  %2341 = vmatpush1.xpose.msra.mxu0 0.0
  %2342 = vmatprep.subr.mxu0 0.0
  %2343 = vmatpush1.xpose.msra.mxu0 0.0
  %2344 = vmatprep.subr.mxu0 0.0
  %2345 = vmatpush1.xpose.msra.mxu0 0.0
  %2346 = vmatprep.subr.mxu0 0.0
  %2347 = vmatpush1.xpose.msra.mxu0 0.0
  %2348 = vmatprep.subr.mxu0 0.0
  %2349 = vmatpush1.xpose.msra.mxu0 0.0
  %2350 = vmatprep.subr.mxu0 0.0
  %2351 = vmatpush1.xpose.msra.mxu0 0.0
  %2352 = vmatprep.subr.mxu0 0.0
  %2353 = vmatpush1.xpose.msra.mxu0 0.0
  %2354 = vmatprep.subr.mxu0 0.0
  %2355 = vmatpush1.xpose.msra.mxu0 0.0
  %2356 = vmatprep.subr.mxu0 0.0
  %2357 = vmatpush1.xpose.msra.mxu0 0.0
  %2358 = vmatprep.subr.mxu0 0.0
  %2359 = vmatpush1.xpose.msra.mxu0 0.0
  %2360 = vmatprep.subr.mxu0 0.0
  %2361 = vmatpush1.xpose.msra.mxu0 0.0
  %2362 = vmatprep.subr.mxu0 0.0
  %2363 = vmatpush1.xpose.msra.mxu0 0.0
  %2364 = vmatprep.subr.mxu0 0.0
  %2365 = vmatpush1.xpose.msra.mxu0 0.0
  %2366 = vmatprep.subr.mxu0 0.0
  %2367 = vmatpush1.xpose.msra.mxu0 0.0
  %2368 = vmatprep.subr.mxu0 0.0
  %2369 = vmatpush1.xpose.msra.mxu0 0.0
  %2370 = vmatprep.subr.mxu0 0.0
  %2371 = vmatpush1.xpose.msra.mxu0 0.0
  %2372 = vmatprep.subr.mxu0 0.0
  %2373 = vmatpush1.xpose.msra.mxu0 0.0
  %2374 = vmatprep.subr.mxu0 0.0
  %2375 = vmatpush1.xpose.msra.mxu0 0.0
  %2376 = vmatprep.subr.mxu0 0.0
  %2377 = vmatpush1.xpose.msra.mxu0 0.0
  %2378 = vmatprep.subr.mxu0 0.0
  %2379 = vmatpush1.xpose.msra.mxu0 0.0
  %2380 = vmatprep.subr.mxu0 0.0
  %2381 = vmatpush1.xpose.msra.mxu0 0.0
  %2382 = vmatprep.subr.mxu0 0.0
  %2383 = vmatpush1.xpose.msra.mxu0 0.0
  %2384 = vmatprep.subr.mxu0 0.0
  %2385 = vmatpush1.xpose.msra.mxu0 0.0
  %2386 = vmatprep.mubr.f32.mxu0 0.0
  %2387 = vmatmul.mubr.f32.gmra.mrb[0].mxu0 %v2318
  %v2388 = vpop.f32.mrb[0].mxu0
  %v2389 = vadd.f32 0.0, %v2388
  %v2390 = vpop.f32.mrb[0].mxu0
  %2391 = vdwg.mxu0
  %2393 = vrot.lane.b32.xlu0 %v2312, 96
  %v2394 = vpop.permute.xlu0 %2393
  %v2395 = vsel %vm270, %v2312, 0
  %v2397 = vsel %vm270, %v2394, 0
  %2399 = vmatprep.subr.mxu0 0.0
  %2400 = vmatpush1.xpose.msra.mxu0 %v2397
  %2401 = vmatprep.subr.mxu0 0.0
  %2402 = vmatpush1.xpose.msra.mxu0 0.0
  %2403 = vmatprep.subr.mxu0 0.0
  %2404 = vmatpush1.xpose.msra.mxu0 0.0
  %2405 = vmatprep.subr.mxu0 0.0
  %2406 = vmatpush1.xpose.msra.mxu0 0.0
  %2407 = vmatprep.subr.mxu0 0.0
  %2408 = vmatpush1.xpose.msra.mxu0 0.0
  %2409 = vmatprep.subr.mxu0 0.0
  %2410 = vmatpush1.xpose.msra.mxu0 0.0
  %2411 = vmatprep.subr.mxu0 0.0
  %2412 = vmatpush1.xpose.msra.mxu0 0.0
  %2413 = vmatprep.subr.mxu0 0.0
  %2414 = vmatpush1.xpose.msra.mxu0 0.0
  %2415 = vmatprep.subr.mxu0 0.0
  %2416 = vmatpush1.xpose.msra.mxu0 0.0
  %2417 = vmatprep.subr.mxu0 0.0
  %2418 = vmatpush1.xpose.msra.mxu0 0.0
  %2419 = vmatprep.subr.mxu0 0.0
  %2420 = vmatpush1.xpose.msra.mxu0 0.0
  %2421 = vmatprep.subr.mxu0 0.0
  %2422 = vmatpush1.xpose.msra.mxu0 0.0
  %2423 = vmatprep.subr.mxu0 0.0
  %2424 = vmatpush1.xpose.msra.mxu0 0.0
  %2425 = vmatprep.subr.mxu0 0.0
  %2426 = vmatpush1.xpose.msra.mxu0 0.0
  %2427 = vmatprep.subr.mxu0 0.0
  %2428 = vmatpush1.xpose.msra.mxu0 0.0
  %2429 = vmatprep.subr.mxu0 0.0
  %2430 = vmatpush1.xpose.msra.mxu0 0.0
  %2431 = vmatprep.subr.mxu0 0.0
  %2432 = vmatpush1.xpose.msra.mxu0 0.0
  %2433 = vmatprep.subr.mxu0 0.0
  %2434 = vmatpush1.xpose.msra.mxu0 0.0
  %2435 = vmatprep.subr.mxu0 0.0
  %2436 = vmatpush1.xpose.msra.mxu0 0.0
  %2437 = vmatprep.subr.mxu0 0.0
  %2438 = vmatpush1.xpose.msra.mxu0 0.0
  %2439 = vmatprep.subr.mxu0 0.0
  %2440 = vmatpush1.xpose.msra.mxu0 0.0
  %2441 = vmatprep.subr.mxu0 0.0
  %2442 = vmatpush1.xpose.msra.mxu0 0.0
  %2443 = vmatprep.subr.mxu0 0.0
  %2444 = vmatpush1.xpose.msra.mxu0 0.0
  %2445 = vmatprep.subr.mxu0 0.0
  %2446 = vmatpush1.xpose.msra.mxu0 0.0
  %2447 = vmatprep.subr.mxu0 0.0
  %2448 = vmatpush1.xpose.msra.mxu0 0.0
  %2449 = vmatprep.subr.mxu0 0.0
  %2450 = vmatpush1.xpose.msra.mxu0 0.0
  %2451 = vmatprep.subr.mxu0 0.0
  %2452 = vmatpush1.xpose.msra.mxu0 0.0
  %2453 = vmatprep.subr.mxu0 0.0
  %2454 = vmatpush1.xpose.msra.mxu0 0.0
  %2455 = vmatprep.subr.mxu0 0.0
  %2456 = vmatpush1.xpose.msra.mxu0 0.0
  %2457 = vmatprep.subr.mxu0 0.0
  %2458 = vmatpush1.xpose.msra.mxu0 0.0
  %2459 = vmatprep.subr.mxu0 0.0
  %2460 = vmatpush1.xpose.msra.mxu0 0.0
  %2461 = vmatprep.subr.mxu0 0.0
  %2462 = vmatpush1.xpose.msra.mxu0 0.0
  %2463 = vmatprep.mubr.f32.mxu0 0.0
  %2464 = vmatmul.mubr.f32.gmra.mrb[0].mxu0 %v2395
  %v2465 = vpop.f32.mrb[0].mxu0
  %v2466 = vadd.f32 0.0, %v2465
  %v2467 = vpop.f32.mrb[0].mxu0
  %2468 = vdwg.mxu0
  %v2469 = vmul.f32 %v2389, 0.35355338
  %v2470 = vmul.f32 %v2466, 0.35355338
  %v2471 = vsel %vm270, %v2469, -inf
  %2472 = vmax.xlane.f32.xlu0 %v2471
  %v2473 = vpop.xlane.xlu0 %2472
  %v2474 = vsel %vm270, %v2470, -inf
  %2475 = vmax.xlane.f32.xlu0 %v2474
  %v2476 = vpop.xlane.xlu0 %2475
  %v2477 = vsub.f32 %v2469, %v2473
  %v2478 = vsub.f32 %v2470, %v2476
  %v2479 = vmul.f32 %v2477, 1.442695
  %v2480 = vpow.pop %v2479
  %v2481 = vmul.f32 %v2478, 1.442695
  %v2482 = vpow.pop %v2481
  %v2483 = vsel %vm270, %v2480, 0.0
  %2484 = vadd.xlane.f32.xlu0 %v2483
  %v2485 = vpop.xlane.xlu0 %2484
  %v2486 = vsel %vm270, %v2482, 0.0
  %2487 = vadd.xlane.f32.xlu0 %v2486
  %v2488 = vpop.xlane.xlu0 %2487
  %v2489 = vrcp.pop %v2485
  %v2490 = vrcp.pop %v2488
  %v2491 = vmul.f32 %v2480, %v2489
  %v2492 = vmul.f32 %v2482, %v2490
  %2493 = vrot.lane.b32.xlu0 %v2307, 64
  %v2494 = vpop.permute.xlu0 %2493
  %v2497 = vsel %vm270, %v2491, 0
  %2499 = vmatprep.subr.mxu0 0.0
  %2500 = vmatpush1.msra.mxu0 %v2494
  %2501 = vmatprep.subr.mxu0 0.0
  %2502 = vmatpush1.msra.mxu0 0.0
  %2503 = vmatprep.subr.mxu0 0.0
  %2504 = vmatpush1.msra.mxu0 0.0
  %2505 = vmatprep.subr.mxu0 0.0
  %2506 = vmatpush1.msra.mxu0 0.0
  %2507 = vmatprep.subr.mxu0 0.0
  %2508 = vmatpush1.msra.mxu0 0.0
  %2509 = vmatprep.subr.mxu0 0.0
  %2510 = vmatpush1.msra.mxu0 0.0
  %2511 = vmatprep.subr.mxu0 0.0
  %2512 = vmatpush1.msra.mxu0 0.0
  %2513 = vmatprep.subr.mxu0 0.0
  %2514 = vmatpush1.msra.mxu0 0.0
  %2515 = vmatprep.subr.mxu0 0.0
  %2516 = vmatpush1.msra.mxu0 0.0
  %2517 = vmatprep.subr.mxu0 0.0
  %2518 = vmatpush1.msra.mxu0 0.0
  %2519 = vmatprep.subr.mxu0 0.0
  %2520 = vmatpush1.msra.mxu0 0.0
  %2521 = vmatprep.subr.mxu0 0.0
  %2522 = vmatpush1.msra.mxu0 0.0
  %2523 = vmatprep.subr.mxu0 0.0
  %2524 = vmatpush1.msra.mxu0 0.0
  %2525 = vmatprep.subr.mxu0 0.0
  %2526 = vmatpush1.msra.mxu0 0.0
  %2527 = vmatprep.subr.mxu0 0.0
  %2528 = vmatpush1.msra.mxu0 0.0
  %2529 = vmatprep.subr.mxu0 0.0
  %2530 = vmatpush1.msra.mxu0 0.0
  %2531 = vmatprep.subr.mxu0 0.0
  %2532 = vmatpush1.msra.mxu0 0.0
  %2533 = vmatprep.subr.mxu0 0.0
  %2534 = vmatpush1.msra.mxu0 0.0
  %2535 = vmatprep.subr.mxu0 0.0
  %2536 = vmatpush1.msra.mxu0 0.0
  %2537 = vmatprep.subr.mxu0 0.0
  %2538 = vmatpush1.msra.mxu0 0.0
  %2539 = vmatprep.subr.mxu0 0.0
  %2540 = vmatpush1.msra.mxu0 0.0
  %2541 = vmatprep.subr.mxu0 0.0
  %2542 = vmatpush1.msra.mxu0 0.0
  %2543 = vmatprep.subr.mxu0 0.0
  %2544 = vmatpush1.msra.mxu0 0.0
  %2545 = vmatprep.subr.mxu0 0.0
  %2546 = vmatpush1.msra.mxu0 0.0
  %2547 = vmatprep.subr.mxu0 0.0
  %2548 = vmatpush1.msra.mxu0 0.0
  %2549 = vmatprep.subr.mxu0 0.0
  %2550 = vmatpush1.msra.mxu0 0.0
  %2551 = vmatprep.subr.mxu0 0.0
  %2552 = vmatpush1.msra.mxu0 0.0
  %2553 = vmatprep.subr.mxu0 0.0
  %2554 = vmatpush1.msra.mxu0 0.0
  %2555 = vmatprep.subr.mxu0 0.0
  %2556 = vmatpush1.msra.mxu0 0.0
  %2557 = vmatprep.subr.mxu0 0.0
  %2558 = vmatpush1.msra.mxu0 0.0
  %2559 = vmatprep.subr.mxu0 0.0
  %2560 = vmatpush1.msra.mxu0 0.0
  %2561 = vmatprep.subr.mxu0 0.0
  %2562 = vmatpush1.msra.mxu0 0.0
  %2563 = vmatprep.mubr.f32.mxu0 0.0
  %2564 = vmatmul.mubr.f32.gmra.mrb[0].mxu0 %v2497
  %v2565 = vpop.f32.mrb[0].mxu0
  %v2566 = vadd.f32 0.0, %v2565
  %v2567 = vpop.f32.mrb[0].mxu0
  %2568 = vdwg.mxu0
  %2569 = vrot.lane.b32.xlu0 %v2312, 64
  %v2570 = vpop.permute.xlu0 %2569
  %v2573 = vsel %vm270, %v2492, 0
  %2575 = vmatprep.subr.mxu0 0.0
  %2576 = vmatpush1.msra.mxu0 %v2570
  %2577 = vmatprep.subr.mxu0 0.0
  %2578 = vmatpush1.msra.mxu0 0.0
  %2579 = vmatprep.subr.mxu0 0.0
  %2580 = vmatpush1.msra.mxu0 0.0
  %2581 = vmatprep.subr.mxu0 0.0
  %2582 = vmatpush1.msra.mxu0 0.0
  %2583 = vmatprep.subr.mxu0 0.0
  %2584 = vmatpush1.msra.mxu0 0.0
  %2585 = vmatprep.subr.mxu0 0.0
  %2586 = vmatpush1.msra.mxu0 0.0
  %2587 = vmatprep.subr.mxu0 0.0
  %2588 = vmatpush1.msra.mxu0 0.0
  %2589 = vmatprep.subr.mxu0 0.0
  %2590 = vmatpush1.msra.mxu0 0.0
  %2591 = vmatprep.subr.mxu0 0.0
  %2592 = vmatpush1.msra.mxu0 0.0
  %2593 = vmatprep.subr.mxu0 0.0
  %2594 = vmatpush1.msra.mxu0 0.0
  %2595 = vmatprep.subr.mxu0 0.0
  %2596 = vmatpush1.msra.mxu0 0.0
  %2597 = vmatprep.subr.mxu0 0.0
  %2598 = vmatpush1.msra.mxu0 0.0
  %2599 = vmatprep.subr.mxu0 0.0
  %2600 = vmatpush1.msra.mxu0 0.0
  %2601 = vmatprep.subr.mxu0 0.0
  %2602 = vmatpush1.msra.mxu0 0.0
  %2603 = vmatprep.subr.mxu0 0.0
  %2604 = vmatpush1.msra.mxu0 0.0
  %2605 = vmatprep.subr.mxu0 0.0
  %2606 = vmatpush1.msra.mxu0 0.0
  %2607 = vmatprep.subr.mxu0 0.0
  %2608 = vmatpush1.msra.mxu0 0.0
  %2609 = vmatprep.subr.mxu0 0.0
  %2610 = vmatpush1.msra.mxu0 0.0
  %2611 = vmatprep.subr.mxu0 0.0
  %2612 = vmatpush1.msra.mxu0 0.0
  %2613 = vmatprep.subr.mxu0 0.0
  %2614 = vmatpush1.msra.mxu0 0.0
  %2615 = vmatprep.subr.mxu0 0.0
  %2616 = vmatpush1.msra.mxu0 0.0
  %2617 = vmatprep.subr.mxu0 0.0
  %2618 = vmatpush1.msra.mxu0 0.0
  %2619 = vmatprep.subr.mxu0 0.0
  %2620 = vmatpush1.msra.mxu0 0.0
  %2621 = vmatprep.subr.mxu0 0.0
  %2622 = vmatpush1.msra.mxu0 0.0
  %2623 = vmatprep.subr.mxu0 0.0
  %2624 = vmatpush1.msra.mxu0 0.0
  %2625 = vmatprep.subr.mxu0 0.0
  %2626 = vmatpush1.msra.mxu0 0.0
  %2627 = vmatprep.subr.mxu0 0.0
  %2628 = vmatpush1.msra.mxu0 0.0
  %2629 = vmatprep.subr.mxu0 0.0
  %2630 = vmatpush1.msra.mxu0 0.0
  %2631 = vmatprep.subr.mxu0 0.0
  %2632 = vmatpush1.msra.mxu0 0.0
  %2633 = vmatprep.subr.mxu0 0.0
  %2634 = vmatpush1.msra.mxu0 0.0
  %2635 = vmatprep.subr.mxu0 0.0
  %2636 = vmatpush1.msra.mxu0 0.0
  %2637 = vmatprep.subr.mxu0 0.0
  %2638 = vmatpush1.msra.mxu0 0.0
  %2639 = vmatprep.mubr.f32.mxu0 0.0
  %2640 = vmatmul.mubr.f32.gmra.mrb[0].mxu0 %v2573
  %v2641 = vpop.f32.mrb[0].mxu0
  %v2642 = vadd.f32 0.0, %v2641
  %v2643 = vpop.f32.mrb[0].mxu0
  %2644 = vdwg.mxu0
  %2645 = vrot.lane.b32.xlu0 %v2307, 120
  %v2646 = vpop.permute.xlu0 %2645
  %2647 = vrot.lane.b32.xlu0 %v2307, 88
  %v2648 = vpop.permute.xlu0 %2647
  %v2649 = vsel %vm270, %v2646, 0
  %v2651 = vsel %vm270, %v2648, 0
  %2653 = vmatprep.subr.mxu0 0.0
  %2654 = vmatpush1.xpose.msra.mxu0 %v2651
  %2655 = vmatprep.subr.mxu0 0.0
  %2656 = vmatpush1.xpose.msra.mxu0 0.0
  %2657 = vmatprep.subr.mxu0 0.0
  %2658 = vmatpush1.xpose.msra.mxu0 0.0
  %2659 = vmatprep.subr.mxu0 0.0
  %2660 = vmatpush1.xpose.msra.mxu0 0.0
  %2661 = vmatprep.subr.mxu0 0.0
  %2662 = vmatpush1.xpose.msra.mxu0 0.0
  %2663 = vmatprep.subr.mxu0 0.0
  %2664 = vmatpush1.xpose.msra.mxu0 0.0
  %2665 = vmatprep.subr.mxu0 0.0
  %2666 = vmatpush1.xpose.msra.mxu0 0.0
  %2667 = vmatprep.subr.mxu0 0.0
  %2668 = vmatpush1.xpose.msra.mxu0 0.0
  %2669 = vmatprep.subr.mxu0 0.0
  %2670 = vmatpush1.xpose.msra.mxu0 0.0
  %2671 = vmatprep.subr.mxu0 0.0
  %2672 = vmatpush1.xpose.msra.mxu0 0.0
  %2673 = vmatprep.subr.mxu0 0.0
  %2674 = vmatpush1.xpose.msra.mxu0 0.0
  %2675 = vmatprep.subr.mxu0 0.0
  %2676 = vmatpush1.xpose.msra.mxu0 0.0
  %2677 = vmatprep.subr.mxu0 0.0
  %2678 = vmatpush1.xpose.msra.mxu0 0.0
  %2679 = vmatprep.subr.mxu0 0.0
  %2680 = vmatpush1.xpose.msra.mxu0 0.0
  %2681 = vmatprep.subr.mxu0 0.0
  %2682 = vmatpush1.xpose.msra.mxu0 0.0
  %2683 = vmatprep.subr.mxu0 0.0
  %2684 = vmatpush1.xpose.msra.mxu0 0.0
  %2685 = vmatprep.subr.mxu0 0.0
  %2686 = vmatpush1.xpose.msra.mxu0 0.0
  %2687 = vmatprep.subr.mxu0 0.0
  %2688 = vmatpush1.xpose.msra.mxu0 0.0
  %2689 = vmatprep.subr.mxu0 0.0
  %2690 = vmatpush1.xpose.msra.mxu0 0.0
  %2691 = vmatprep.subr.mxu0 0.0
  %2692 = vmatpush1.xpose.msra.mxu0 0.0
  %2693 = vmatprep.subr.mxu0 0.0
  %2694 = vmatpush1.xpose.msra.mxu0 0.0
  %2695 = vmatprep.subr.mxu0 0.0
  %2696 = vmatpush1.xpose.msra.mxu0 0.0
  %2697 = vmatprep.subr.mxu0 0.0
  %2698 = vmatpush1.xpose.msra.mxu0 0.0
  %2699 = vmatprep.subr.mxu0 0.0
  %2700 = vmatpush1.xpose.msra.mxu0 0.0
  %2701 = vmatprep.subr.mxu0 0.0
  %2702 = vmatpush1.xpose.msra.mxu0 0.0
  %2703 = vmatprep.subr.mxu0 0.0
  %2704 = vmatpush1.xpose.msra.mxu0 0.0
  %2705 = vmatprep.subr.mxu0 0.0
  %2706 = vmatpush1.xpose.msra.mxu0 0.0
  %2707 = vmatprep.subr.mxu0 0.0
  %2708 = vmatpush1.xpose.msra.mxu0 0.0
  %2709 = vmatprep.subr.mxu0 0.0
  %2710 = vmatpush1.xpose.msra.mxu0 0.0
  %2711 = vmatprep.subr.mxu0 0.0
  %2712 = vmatpush1.xpose.msra.mxu0 0.0
  %2713 = vmatprep.subr.mxu0 0.0
  %2714 = vmatpush1.xpose.msra.mxu0 0.0
  %2715 = vmatprep.subr.mxu0 0.0
  %2716 = vmatpush1.xpose.msra.mxu0 0.0
  %2717 = vmatprep.mubr.f32.mxu0 0.0
  %2718 = vmatmul.mubr.f32.gmra.mrb[0].mxu0 %v2649
  %v2719 = vpop.f32.mrb[0].mxu0
  %v2720 = vadd.f32 0.0, %v2719
  %v2721 = vpop.f32.mrb[0].mxu0
  %2722 = vdwg.mxu0
  %2723 = vrot.lane.b32.xlu0 %v2312, 120
  %v2724 = vpop.permute.xlu0 %2723
  %2725 = vrot.lane.b32.xlu0 %v2312, 88
  %v2726 = vpop.permute.xlu0 %2725
  %v2727 = vsel %vm270, %v2724, 0
  %v2729 = vsel %vm270, %v2726, 0
  %2731 = vmatprep.subr.mxu0 0.0
  %2732 = vmatpush1.xpose.msra.mxu0 %v2729
  %2733 = vmatprep.subr.mxu0 0.0
  %2734 = vmatpush1.xpose.msra.mxu0 0.0
  %2735 = vmatprep.subr.mxu0 0.0
  %2736 = vmatpush1.xpose.msra.mxu0 0.0
  %2737 = vmatprep.subr.mxu0 0.0
  %2738 = vmatpush1.xpose.msra.mxu0 0.0
  %2739 = vmatprep.subr.mxu0 0.0
  %2740 = vmatpush1.xpose.msra.mxu0 0.0
  %2741 = vmatprep.subr.mxu0 0.0
  %2742 = vmatpush1.xpose.msra.mxu0 0.0
  %2743 = vmatprep.subr.mxu0 0.0
  %2744 = vmatpush1.xpose.msra.mxu0 0.0
  %2745 = vmatprep.subr.mxu0 0.0
  %2746 = vmatpush1.xpose.msra.mxu0 0.0
  %2747 = vmatprep.subr.mxu0 0.0
  %2748 = vmatpush1.xpose.msra.mxu0 0.0
  %2749 = vmatprep.subr.mxu0 0.0
  %2750 = vmatpush1.xpose.msra.mxu0 0.0
  %2751 = vmatprep.subr.mxu0 0.0
  %2752 = vmatpush1.xpose.msra.mxu0 0.0
  %2753 = vmatprep.subr.mxu0 0.0
  %2754 = vmatpush1.xpose.msra.mxu0 0.0
  %2755 = vmatprep.subr.mxu0 0.0
  %2756 = vmatpush1.xpose.msra.mxu0 0.0
  %2757 = vmatprep.subr.mxu0 0.0
  %2758 = vmatpush1.xpose.msra.mxu0 0.0
  %2759 = vmatprep.subr.mxu0 0.0
  %2760 = vmatpush1.xpose.msra.mxu0 0.0
  %2761 = vmatprep.subr.mxu0 0.0
  %2762 = vmatpush1.xpose.msra.mxu0 0.0
  %2763 = vmatprep.subr.mxu0 0.0
  %2764 = vmatpush1.xpose.msra.mxu0 0.0
  %2765 = vmatprep.subr.mxu0 0.0
  %2766 = vmatpush1.xpose.msra.mxu0 0.0
  %2767 = vmatprep.subr.mxu0 0.0
  %2768 = vmatpush1.xpose.msra.mxu0 0.0
  %2769 = vmatprep.subr.mxu0 0.0
  %2770 = vmatpush1.xpose.msra.mxu0 0.0
  %2771 = vmatprep.subr.mxu0 0.0
  %2772 = vmatpush1.xpose.msra.mxu0 0.0
  %2773 = vmatprep.subr.mxu0 0.0
  %2774 = vmatpush1.xpose.msra.mxu0 0.0
  %2775 = vmatprep.subr.mxu0 0.0
  %2776 = vmatpush1.xpose.msra.mxu0 0.0
  %2777 = vmatprep.subr.mxu0 0.0
  %2778 = vmatpush1.xpose.msra.mxu0 0.0
  %2779 = vmatprep.subr.mxu0 0.0
  %2780 = vmatpush1.xpose.msra.mxu0 0.0
  %2781 = vmatprep.subr.mxu0 0.0
  %2782 = vmatpush1.xpose.msra.mxu0 0.0
  %2783 = vmatprep.subr.mxu0 0.0
  %2784 = vmatpush1.xpose.msra.mxu0 0.0
  %2785 = vmatprep.subr.mxu0 0.0
  %2786 = vmatpush1.xpose.msra.mxu0 0.0
  %2787 = vmatprep.subr.mxu0 0.0
  %2788 = vmatpush1.xpose.msra.mxu0 0.0
  %2789 = vmatprep.subr.mxu0 0.0
  %2790 = vmatpush1.xpose.msra.mxu0 0.0
  %2791 = vmatprep.subr.mxu0 0.0
  %2792 = vmatpush1.xpose.msra.mxu0 0.0
  %2793 = vmatprep.subr.mxu0 0.0
  %2794 = vmatpush1.xpose.msra.mxu0 0.0
  %2795 = vmatprep.mubr.f32.mxu0 0.0
  %2796 = vmatmul.mubr.f32.gmra.mrb[0].mxu0 %v2727
  %v2797 = vpop.f32.mrb[0].mxu0
  %v2798 = vadd.f32 0.0, %v2797
  %v2799 = vpop.f32.mrb[0].mxu0
  %2800 = vdwg.mxu0
  %v2801 = vmul.f32 %v2720, 0.35355338
  %v2802 = vmul.f32 %v2798, 0.35355338
  %v2803 = vsel %vm270, %v2801, -inf
  %2804 = vmax.xlane.f32.xlu0 %v2803
  %v2805 = vpop.xlane.xlu0 %2804
  %v2806 = vsel %vm270, %v2802, -inf
  %2807 = vmax.xlane.f32.xlu0 %v2806
  %v2808 = vpop.xlane.xlu0 %2807
  %v2809 = vsub.f32 %v2801, %v2805
  %v2810 = vsub.f32 %v2802, %v2808
  %v2811 = vmul.f32 %v2809, 1.442695
  %v2812 = vpow.pop %v2811
  %v2813 = vmul.f32 %v2810, 1.442695
  %v2814 = vpow.pop %v2813
  %v2815 = vsel %vm270, %v2812, 0.0
  %2816 = vadd.xlane.f32.xlu0 %v2815
  %v2817 = vpop.xlane.xlu0 %2816
  %v2818 = vsel %vm270, %v2814, 0.0
  %2819 = vadd.xlane.f32.xlu0 %v2818
  %v2820 = vpop.xlane.xlu0 %2819
  %v2821 = vrcp.pop %v2817
  %v2822 = vrcp.pop %v2820
  %v2823 = vmul.f32 %v2812, %v2821
  %v2824 = vmul.f32 %v2814, %v2822
  %2825 = vrot.lane.b32.xlu0 %v2307, 56
  %v2826 = vpop.permute.xlu0 %2825
  %v2829 = vsel %vm270, %v2823, 0
  %2831 = vmatprep.subr.mxu0 0.0
  %2832 = vmatpush1.msra.mxu0 %v2826
  %2833 = vmatprep.subr.mxu0 0.0
  %2834 = vmatpush1.msra.mxu0 0.0
  %2835 = vmatprep.subr.mxu0 0.0
  %2836 = vmatpush1.msra.mxu0 0.0
  %2837 = vmatprep.subr.mxu0 0.0
  %2838 = vmatpush1.msra.mxu0 0.0
  %2839 = vmatprep.subr.mxu0 0.0
  %2840 = vmatpush1.msra.mxu0 0.0
  %2841 = vmatprep.subr.mxu0 0.0
  %2842 = vmatpush1.msra.mxu0 0.0
  %2843 = vmatprep.subr.mxu0 0.0
  %2844 = vmatpush1.msra.mxu0 0.0
  %2845 = vmatprep.subr.mxu0 0.0
  %2846 = vmatpush1.msra.mxu0 0.0
  %2847 = vmatprep.subr.mxu0 0.0
  %2848 = vmatpush1.msra.mxu0 0.0
  %2849 = vmatprep.subr.mxu0 0.0
  %2850 = vmatpush1.msra.mxu0 0.0
  %2851 = vmatprep.subr.mxu0 0.0
  %2852 = vmatpush1.msra.mxu0 0.0
  %2853 = vmatprep.subr.mxu0 0.0
  %2854 = vmatpush1.msra.mxu0 0.0
  %2855 = vmatprep.subr.mxu0 0.0
  %2856 = vmatpush1.msra.mxu0 0.0
  %2857 = vmatprep.subr.mxu0 0.0
  %2858 = vmatpush1.msra.mxu0 0.0
  %2859 = vmatprep.subr.mxu0 0.0
  %2860 = vmatpush1.msra.mxu0 0.0
  %2861 = vmatprep.subr.mxu0 0.0
  %2862 = vmatpush1.msra.mxu0 0.0
  %2863 = vmatprep.subr.mxu0 0.0
  %2864 = vmatpush1.msra.mxu0 0.0
  %2865 = vmatprep.subr.mxu0 0.0
  %2866 = vmatpush1.msra.mxu0 0.0
  %2867 = vmatprep.subr.mxu0 0.0
  %2868 = vmatpush1.msra.mxu0 0.0
  %2869 = vmatprep.subr.mxu0 0.0
  %2870 = vmatpush1.msra.mxu0 0.0
  %2871 = vmatprep.subr.mxu0 0.0
  %2872 = vmatpush1.msra.mxu0 0.0
  %2873 = vmatprep.subr.mxu0 0.0
  %2874 = vmatpush1.msra.mxu0 0.0
  %2875 = vmatprep.subr.mxu0 0.0
  %2876 = vmatpush1.msra.mxu0 0.0
  %2877 = vmatprep.subr.mxu0 0.0
  %2878 = vmatpush1.msra.mxu0 0.0
  %2879 = vmatprep.subr.mxu0 0.0
  %2880 = vmatpush1.msra.mxu0 0.0
  %2881 = vmatprep.subr.mxu0 0.0
  %2882 = vmatpush1.msra.mxu0 0.0
  %2883 = vmatprep.subr.mxu0 0.0
  %2884 = vmatpush1.msra.mxu0 0.0
  %2885 = vmatprep.subr.mxu0 0.0
  %2886 = vmatpush1.msra.mxu0 0.0
  %2887 = vmatprep.subr.mxu0 0.0
  %2888 = vmatpush1.msra.mxu0 0.0
  %2889 = vmatprep.subr.mxu0 0.0
  %2890 = vmatpush1.msra.mxu0 0.0
  %2891 = vmatprep.subr.mxu0 0.0
  %2892 = vmatpush1.msra.mxu0 0.0
  %2893 = vmatprep.subr.mxu0 0.0
  %2894 = vmatpush1.msra.mxu0 0.0
  %2895 = vmatprep.mubr.f32.mxu0 0.0
  %2896 = vmatmul.mubr.f32.gmra.mrb[0].mxu0 %v2829
  %v2897 = vpop.f32.mrb[0].mxu0
  %v2898 = vadd.f32 0.0, %v2897
  %v2899 = vpop.f32.mrb[0].mxu0
  %2900 = vdwg.mxu0
  %2901 = vrot.lane.b32.xlu0 %v2312, 56
  %v2902 = vpop.permute.xlu0 %2901
  %v2905 = vsel %vm270, %v2824, 0
  %2907 = vmatprep.subr.mxu0 0.0
  %2908 = vmatpush1.msra.mxu0 %v2902
  %2909 = vmatprep.subr.mxu0 0.0
  %2910 = vmatpush1.msra.mxu0 0.0
  %2911 = vmatprep.subr.mxu0 0.0
  %2912 = vmatpush1.msra.mxu0 0.0
  %2913 = vmatprep.subr.mxu0 0.0
  %2914 = vmatpush1.msra.mxu0 0.0
  %2915 = vmatprep.subr.mxu0 0.0
  %2916 = vmatpush1.msra.mxu0 0.0
  %2917 = vmatprep.subr.mxu0 0.0
  %2918 = vmatpush1.msra.mxu0 0.0
  %2919 = vmatprep.subr.mxu0 0.0
  %2920 = vmatpush1.msra.mxu0 0.0
  %2921 = vmatprep.subr.mxu0 0.0
  %2922 = vmatpush1.msra.mxu0 0.0
  %2923 = vmatprep.subr.mxu0 0.0
  %2924 = vmatpush1.msra.mxu0 0.0
  %2925 = vmatprep.subr.mxu0 0.0
  %2926 = vmatpush1.msra.mxu0 0.0
  %2927 = vmatprep.subr.mxu0 0.0
  %2928 = vmatpush1.msra.mxu0 0.0
  %2929 = vmatprep.subr.mxu0 0.0
  %2930 = vmatpush1.msra.mxu0 0.0
  %2931 = vmatprep.subr.mxu0 0.0
  %2932 = vmatpush1.msra.mxu0 0.0
  %2933 = vmatprep.subr.mxu0 0.0
  %2934 = vmatpush1.msra.mxu0 0.0
  %2935 = vmatprep.subr.mxu0 0.0
  %2936 = vmatpush1.msra.mxu0 0.0
  %2937 = vmatprep.subr.mxu0 0.0
  %2938 = vmatpush1.msra.mxu0 0.0
  %2939 = vmatprep.subr.mxu0 0.0
  %2940 = vmatpush1.msra.mxu0 0.0
  %2941 = vmatprep.subr.mxu0 0.0
  %2942 = vmatpush1.msra.mxu0 0.0
  %2943 = vmatprep.subr.mxu0 0.0
  %2944 = vmatpush1.msra.mxu0 0.0
  %2945 = vmatprep.subr.mxu0 0.0
  %2946 = vmatpush1.msra.mxu0 0.0
  %2947 = vmatprep.subr.mxu0 0.0
  %2948 = vmatpush1.msra.mxu0 0.0
  %2949 = vmatprep.subr.mxu0 0.0
  %2950 = vmatpush1.msra.mxu0 0.0
  %2951 = vmatprep.subr.mxu0 0.0
  %2952 = vmatpush1.msra.mxu0 0.0
  %2953 = vmatprep.subr.mxu0 0.0
  %2954 = vmatpush1.msra.mxu0 0.0
  %2955 = vmatprep.subr.mxu0 0.0
  %2956 = vmatpush1.msra.mxu0 0.0
  %2957 = vmatprep.subr.mxu0 0.0
  %2958 = vmatpush1.msra.mxu0 0.0
  %2959 = vmatprep.subr.mxu0 0.0
  %2960 = vmatpush1.msra.mxu0 0.0
  %2961 = vmatprep.subr.mxu0 0.0
  %2962 = vmatpush1.msra.mxu0 0.0
  %2963 = vmatprep.subr.mxu0 0.0
  %2964 = vmatpush1.msra.mxu0 0.0
  %2965 = vmatprep.subr.mxu0 0.0
  %2966 = vmatpush1.msra.mxu0 0.0
  %2967 = vmatprep.subr.mxu0 0.0
  %2968 = vmatpush1.msra.mxu0 0.0
  %2969 = vmatprep.subr.mxu0 0.0
  %2970 = vmatpush1.msra.mxu0 0.0
  %2971 = vmatprep.mubr.f32.mxu0 0.0
  %2972 = vmatmul.mubr.f32.gmra.mrb[0].mxu0 %v2905
  %v2973 = vpop.f32.mrb[0].mxu0
  %v2974 = vadd.f32 0.0, %v2973
  %v2975 = vpop.f32.mrb[0].mxu0
  %2976 = vdwg.mxu0
  %v2978 = vsel %vm270, %v2898, 0
  %v2981 = vsel %vm270, %v2974, 0
  %2983 = vmatprep.subr.mxu0 0.0
  %2984 = vmatpush1.msra.mxu0 %v2223
  %2985 = vmatprep.subr.mxu0 0.0
  %2986 = vmatpush1.msra.mxu0 0.0
  %2987 = vmatprep.subr.mxu0 0.0
  %2988 = vmatpush1.msra.mxu0 0.0
  %2989 = vmatprep.subr.mxu0 0.0
  %2990 = vmatpush1.msra.mxu0 0.0
  %2991 = vmatprep.subr.mxu0 0.0
  %2992 = vmatpush1.msra.mxu0 0.0
  %2993 = vmatprep.subr.mxu0 0.0
  %2994 = vmatpush1.msra.mxu0 0.0
  %2995 = vmatprep.subr.mxu0 0.0
  %2996 = vmatpush1.msra.mxu0 0.0
  %2997 = vmatprep.subr.mxu0 0.0
  %2998 = vmatpush1.msra.mxu0 0.0
  %2999 = vmatprep.subr.mxu0 0.0
  %3000 = vmatpush1.msra.mxu0 0.0
  %3001 = vmatprep.subr.mxu0 0.0
  %3002 = vmatpush1.msra.mxu0 0.0
  %3003 = vmatprep.subr.mxu0 0.0
  %3004 = vmatpush1.msra.mxu0 0.0
  %3005 = vmatprep.subr.mxu0 0.0
  %3006 = vmatpush1.msra.mxu0 0.0
  %3007 = vmatprep.subr.mxu0 0.0
  %3008 = vmatpush1.msra.mxu0 0.0
  %3009 = vmatprep.subr.mxu0 0.0
  %3010 = vmatpush1.msra.mxu0 0.0
  %3011 = vmatprep.subr.mxu0 0.0
  %3012 = vmatpush1.msra.mxu0 0.0
  %3013 = vmatprep.subr.mxu0 0.0
  %3014 = vmatpush1.msra.mxu0 0.0
  %3015 = vmatprep.subr.mxu0 0.0
  %3016 = vmatpush1.msra.mxu0 0.0
  %3017 = vmatprep.subr.mxu0 0.0
  %3018 = vmatpush1.msra.mxu0 0.0
  %3019 = vmatprep.subr.mxu0 0.0
  %3020 = vmatpush1.msra.mxu0 0.0
  %3021 = vmatprep.subr.mxu0 0.0
  %3022 = vmatpush1.msra.mxu0 0.0
  %3023 = vmatprep.subr.mxu0 0.0
  %3024 = vmatpush1.msra.mxu0 0.0
  %3025 = vmatprep.subr.mxu0 0.0
  %3026 = vmatpush1.msra.mxu0 0.0
  %3027 = vmatprep.subr.mxu0 0.0
  %3028 = vmatpush1.msra.mxu0 0.0
  %3029 = vmatprep.subr.mxu0 0.0
  %3030 = vmatpush1.msra.mxu0 0.0
  %3031 = vmatprep.subr.mxu0 0.0
  %3032 = vmatpush1.msra.mxu0 0.0
  %3033 = vmatprep.subr.mxu0 0.0
  %3034 = vmatpush1.msra.mxu0 0.0
  %3035 = vmatprep.subr.mxu0 0.0
  %3036 = vmatpush1.msra.mxu0 0.0
  %3037 = vmatprep.subr.mxu0 0.0
  %3038 = vmatpush1.msra.mxu0 0.0
  %3039 = vmatprep.subr.mxu0 0.0
  %3040 = vmatpush1.msra.mxu0 0.0
  %3041 = vmatprep.subr.mxu0 0.0
  %3042 = vmatpush1.msra.mxu0 0.0
  %3043 = vmatprep.subr.mxu0 0.0
  %3044 = vmatpush1.msra.mxu0 0.0
  %3045 = vmatprep.subr.mxu0 0.0
  %3046 = vmatpush1.msra.mxu0 0.0
  %3047 = vmatprep.mubr.f32.mxu0 0.0
  %3048 = vmatmul.mubr.f32.gmra.mrb[0].mxu0 %v2978
  %v3049 = vpop.f32.mrb[0].mxu0
  %v3050 = vadd.f32 0.0, %v3049
  %v3051 = vpop.f32.mrb[0].mxu0
  %3052 = vmatprep.mubr.f32.mxu0 0.0
  %3053 = vmatmul.mubr.f32.gmra.mrb[0].mxu0 %v2981
  %v3054 = vpop.f32.mrb[0].mxu0
  %v3055 = vadd.f32 0.0, %v3054
  %v3056 = vpop.f32.mrb[0].mxu0
  %3057 = vdwg.mxu0
  %v3059 = vsel %vm270, %v2566, 0
  %v3062 = vsel %vm270, %v2642, 0
  %3064 = vmatprep.subr.mxu0 0.0
  %3065 = vmatpush1.msra.mxu0 %v2222
  %3066 = vmatprep.subr.mxu0 0.0
  %3067 = vmatpush1.msra.mxu0 0.0
  %3068 = vmatprep.subr.mxu0 0.0
  %3069 = vmatpush1.msra.mxu0 0.0
  %3070 = vmatprep.subr.mxu0 0.0
  %3071 = vmatpush1.msra.mxu0 0.0
  %3072 = vmatprep.subr.mxu0 0.0
  %3073 = vmatpush1.msra.mxu0 0.0
  %3074 = vmatprep.subr.mxu0 0.0
  %3075 = vmatpush1.msra.mxu0 0.0
  %3076 = vmatprep.subr.mxu0 0.0
  %3077 = vmatpush1.msra.mxu0 0.0
  %3078 = vmatprep.subr.mxu0 0.0
  %3079 = vmatpush1.msra.mxu0 0.0
  %3080 = vmatprep.subr.mxu0 0.0
  %3081 = vmatpush1.msra.mxu0 0.0
  %3082 = vmatprep.subr.mxu0 0.0
  %3083 = vmatpush1.msra.mxu0 0.0
  %3084 = vmatprep.subr.mxu0 0.0
  %3085 = vmatpush1.msra.mxu0 0.0
  %3086 = vmatprep.subr.mxu0 0.0
  %3087 = vmatpush1.msra.mxu0 0.0
  %3088 = vmatprep.subr.mxu0 0.0
  %3089 = vmatpush1.msra.mxu0 0.0
  %3090 = vmatprep.subr.mxu0 0.0
  %3091 = vmatpush1.msra.mxu0 0.0
  %3092 = vmatprep.subr.mxu0 0.0
  %3093 = vmatpush1.msra.mxu0 0.0
  %3094 = vmatprep.subr.mxu0 0.0
  %3095 = vmatpush1.msra.mxu0 0.0
  %3096 = vmatprep.subr.mxu0 0.0
  %3097 = vmatpush1.msra.mxu0 0.0
  %3098 = vmatprep.subr.mxu0 0.0
  %3099 = vmatpush1.msra.mxu0 0.0
  %3100 = vmatprep.subr.mxu0 0.0
  %3101 = vmatpush1.msra.mxu0 0.0
  %3102 = vmatprep.subr.mxu0 0.0
  %3103 = vmatpush1.msra.mxu0 0.0
  %3104 = vmatprep.subr.mxu0 0.0
  %3105 = vmatpush1.msra.mxu0 0.0
  %3106 = vmatprep.subr.mxu0 0.0
  %3107 = vmatpush1.msra.mxu0 0.0
  %3108 = vmatprep.subr.mxu0 0.0
  %3109 = vmatpush1.msra.mxu0 0.0
  %3110 = vmatprep.subr.mxu0 0.0
  %3111 = vmatpush1.msra.mxu0 0.0
  %3112 = vmatprep.subr.mxu0 0.0
  %3113 = vmatpush1.msra.mxu0 0.0
  %3114 = vmatprep.subr.mxu0 0.0
  %3115 = vmatpush1.msra.mxu0 0.0
  %3116 = vmatprep.subr.mxu0 0.0
  %3117 = vmatpush1.msra.mxu0 0.0
  %3118 = vmatprep.subr.mxu0 0.0
  %3119 = vmatpush1.msra.mxu0 0.0
  %3120 = vmatprep.subr.mxu0 0.0
  %3121 = vmatpush1.msra.mxu0 0.0
  %3122 = vmatprep.subr.mxu0 0.0
  %3123 = vmatpush1.msra.mxu0 0.0
  %3124 = vmatprep.subr.mxu0 0.0
  %3125 = vmatpush1.msra.mxu0 0.0
  %3126 = vmatprep.subr.mxu0 0.0
  %3127 = vmatpush1.msra.mxu0 0.0
  %3128 = vmatprep.mubr.f32.mxu0 0.0
  %3129 = vmatmul.mubr.f32.gmra.mrb[0].mxu0 %v3059
  %v3130 = vpop.f32.mrb[0].mxu0
  %v3131 = vadd.f32 %v3050, %v3130
  %v3132 = vpop.f32.mrb[0].mxu0
  %3133 = vmatprep.mubr.f32.mxu0 0.0
  %3134 = vmatmul.mubr.f32.gmra.mrb[0].mxu0 %v3062
  %v3135 = vpop.f32.mrb[0].mxu0
  %v3136 = vadd.f32 %v3055, %v3135
  %v3137 = vpop.f32.mrb[0].mxu0
  %3138 = vdwg.mxu0
  %3139 = vrot.lane.b32.xlu0 %v2307, 112
  %v3140 = vpop.permute.xlu0 %3139
  %3141 = vrot.lane.b32.xlu0 %v2307, 80
  %v3142 = vpop.permute.xlu0 %3141
  %v3143 = vsel %vm270, %v3140, 0
  %v3145 = vsel %vm270, %v3142, 0
  %3147 = vmatprep.subr.mxu0 0.0
  %3148 = vmatpush1.xpose.msra.mxu0 %v3145
  %3149 = vmatprep.subr.mxu0 0.0
  %3150 = vmatpush1.xpose.msra.mxu0 0.0
  %3151 = vmatprep.subr.mxu0 0.0
  %3152 = vmatpush1.xpose.msra.mxu0 0.0
  %3153 = vmatprep.subr.mxu0 0.0
  %3154 = vmatpush1.xpose.msra.mxu0 0.0
  %3155 = vmatprep.subr.mxu0 0.0
  %3156 = vmatpush1.xpose.msra.mxu0 0.0
  %3157 = vmatprep.subr.mxu0 0.0
  %3158 = vmatpush1.xpose.msra.mxu0 0.0
  %3159 = vmatprep.subr.mxu0 0.0
  %3160 = vmatpush1.xpose.msra.mxu0 0.0
  %3161 = vmatprep.subr.mxu0 0.0
  %3162 = vmatpush1.xpose.msra.mxu0 0.0
  %3163 = vmatprep.subr.mxu0 0.0
  %3164 = vmatpush1.xpose.msra.mxu0 0.0
  %3165 = vmatprep.subr.mxu0 0.0
  %3166 = vmatpush1.xpose.msra.mxu0 0.0
  %3167 = vmatprep.subr.mxu0 0.0
  %3168 = vmatpush1.xpose.msra.mxu0 0.0
  %3169 = vmatprep.subr.mxu0 0.0
  %3170 = vmatpush1.xpose.msra.mxu0 0.0
  %3171 = vmatprep.subr.mxu0 0.0
  %3172 = vmatpush1.xpose.msra.mxu0 0.0
  %3173 = vmatprep.subr.mxu0 0.0
  %3174 = vmatpush1.xpose.msra.mxu0 0.0
  %3175 = vmatprep.subr.mxu0 0.0
  %3176 = vmatpush1.xpose.msra.mxu0 0.0
  %3177 = vmatprep.subr.mxu0 0.0
  %3178 = vmatpush1.xpose.msra.mxu0 0.0
  %3179 = vmatprep.subr.mxu0 0.0
  %3180 = vmatpush1.xpose.msra.mxu0 0.0
  %3181 = vmatprep.subr.mxu0 0.0
  %3182 = vmatpush1.xpose.msra.mxu0 0.0
  %3183 = vmatprep.subr.mxu0 0.0
  %3184 = vmatpush1.xpose.msra.mxu0 0.0
  %3185 = vmatprep.subr.mxu0 0.0
  %3186 = vmatpush1.xpose.msra.mxu0 0.0
  %3187 = vmatprep.subr.mxu0 0.0
  %3188 = vmatpush1.xpose.msra.mxu0 0.0
  %3189 = vmatprep.subr.mxu0 0.0
  %3190 = vmatpush1.xpose.msra.mxu0 0.0
  %3191 = vmatprep.subr.mxu0 0.0
  %3192 = vmatpush1.xpose.msra.mxu0 0.0
  %3193 = vmatprep.subr.mxu0 0.0
  %3194 = vmatpush1.xpose.msra.mxu0 0.0
  %3195 = vmatprep.subr.mxu0 0.0
  %3196 = vmatpush1.xpose.msra.mxu0 0.0
  %3197 = vmatprep.subr.mxu0 0.0
  %3198 = vmatpush1.xpose.msra.mxu0 0.0
  %3199 = vmatprep.subr.mxu0 0.0
  %3200 = vmatpush1.xpose.msra.mxu0 0.0
  %3201 = vmatprep.subr.mxu0 0.0
  %3202 = vmatpush1.xpose.msra.mxu0 0.0
  %3203 = vmatprep.subr.mxu0 0.0
  %3204 = vmatpush1.xpose.msra.mxu0 0.0
  %3205 = vmatprep.subr.mxu0 0.0
  %3206 = vmatpush1.xpose.msra.mxu0 0.0
  %3207 = vmatprep.subr.mxu0 0.0
  %3208 = vmatpush1.xpose.msra.mxu0 0.0
  %3209 = vmatprep.subr.mxu0 0.0
  %3210 = vmatpush1.xpose.msra.mxu0 0.0
  %3211 = vmatprep.mubr.f32.mxu0 0.0
  %3212 = vmatmul.mubr.f32.gmra.mrb[0].mxu0 %v3143
  %v3213 = vpop.f32.mrb[0].mxu0
  %v3214 = vadd.f32 0.0, %v3213
  %v3215 = vpop.f32.mrb[0].mxu0
  %3216 = vdwg.mxu0
  %3217 = vrot.lane.b32.xlu0 %v2312, 112
  %v3218 = vpop.permute.xlu0 %3217
  %3219 = vrot.lane.b32.xlu0 %v2312, 80
  %v3220 = vpop.permute.xlu0 %3219
  %v3221 = vsel %vm270, %v3218, 0
  %v3223 = vsel %vm270, %v3220, 0
  %3225 = vmatprep.subr.mxu0 0.0
  %3226 = vmatpush1.xpose.msra.mxu0 %v3223
  %3227 = vmatprep.subr.mxu0 0.0
  %3228 = vmatpush1.xpose.msra.mxu0 0.0
  %3229 = vmatprep.subr.mxu0 0.0
  %3230 = vmatpush1.xpose.msra.mxu0 0.0
  %3231 = vmatprep.subr.mxu0 0.0
  %3232 = vmatpush1.xpose.msra.mxu0 0.0
  %3233 = vmatprep.subr.mxu0 0.0
  %3234 = vmatpush1.xpose.msra.mxu0 0.0
  %3235 = vmatprep.subr.mxu0 0.0
  %3236 = vmatpush1.xpose.msra.mxu0 0.0
  %3237 = vmatprep.subr.mxu0 0.0
  %3238 = vmatpush1.xpose.msra.mxu0 0.0
  %3239 = vmatprep.subr.mxu0 0.0
  %3240 = vmatpush1.xpose.msra.mxu0 0.0
  %3241 = vmatprep.subr.mxu0 0.0
  %3242 = vmatpush1.xpose.msra.mxu0 0.0
  %3243 = vmatprep.subr.mxu0 0.0
  %3244 = vmatpush1.xpose.msra.mxu0 0.0
  %3245 = vmatprep.subr.mxu0 0.0
  %3246 = vmatpush1.xpose.msra.mxu0 0.0
  %3247 = vmatprep.subr.mxu0 0.0
  %3248 = vmatpush1.xpose.msra.mxu0 0.0
  %3249 = vmatprep.subr.mxu0 0.0
  %3250 = vmatpush1.xpose.msra.mxu0 0.0
  %3251 = vmatprep.subr.mxu0 0.0
  %3252 = vmatpush1.xpose.msra.mxu0 0.0
  %3253 = vmatprep.subr.mxu0 0.0
  %3254 = vmatpush1.xpose.msra.mxu0 0.0
  %3255 = vmatprep.subr.mxu0 0.0
  %3256 = vmatpush1.xpose.msra.mxu0 0.0
  %3257 = vmatprep.subr.mxu0 0.0
  %3258 = vmatpush1.xpose.msra.mxu0 0.0
  %3259 = vmatprep.subr.mxu0 0.0
  %3260 = vmatpush1.xpose.msra.mxu0 0.0
  %3261 = vmatprep.subr.mxu0 0.0
  %3262 = vmatpush1.xpose.msra.mxu0 0.0
  %3263 = vmatprep.subr.mxu0 0.0
  %3264 = vmatpush1.xpose.msra.mxu0 0.0
  %3265 = vmatprep.subr.mxu0 0.0
  %3266 = vmatpush1.xpose.msra.mxu0 0.0
  %3267 = vmatprep.subr.mxu0 0.0
  %3268 = vmatpush1.xpose.msra.mxu0 0.0
  %3269 = vmatprep.subr.mxu0 0.0
  %3270 = vmatpush1.xpose.msra.mxu0 0.0
  %3271 = vmatprep.subr.mxu0 0.0
  %3272 = vmatpush1.xpose.msra.mxu0 0.0
  %3273 = vmatprep.subr.mxu0 0.0
  %3274 = vmatpush1.xpose.msra.mxu0 0.0
  %3275 = vmatprep.subr.mxu0 0.0
  %3276 = vmatpush1.xpose.msra.mxu0 0.0
  %3277 = vmatprep.subr.mxu0 0.0
  %3278 = vmatpush1.xpose.msra.mxu0 0.0
  %3279 = vmatprep.subr.mxu0 0.0
  %3280 = vmatpush1.xpose.msra.mxu0 0.0
  %3281 = vmatprep.subr.mxu0 0.0
  %3282 = vmatpush1.xpose.msra.mxu0 0.0
  %3283 = vmatprep.subr.mxu0 0.0
  %3284 = vmatpush1.xpose.msra.mxu0 0.0
  %3285 = vmatprep.subr.mxu0 0.0
  %3286 = vmatpush1.xpose.msra.mxu0 0.0
  %3287 = vmatprep.subr.mxu0 0.0
  %3288 = vmatpush1.xpose.msra.mxu0 0.0
  %3289 = vmatprep.mubr.f32.mxu0 0.0
  %3290 = vmatmul.mubr.f32.gmra.mrb[0].mxu0 %v3221
  %v3291 = vpop.f32.mrb[0].mxu0
  %v3292 = vadd.f32 0.0, %v3291
  %v3293 = vpop.f32.mrb[0].mxu0
  %3294 = vdwg.mxu0
  %v3295 = vmul.f32 %v3214, 0.35355338
  %v3296 = vmul.f32 %v3292, 0.35355338
  %v3297 = vsel %vm270, %v3295, -inf
  %3298 = vmax.xlane.f32.xlu0 %v3297
  %v3299 = vpop.xlane.xlu0 %3298
  %v3300 = vsel %vm270, %v3296, -inf
  %3301 = vmax.xlane.f32.xlu0 %v3300
  %v3302 = vpop.xlane.xlu0 %3301
  %v3303 = vsub.f32 %v3295, %v3299
  %v3304 = vsub.f32 %v3296, %v3302
  %v3305 = vmul.f32 %v3303, 1.442695
  %v3306 = vpow.pop %v3305
  %v3307 = vmul.f32 %v3304, 1.442695
  %v3308 = vpow.pop %v3307
  %v3309 = vsel %vm270, %v3306, 0.0
  %3310 = vadd.xlane.f32.xlu0 %v3309
  %v3311 = vpop.xlane.xlu0 %3310
  %v3312 = vsel %vm270, %v3308, 0.0
  %3313 = vadd.xlane.f32.xlu0 %v3312
  %v3314 = vpop.xlane.xlu0 %3313
  %v3315 = vrcp.pop %v3311
  %v3316 = vrcp.pop %v3314
  %v3317 = vmul.f32 %v3306, %v3315
  %v3318 = vmul.f32 %v3308, %v3316
  %3319 = vrot.lane.b32.xlu0 %v2307, 48
  %v3320 = vpop.permute.xlu0 %3319
  %v3323 = vsel %vm270, %v3317, 0
  %3325 = vmatprep.subr.mxu0 0.0
  %3326 = vmatpush1.msra.mxu0 %v3320
  %3327 = vmatprep.subr.mxu0 0.0
  %3328 = vmatpush1.msra.mxu0 0.0
  %3329 = vmatprep.subr.mxu0 0.0
  %3330 = vmatpush1.msra.mxu0 0.0
  %3331 = vmatprep.subr.mxu0 0.0
  %3332 = vmatpush1.msra.mxu0 0.0
  %3333 = vmatprep.subr.mxu0 0.0
  %3334 = vmatpush1.msra.mxu0 0.0
  %3335 = vmatprep.subr.mxu0 0.0
  %3336 = vmatpush1.msra.mxu0 0.0
  %3337 = vmatprep.subr.mxu0 0.0
  %3338 = vmatpush1.msra.mxu0 0.0
  %3339 = vmatprep.subr.mxu0 0.0
  %3340 = vmatpush1.msra.mxu0 0.0
  %3341 = vmatprep.subr.mxu0 0.0
  %3342 = vmatpush1.msra.mxu0 0.0
  %3343 = vmatprep.subr.mxu0 0.0
  %3344 = vmatpush1.msra.mxu0 0.0
  %3345 = vmatprep.subr.mxu0 0.0
  %3346 = vmatpush1.msra.mxu0 0.0
  %3347 = vmatprep.subr.mxu0 0.0
  %3348 = vmatpush1.msra.mxu0 0.0
  %3349 = vmatprep.subr.mxu0 0.0
  %3350 = vmatpush1.msra.mxu0 0.0
  %3351 = vmatprep.subr.mxu0 0.0
  %3352 = vmatpush1.msra.mxu0 0.0
  %3353 = vmatprep.subr.mxu0 0.0
  %3354 = vmatpush1.msra.mxu0 0.0
  %3355 = vmatprep.subr.mxu0 0.0
  %3356 = vmatpush1.msra.mxu0 0.0
  %3357 = vmatprep.subr.mxu0 0.0
  %3358 = vmatpush1.msra.mxu0 0.0
  %3359 = vmatprep.subr.mxu0 0.0
  %3360 = vmatpush1.msra.mxu0 0.0
  %3361 = vmatprep.subr.mxu0 0.0
  %3362 = vmatpush1.msra.mxu0 0.0
  %3363 = vmatprep.subr.mxu0 0.0
  %3364 = vmatpush1.msra.mxu0 0.0
  %3365 = vmatprep.subr.mxu0 0.0
  %3366 = vmatpush1.msra.mxu0 0.0
  %3367 = vmatprep.subr.mxu0 0.0
  %3368 = vmatpush1.msra.mxu0 0.0
  %3369 = vmatprep.subr.mxu0 0.0
  %3370 = vmatpush1.msra.mxu0 0.0
  %3371 = vmatprep.subr.mxu0 0.0
  %3372 = vmatpush1.msra.mxu0 0.0
  %3373 = vmatprep.subr.mxu0 0.0
  %3374 = vmatpush1.msra.mxu0 0.0
  %3375 = vmatprep.subr.mxu0 0.0
  %3376 = vmatpush1.msra.mxu0 0.0
  %3377 = vmatprep.subr.mxu0 0.0
  %3378 = vmatpush1.msra.mxu0 0.0
  %3379 = vmatprep.subr.mxu0 0.0
  %3380 = vmatpush1.msra.mxu0 0.0
  %3381 = vmatprep.subr.mxu0 0.0
  %3382 = vmatpush1.msra.mxu0 0.0
  %3383 = vmatprep.subr.mxu0 0.0
  %3384 = vmatpush1.msra.mxu0 0.0
  %3385 = vmatprep.subr.mxu0 0.0
  %3386 = vmatpush1.msra.mxu0 0.0
  %3387 = vmatprep.subr.mxu0 0.0
  %3388 = vmatpush1.msra.mxu0 0.0
  %3389 = vmatprep.mubr.f32.mxu0 0.0
  %3390 = vmatmul.mubr.f32.gmra.mrb[0].mxu0 %v3323
  %v3391 = vpop.f32.mrb[0].mxu0
  %v3392 = vadd.f32 0.0, %v3391
  %v3393 = vpop.f32.mrb[0].mxu0
  %3394 = vdwg.mxu0
  %3395 = vrot.lane.b32.xlu0 %v2312, 48
  %v3396 = vpop.permute.xlu0 %3395
  %v3399 = vsel %vm270, %v3318, 0
  %3401 = vmatprep.subr.mxu0 0.0
  %3402 = vmatpush1.msra.mxu0 %v3396
  %3403 = vmatprep.subr.mxu0 0.0
  %3404 = vmatpush1.msra.mxu0 0.0
  %3405 = vmatprep.subr.mxu0 0.0
  %3406 = vmatpush1.msra.mxu0 0.0
  %3407 = vmatprep.subr.mxu0 0.0
  %3408 = vmatpush1.msra.mxu0 0.0
  %3409 = vmatprep.subr.mxu0 0.0
  %3410 = vmatpush1.msra.mxu0 0.0
  %3411 = vmatprep.subr.mxu0 0.0
  %3412 = vmatpush1.msra.mxu0 0.0
  %3413 = vmatprep.subr.mxu0 0.0
  %3414 = vmatpush1.msra.mxu0 0.0
  %3415 = vmatprep.subr.mxu0 0.0
  %3416 = vmatpush1.msra.mxu0 0.0
  %3417 = vmatprep.subr.mxu0 0.0
  %3418 = vmatpush1.msra.mxu0 0.0
  %3419 = vmatprep.subr.mxu0 0.0
  %3420 = vmatpush1.msra.mxu0 0.0
  %3421 = vmatprep.subr.mxu0 0.0
  %3422 = vmatpush1.msra.mxu0 0.0
  %3423 = vmatprep.subr.mxu0 0.0
  %3424 = vmatpush1.msra.mxu0 0.0
  %3425 = vmatprep.subr.mxu0 0.0
  %3426 = vmatpush1.msra.mxu0 0.0
  %3427 = vmatprep.subr.mxu0 0.0
  %3428 = vmatpush1.msra.mxu0 0.0
  %3429 = vmatprep.subr.mxu0 0.0
  %3430 = vmatpush1.msra.mxu0 0.0
  %3431 = vmatprep.subr.mxu0 0.0
  %3432 = vmatpush1.msra.mxu0 0.0
  %3433 = vmatprep.subr.mxu0 0.0
  %3434 = vmatpush1.msra.mxu0 0.0
  %3435 = vmatprep.subr.mxu0 0.0
  %3436 = vmatpush1.msra.mxu0 0.0
  %3437 = vmatprep.subr.mxu0 0.0
  %3438 = vmatpush1.msra.mxu0 0.0
  %3439 = vmatprep.subr.mxu0 0.0
  %3440 = vmatpush1.msra.mxu0 0.0
  %3441 = vmatprep.subr.mxu0 0.0
  %3442 = vmatpush1.msra.mxu0 0.0
  %3443 = vmatprep.subr.mxu0 0.0
  %3444 = vmatpush1.msra.mxu0 0.0
  %3445 = vmatprep.subr.mxu0 0.0
  %3446 = vmatpush1.msra.mxu0 0.0
  %3447 = vmatprep.subr.mxu0 0.0
  %3448 = vmatpush1.msra.mxu0 0.0
  %3449 = vmatprep.subr.mxu0 0.0
  %3450 = vmatpush1.msra.mxu0 0.0
  %3451 = vmatprep.subr.mxu0 0.0
  %3452 = vmatpush1.msra.mxu0 0.0
  %3453 = vmatprep.subr.mxu0 0.0
  %3454 = vmatpush1.msra.mxu0 0.0
  %3455 = vmatprep.subr.mxu0 0.0
  %3456 = vmatpush1.msra.mxu0 0.0
  %3457 = vmatprep.subr.mxu0 0.0
  %3458 = vmatpush1.msra.mxu0 0.0
  %3459 = vmatprep.subr.mxu0 0.0
  %3460 = vmatpush1.msra.mxu0 0.0
  %3461 = vmatprep.subr.mxu0 0.0
  %3462 = vmatpush1.msra.mxu0 0.0
  %3463 = vmatprep.subr.mxu0 0.0
  %3464 = vmatpush1.msra.mxu0 0.0
  %3465 = vmatprep.mubr.f32.mxu0 0.0
  %3466 = vmatmul.mubr.f32.gmra.mrb[0].mxu0 %v3399
  %v3467 = vpop.f32.mrb[0].mxu0
  %v3468 = vadd.f32 0.0, %v3467
  %v3469 = vpop.f32.mrb[0].mxu0
  %3470 = vdwg.mxu0
  %v3472 = vsel %vm270, %v3392, 0
  %v3475 = vsel %vm270, %v3468, 0
  %3477 = vmatprep.subr.mxu0 0.0
  %3478 = vmatpush1.msra.mxu0 %v2224
  %3479 = vmatprep.subr.mxu0 0.0
  %3480 = vmatpush1.msra.mxu0 0.0
  %3481 = vmatprep.subr.mxu0 0.0
  %3482 = vmatpush1.msra.mxu0 0.0
  %3483 = vmatprep.subr.mxu0 0.0
  %3484 = vmatpush1.msra.mxu0 0.0
  %3485 = vmatprep.subr.mxu0 0.0
  %3486 = vmatpush1.msra.mxu0 0.0
  %3487 = vmatprep.subr.mxu0 0.0
  %3488 = vmatpush1.msra.mxu0 0.0
  %3489 = vmatprep.subr.mxu0 0.0
  %3490 = vmatpush1.msra.mxu0 0.0
  %3491 = vmatprep.subr.mxu0 0.0
  %3492 = vmatpush1.msra.mxu0 0.0
  %3493 = vmatprep.subr.mxu0 0.0
  %3494 = vmatpush1.msra.mxu0 0.0
  %3495 = vmatprep.subr.mxu0 0.0
  %3496 = vmatpush1.msra.mxu0 0.0
  %3497 = vmatprep.subr.mxu0 0.0
  %3498 = vmatpush1.msra.mxu0 0.0
  %3499 = vmatprep.subr.mxu0 0.0
  %3500 = vmatpush1.msra.mxu0 0.0
  %3501 = vmatprep.subr.mxu0 0.0
  %3502 = vmatpush1.msra.mxu0 0.0
  %3503 = vmatprep.subr.mxu0 0.0
  %3504 = vmatpush1.msra.mxu0 0.0
  %3505 = vmatprep.subr.mxu0 0.0
  %3506 = vmatpush1.msra.mxu0 0.0
  %3507 = vmatprep.subr.mxu0 0.0
  %3508 = vmatpush1.msra.mxu0 0.0
  %3509 = vmatprep.subr.mxu0 0.0
  %3510 = vmatpush1.msra.mxu0 0.0
  %3511 = vmatprep.subr.mxu0 0.0
  %3512 = vmatpush1.msra.mxu0 0.0
  %3513 = vmatprep.subr.mxu0 0.0
  %3514 = vmatpush1.msra.mxu0 0.0
  %3515 = vmatprep.subr.mxu0 0.0
  %3516 = vmatpush1.msra.mxu0 0.0
  %3517 = vmatprep.subr.mxu0 0.0
  %3518 = vmatpush1.msra.mxu0 0.0
  %3519 = vmatprep.subr.mxu0 0.0
  %3520 = vmatpush1.msra.mxu0 0.0
  %3521 = vmatprep.subr.mxu0 0.0
  %3522 = vmatpush1.msra.mxu0 0.0
  %3523 = vmatprep.subr.mxu0 0.0
  %3524 = vmatpush1.msra.mxu0 0.0
  %3525 = vmatprep.subr.mxu0 0.0
  %3526 = vmatpush1.msra.mxu0 0.0
  %3527 = vmatprep.subr.mxu0 0.0
  %3528 = vmatpush1.msra.mxu0 0.0
  %3529 = vmatprep.subr.mxu0 0.0
  %3530 = vmatpush1.msra.mxu0 0.0
  %3531 = vmatprep.subr.mxu0 0.0
  %3532 = vmatpush1.msra.mxu0 0.0
  %3533 = vmatprep.subr.mxu0 0.0
  %3534 = vmatpush1.msra.mxu0 0.0
  %3535 = vmatprep.subr.mxu0 0.0
  %3536 = vmatpush1.msra.mxu0 0.0
  %3537 = vmatprep.subr.mxu0 0.0
  %3538 = vmatpush1.msra.mxu0 0.0
  %3539 = vmatprep.subr.mxu0 0.0
  %3540 = vmatpush1.msra.mxu0 0.0
  %3541 = vmatprep.mubr.f32.mxu0 0.0
  %3542 = vmatmul.mubr.f32.gmra.mrb[0].mxu0 %v3472
  %v3543 = vpop.f32.mrb[0].mxu0
  %v3544 = vadd.f32 0.0, %v3543
  %v3545 = vpop.f32.mrb[0].mxu0
  %3546 = vmatprep.mubr.f32.mxu0 0.0
  %3547 = vmatmul.mubr.f32.gmra.mrb[0].mxu0 %v3475
  %v3548 = vpop.f32.mrb[0].mxu0
  %v3549 = vadd.f32 0.0, %v3548
  %v3550 = vpop.f32.mrb[0].mxu0
  %3551 = vdwg.mxu0
  %v3552 = vadd.f32 %v3131, %v3544
  %v3553 = vadd.f32 %v3136, %v3549
  %3554 = vrot.lane.b32.xlu0 %v2307, 104
  %v3555 = vpop.permute.xlu0 %3554
  %3556 = vrot.lane.b32.xlu0 %v2307, 72
  %v3557 = vpop.permute.xlu0 %3556
  %v3558 = vsel %vm270, %v3555, 0
  %v3560 = vsel %vm270, %v3557, 0
  %3562 = vmatprep.subr.mxu0 0.0
  %3563 = vmatpush1.xpose.msra.mxu0 %v3560
  %3564 = vmatprep.subr.mxu0 0.0
  %3565 = vmatpush1.xpose.msra.mxu0 0.0
  %3566 = vmatprep.subr.mxu0 0.0
  %3567 = vmatpush1.xpose.msra.mxu0 0.0
  %3568 = vmatprep.subr.mxu0 0.0
  %3569 = vmatpush1.xpose.msra.mxu0 0.0
  %3570 = vmatprep.subr.mxu0 0.0
  %3571 = vmatpush1.xpose.msra.mxu0 0.0
  %3572 = vmatprep.subr.mxu0 0.0
  %3573 = vmatpush1.xpose.msra.mxu0 0.0
  %3574 = vmatprep.subr.mxu0 0.0
  %3575 = vmatpush1.xpose.msra.mxu0 0.0
  %3576 = vmatprep.subr.mxu0 0.0
  %3577 = vmatpush1.xpose.msra.mxu0 0.0
  %3578 = vmatprep.subr.mxu0 0.0
  %3579 = vmatpush1.xpose.msra.mxu0 0.0
  %3580 = vmatprep.subr.mxu0 0.0
  %3581 = vmatpush1.xpose.msra.mxu0 0.0
  %3582 = vmatprep.subr.mxu0 0.0
  %3583 = vmatpush1.xpose.msra.mxu0 0.0
  %3584 = vmatprep.subr.mxu0 0.0
  %3585 = vmatpush1.xpose.msra.mxu0 0.0
  %3586 = vmatprep.subr.mxu0 0.0
  %3587 = vmatpush1.xpose.msra.mxu0 0.0
  %3588 = vmatprep.subr.mxu0 0.0
  %3589 = vmatpush1.xpose.msra.mxu0 0.0
  %3590 = vmatprep.subr.mxu0 0.0
  %3591 = vmatpush1.xpose.msra.mxu0 0.0
  %3592 = vmatprep.subr.mxu0 0.0
  %3593 = vmatpush1.xpose.msra.mxu0 0.0
  %3594 = vmatprep.subr.mxu0 0.0
  %3595 = vmatpush1.xpose.msra.mxu0 0.0
  %3596 = vmatprep.subr.mxu0 0.0
  %3597 = vmatpush1.xpose.msra.mxu0 0.0
  %3598 = vmatprep.subr.mxu0 0.0
  %3599 = vmatpush1.xpose.msra.mxu0 0.0
  %3600 = vmatprep.subr.mxu0 0.0
  %3601 = vmatpush1.xpose.msra.mxu0 0.0
  %3602 = vmatprep.subr.mxu0 0.0
  %3603 = vmatpush1.xpose.msra.mxu0 0.0
  %3604 = vmatprep.subr.mxu0 0.0
  %3605 = vmatpush1.xpose.msra.mxu0 0.0
  %3606 = vmatprep.subr.mxu0 0.0
  %3607 = vmatpush1.xpose.msra.mxu0 0.0
  %3608 = vmatprep.subr.mxu0 0.0
  %3609 = vmatpush1.xpose.msra.mxu0 0.0
  %3610 = vmatprep.subr.mxu0 0.0
  %3611 = vmatpush1.xpose.msra.mxu0 0.0
  %3612 = vmatprep.subr.mxu0 0.0
  %3613 = vmatpush1.xpose.msra.mxu0 0.0
  %3614 = vmatprep.subr.mxu0 0.0
  %3615 = vmatpush1.xpose.msra.mxu0 0.0
  %3616 = vmatprep.subr.mxu0 0.0
  %3617 = vmatpush1.xpose.msra.mxu0 0.0
  %3618 = vmatprep.subr.mxu0 0.0
  %3619 = vmatpush1.xpose.msra.mxu0 0.0
  %3620 = vmatprep.subr.mxu0 0.0
  %3621 = vmatpush1.xpose.msra.mxu0 0.0
  %3622 = vmatprep.subr.mxu0 0.0
  %3623 = vmatpush1.xpose.msra.mxu0 0.0
  %3624 = vmatprep.subr.mxu0 0.0
  %3625 = vmatpush1.xpose.msra.mxu0 0.0
  %3626 = vmatprep.mubr.f32.mxu0 0.0
  %3627 = vmatmul.mubr.f32.gmra.mrb[0].mxu0 %v3558
  %v3628 = vpop.f32.mrb[0].mxu0
  %v3629 = vadd.f32 0.0, %v3628
  %v3630 = vpop.f32.mrb[0].mxu0
  %3631 = vdwg.mxu0
  %3632 = vrot.lane.b32.xlu0 %v2312, 104
  %v3633 = vpop.permute.xlu0 %3632
  %3634 = vrot.lane.b32.xlu0 %v2312, 72
  %v3635 = vpop.permute.xlu0 %3634
  %v3636 = vsel %vm270, %v3633, 0
  %v3638 = vsel %vm270, %v3635, 0
  %3640 = vmatprep.subr.mxu0 0.0
  %3641 = vmatpush1.xpose.msra.mxu0 %v3638
  %3642 = vmatprep.subr.mxu0 0.0
  %3643 = vmatpush1.xpose.msra.mxu0 0.0
  %3644 = vmatprep.subr.mxu0 0.0
  %3645 = vmatpush1.xpose.msra.mxu0 0.0
  %3646 = vmatprep.subr.mxu0 0.0
  %3647 = vmatpush1.xpose.msra.mxu0 0.0
  %3648 = vmatprep.subr.mxu0 0.0
  %3649 = vmatpush1.xpose.msra.mxu0 0.0
  %3650 = vmatprep.subr.mxu0 0.0
  %3651 = vmatpush1.xpose.msra.mxu0 0.0
  %3652 = vmatprep.subr.mxu0 0.0
  %3653 = vmatpush1.xpose.msra.mxu0 0.0
  %3654 = vmatprep.subr.mxu0 0.0
  %3655 = vmatpush1.xpose.msra.mxu0 0.0
  %3656 = vmatprep.subr.mxu0 0.0
  %3657 = vmatpush1.xpose.msra.mxu0 0.0
  %3658 = vmatprep.subr.mxu0 0.0
  %3659 = vmatpush1.xpose.msra.mxu0 0.0
  %3660 = vmatprep.subr.mxu0 0.0
  %3661 = vmatpush1.xpose.msra.mxu0 0.0
  %3662 = vmatprep.subr.mxu0 0.0
  %3663 = vmatpush1.xpose.msra.mxu0 0.0
  %3664 = vmatprep.subr.mxu0 0.0
  %3665 = vmatpush1.xpose.msra.mxu0 0.0
  %3666 = vmatprep.subr.mxu0 0.0
  %3667 = vmatpush1.xpose.msra.mxu0 0.0
  %3668 = vmatprep.subr.mxu0 0.0
  %3669 = vmatpush1.xpose.msra.mxu0 0.0
  %3670 = vmatprep.subr.mxu0 0.0
  %3671 = vmatpush1.xpose.msra.mxu0 0.0
  %3672 = vmatprep.subr.mxu0 0.0
  %3673 = vmatpush1.xpose.msra.mxu0 0.0
  %3674 = vmatprep.subr.mxu0 0.0
  %3675 = vmatpush1.xpose.msra.mxu0 0.0
  %3676 = vmatprep.subr.mxu0 0.0
  %3677 = vmatpush1.xpose.msra.mxu0 0.0
  %3678 = vmatprep.subr.mxu0 0.0
  %3679 = vmatpush1.xpose.msra.mxu0 0.0
  %3680 = vmatprep.subr.mxu0 0.0
  %3681 = vmatpush1.xpose.msra.mxu0 0.0
  %3682 = vmatprep.subr.mxu0 0.0
  %3683 = vmatpush1.xpose.msra.mxu0 0.0
  %3684 = vmatprep.subr.mxu0 0.0
  %3685 = vmatpush1.xpose.msra.mxu0 0.0
  %3686 = vmatprep.subr.mxu0 0.0
  %3687 = vmatpush1.xpose.msra.mxu0 0.0
  %3688 = vmatprep.subr.mxu0 0.0
  %3689 = vmatpush1.xpose.msra.mxu0 0.0
  %3690 = vmatprep.subr.mxu0 0.0
  %3691 = vmatpush1.xpose.msra.mxu0 0.0
  %3692 = vmatprep.subr.mxu0 0.0
  %3693 = vmatpush1.xpose.msra.mxu0 0.0
  %3694 = vmatprep.subr.mxu0 0.0
  %3695 = vmatpush1.xpose.msra.mxu0 0.0
  %3696 = vmatprep.subr.mxu0 0.0
  %3697 = vmatpush1.xpose.msra.mxu0 0.0
  %3698 = vmatprep.subr.mxu0 0.0
  %3699 = vmatpush1.xpose.msra.mxu0 0.0
  %3700 = vmatprep.subr.mxu0 0.0
  %3701 = vmatpush1.xpose.msra.mxu0 0.0
  %3702 = vmatprep.subr.mxu0 0.0
  %3703 = vmatpush1.xpose.msra.mxu0 0.0
  %3704 = vmatprep.mubr.f32.mxu0 0.0
  %3705 = vmatmul.mubr.f32.gmra.mrb[0].mxu0 %v3636
  %v3706 = vpop.f32.mrb[0].mxu0
  %v3707 = vadd.f32 0.0, %v3706
  %v3708 = vpop.f32.mrb[0].mxu0
  %3709 = vdwg.mxu0
  %v3710 = vmul.f32 %v3629, 0.35355338
  %v3711 = vmul.f32 %v3707, 0.35355338
  %v3712 = vsel %vm270, %v3710, -inf
  %3713 = vmax.xlane.f32.xlu0 %v3712
  %v3714 = vpop.xlane.xlu0 %3713
  %v3715 = vsel %vm270, %v3711, -inf
  %3716 = vmax.xlane.f32.xlu0 %v3715
  %v3717 = vpop.xlane.xlu0 %3716
  %v3718 = vsub.f32 %v3710, %v3714
  %v3719 = vsub.f32 %v3711, %v3717
  %v3720 = vmul.f32 %v3718, 1.442695
  %v3721 = vpow.pop %v3720
  %v3722 = vmul.f32 %v3719, 1.442695
  %v3723 = vpow.pop %v3722
  %v3724 = vsel %vm270, %v3721, 0.0
  %3725 = vadd.xlane.f32.xlu0 %v3724
  %v3726 = vpop.xlane.xlu0 %3725
  %v3727 = vsel %vm270, %v3723, 0.0
  %3728 = vadd.xlane.f32.xlu0 %v3727
  %v3729 = vpop.xlane.xlu0 %3728
  %v3730 = vrcp.pop %v3726
  %v3731 = vrcp.pop %v3729
  %v3732 = vmul.f32 %v3721, %v3730
  %v3733 = vmul.f32 %v3723, %v3731
  %3734 = vrot.lane.b32.xlu0 %v2307, 40
  %v3735 = vpop.permute.xlu0 %3734
  %v3738 = vsel %vm270, %v3732, 0
  %3740 = vmatprep.subr.mxu0 0.0
  %3741 = vmatpush1.msra.mxu0 %v3735
  %3742 = vmatprep.subr.mxu0 0.0
  %3743 = vmatpush1.msra.mxu0 0.0
  %3744 = vmatprep.subr.mxu0 0.0
  %3745 = vmatpush1.msra.mxu0 0.0
  %3746 = vmatprep.subr.mxu0 0.0
  %3747 = vmatpush1.msra.mxu0 0.0
  %3748 = vmatprep.subr.mxu0 0.0
  %3749 = vmatpush1.msra.mxu0 0.0
  %3750 = vmatprep.subr.mxu0 0.0
  %3751 = vmatpush1.msra.mxu0 0.0
  %3752 = vmatprep.subr.mxu0 0.0
  %3753 = vmatpush1.msra.mxu0 0.0
  %3754 = vmatprep.subr.mxu0 0.0
  %3755 = vmatpush1.msra.mxu0 0.0
  %3756 = vmatprep.subr.mxu0 0.0
  %3757 = vmatpush1.msra.mxu0 0.0
  %3758 = vmatprep.subr.mxu0 0.0
  %3759 = vmatpush1.msra.mxu0 0.0
  %3760 = vmatprep.subr.mxu0 0.0
  %3761 = vmatpush1.msra.mxu0 0.0
  %3762 = vmatprep.subr.mxu0 0.0
  %3763 = vmatpush1.msra.mxu0 0.0
  %3764 = vmatprep.subr.mxu0 0.0
  %3765 = vmatpush1.msra.mxu0 0.0
  %3766 = vmatprep.subr.mxu0 0.0
  %3767 = vmatpush1.msra.mxu0 0.0
  %3768 = vmatprep.subr.mxu0 0.0
  %3769 = vmatpush1.msra.mxu0 0.0
  %3770 = vmatprep.subr.mxu0 0.0
  %3771 = vmatpush1.msra.mxu0 0.0
  %3772 = vmatprep.subr.mxu0 0.0
  %3773 = vmatpush1.msra.mxu0 0.0
  %3774 = vmatprep.subr.mxu0 0.0
  %3775 = vmatpush1.msra.mxu0 0.0
  %3776 = vmatprep.subr.mxu0 0.0
  %3777 = vmatpush1.msra.mxu0 0.0
  %3778 = vmatprep.subr.mxu0 0.0
  %3779 = vmatpush1.msra.mxu0 0.0
  %3780 = vmatprep.subr.mxu0 0.0
  %3781 = vmatpush1.msra.mxu0 0.0
  %3782 = vmatprep.subr.mxu0 0.0
  %3783 = vmatpush1.msra.mxu0 0.0
  %3784 = vmatprep.subr.mxu0 0.0
  %3785 = vmatpush1.msra.mxu0 0.0
  %3786 = vmatprep.subr.mxu0 0.0
  %3787 = vmatpush1.msra.mxu0 0.0
  %3788 = vmatprep.subr.mxu0 0.0
  %3789 = vmatpush1.msra.mxu0 0.0
  %3790 = vmatprep.subr.mxu0 0.0
  %3791 = vmatpush1.msra.mxu0 0.0
  %3792 = vmatprep.subr.mxu0 0.0
  %3793 = vmatpush1.msra.mxu0 0.0
  %3794 = vmatprep.subr.mxu0 0.0
  %3795 = vmatpush1.msra.mxu0 0.0
  %3796 = vmatprep.subr.mxu0 0.0
  %3797 = vmatpush1.msra.mxu0 0.0
  %3798 = vmatprep.subr.mxu0 0.0
  %3799 = vmatpush1.msra.mxu0 0.0
  %3800 = vmatprep.subr.mxu0 0.0
  %3801 = vmatpush1.msra.mxu0 0.0
  %3802 = vmatprep.subr.mxu0 0.0
  %3803 = vmatpush1.msra.mxu0 0.0
  %3804 = vmatprep.mubr.f32.mxu0 0.0
  %3805 = vmatmul.mubr.f32.gmra.mrb[0].mxu0 %v3738
  %v3806 = vpop.f32.mrb[0].mxu0
  %v3807 = vadd.f32 0.0, %v3806
  %v3808 = vpop.f32.mrb[0].mxu0
  %3809 = vdwg.mxu0
  %3810 = vrot.lane.b32.xlu0 %v2312, 40
  %v3811 = vpop.permute.xlu0 %3810
  %v3814 = vsel %vm270, %v3733, 0
  %3816 = vmatprep.subr.mxu0 0.0
  %3817 = vmatpush1.msra.mxu0 %v3811
  %3818 = vmatprep.subr.mxu0 0.0
  %3819 = vmatpush1.msra.mxu0 0.0
  %3820 = vmatprep.subr.mxu0 0.0
  %3821 = vmatpush1.msra.mxu0 0.0
  %3822 = vmatprep.subr.mxu0 0.0
  %3823 = vmatpush1.msra.mxu0 0.0
  %3824 = vmatprep.subr.mxu0 0.0
  %3825 = vmatpush1.msra.mxu0 0.0
  %3826 = vmatprep.subr.mxu0 0.0
  %3827 = vmatpush1.msra.mxu0 0.0
  %3828 = vmatprep.subr.mxu0 0.0
  %3829 = vmatpush1.msra.mxu0 0.0
  %3830 = vmatprep.subr.mxu0 0.0
  %3831 = vmatpush1.msra.mxu0 0.0
  %3832 = vmatprep.subr.mxu0 0.0
  %3833 = vmatpush1.msra.mxu0 0.0
  %3834 = vmatprep.subr.mxu0 0.0
  %3835 = vmatpush1.msra.mxu0 0.0
  %3836 = vmatprep.subr.mxu0 0.0
  %3837 = vmatpush1.msra.mxu0 0.0
  %3838 = vmatprep.subr.mxu0 0.0
  %3839 = vmatpush1.msra.mxu0 0.0
  %3840 = vmatprep.subr.mxu0 0.0
  %3841 = vmatpush1.msra.mxu0 0.0
  %3842 = vmatprep.subr.mxu0 0.0
  %3843 = vmatpush1.msra.mxu0 0.0
  %3844 = vmatprep.subr.mxu0 0.0
  %3845 = vmatpush1.msra.mxu0 0.0
  %3846 = vmatprep.subr.mxu0 0.0
  %3847 = vmatpush1.msra.mxu0 0.0
  %3848 = vmatprep.subr.mxu0 0.0
  %3849 = vmatpush1.msra.mxu0 0.0
  %3850 = vmatprep.subr.mxu0 0.0
  %3851 = vmatpush1.msra.mxu0 0.0
  %3852 = vmatprep.subr.mxu0 0.0
  %3853 = vmatpush1.msra.mxu0 0.0
  %3854 = vmatprep.subr.mxu0 0.0
  %3855 = vmatpush1.msra.mxu0 0.0
  %3856 = vmatprep.subr.mxu0 0.0
  %3857 = vmatpush1.msra.mxu0 0.0
  %3858 = vmatprep.subr.mxu0 0.0
  %3859 = vmatpush1.msra.mxu0 0.0
  %3860 = vmatprep.subr.mxu0 0.0
  %3861 = vmatpush1.msra.mxu0 0.0
  %3862 = vmatprep.subr.mxu0 0.0
  %3863 = vmatpush1.msra.mxu0 0.0
  %3864 = vmatprep.subr.mxu0 0.0
  %3865 = vmatpush1.msra.mxu0 0.0
  %3866 = vmatprep.subr.mxu0 0.0
  %3867 = vmatpush1.msra.mxu0 0.0
  %3868 = vmatprep.subr.mxu0 0.0
  %3869 = vmatpush1.msra.mxu0 0.0
  %3870 = vmatprep.subr.mxu0 0.0
  %3871 = vmatpush1.msra.mxu0 0.0
  %3872 = vmatprep.subr.mxu0 0.0
  %3873 = vmatpush1.msra.mxu0 0.0
  %3874 = vmatprep.subr.mxu0 0.0
  %3875 = vmatpush1.msra.mxu0 0.0
  %3876 = vmatprep.subr.mxu0 0.0
  %3877 = vmatpush1.msra.mxu0 0.0
  %3878 = vmatprep.subr.mxu0 0.0
  %3879 = vmatpush1.msra.mxu0 0.0
  %3880 = vmatprep.mubr.f32.mxu0 0.0
  %3881 = vmatmul.mubr.f32.gmra.mrb[0].mxu0 %v3814
  %v3882 = vpop.f32.mrb[0].mxu0
  %v3883 = vadd.f32 0.0, %v3882
  %v3884 = vpop.f32.mrb[0].mxu0
  %3885 = vdwg.mxu0
  %v3887 = vsel %vm270, %v3807, 0
  %v3890 = vsel %vm270, %v3883, 0
  %3892 = vmatprep.subr.mxu0 0.0
  %3893 = vmatpush1.msra.mxu0 %v2225
  %3894 = vmatprep.subr.mxu0 0.0
  %3895 = vmatpush1.msra.mxu0 0.0
  %3896 = vmatprep.subr.mxu0 0.0
  %3897 = vmatpush1.msra.mxu0 0.0
  %3898 = vmatprep.subr.mxu0 0.0
  %3899 = vmatpush1.msra.mxu0 0.0
  %3900 = vmatprep.subr.mxu0 0.0
  %3901 = vmatpush1.msra.mxu0 0.0
  %3902 = vmatprep.subr.mxu0 0.0
  %3903 = vmatpush1.msra.mxu0 0.0
  %3904 = vmatprep.subr.mxu0 0.0
  %3905 = vmatpush1.msra.mxu0 0.0
  %3906 = vmatprep.subr.mxu0 0.0
  %3907 = vmatpush1.msra.mxu0 0.0
  %3908 = vmatprep.subr.mxu0 0.0
  %3909 = vmatpush1.msra.mxu0 0.0
  %3910 = vmatprep.subr.mxu0 0.0
  %3911 = vmatpush1.msra.mxu0 0.0
  %3912 = vmatprep.subr.mxu0 0.0
  %3913 = vmatpush1.msra.mxu0 0.0
  %3914 = vmatprep.subr.mxu0 0.0
  %3915 = vmatpush1.msra.mxu0 0.0
  %3916 = vmatprep.subr.mxu0 0.0
  %3917 = vmatpush1.msra.mxu0 0.0
  %3918 = vmatprep.subr.mxu0 0.0
  %3919 = vmatpush1.msra.mxu0 0.0
  %3920 = vmatprep.subr.mxu0 0.0
  %3921 = vmatpush1.msra.mxu0 0.0
  %3922 = vmatprep.subr.mxu0 0.0
  %3923 = vmatpush1.msra.mxu0 0.0
  %3924 = vmatprep.subr.mxu0 0.0
  %3925 = vmatpush1.msra.mxu0 0.0
  %3926 = vmatprep.subr.mxu0 0.0
  %3927 = vmatpush1.msra.mxu0 0.0
  %3928 = vmatprep.subr.mxu0 0.0
  %3929 = vmatpush1.msra.mxu0 0.0
  %3930 = vmatprep.subr.mxu0 0.0
  %3931 = vmatpush1.msra.mxu0 0.0
  %3932 = vmatprep.subr.mxu0 0.0
  %3933 = vmatpush1.msra.mxu0 0.0
  %3934 = vmatprep.subr.mxu0 0.0
  %3935 = vmatpush1.msra.mxu0 0.0
  %3936 = vmatprep.subr.mxu0 0.0
  %3937 = vmatpush1.msra.mxu0 0.0
  %3938 = vmatprep.subr.mxu0 0.0
  %3939 = vmatpush1.msra.mxu0 0.0
  %3940 = vmatprep.subr.mxu0 0.0
  %3941 = vmatpush1.msra.mxu0 0.0
  %3942 = vmatprep.subr.mxu0 0.0
  %3943 = vmatpush1.msra.mxu0 0.0
  %3944 = vmatprep.subr.mxu0 0.0
  %3945 = vmatpush1.msra.mxu0 0.0
  %3946 = vmatprep.subr.mxu0 0.0
  %3947 = vmatpush1.msra.mxu0 0.0
  %3948 = vmatprep.subr.mxu0 0.0
  %3949 = vmatpush1.msra.mxu0 0.0
  %3950 = vmatprep.subr.mxu0 0.0
  %3951 = vmatpush1.msra.mxu0 0.0
  %3952 = vmatprep.subr.mxu0 0.0
  %3953 = vmatpush1.msra.mxu0 0.0
  %3954 = vmatprep.subr.mxu0 0.0
  %3955 = vmatpush1.msra.mxu0 0.0
  %3956 = vmatprep.mubr.f32.mxu0 0.0
  %3957 = vmatmul.mubr.f32.gmra.mrb[0].mxu0 %v3887
  %v3958 = vpop.f32.mrb[0].mxu0
  %v3959 = vadd.f32 0.0, %v3958
  %v3960 = vpop.f32.mrb[0].mxu0
  %3961 = vmatprep.mubr.f32.mxu0 0.0
  %3962 = vmatmul.mubr.f32.gmra.mrb[0].mxu0 %v3890
  %v3963 = vpop.f32.mrb[0].mxu0
  %v3964 = vadd.f32 0.0, %v3963
  %v3965 = vpop.f32.mrb[0].mxu0
  %3966 = vdwg.mxu0
  %v3967 = vadd.f32 %v3552, %v3959
  %v3968 = vadd.f32 %v3553, %v3964
  %v3970 = vlaneseq
  %v3971 = vshrl.u32 %v3970, 7
  %v3972 = vsub.s32 0, %v3971
  %v3973 = vrot.slane %v2227, %v3972
  %v3975 = vadd.f32 %v3967, %v3973
  %v3976 = vadd.f32 %v3968, %v3973
  %v3977 = vadd.f32 %v3975, %v2212
  %v3978 = vadd.f32 %v3976, %v2213
  %s3979 = scalar_lea.vmem %s7, 1
  %v3980 = vld [vmem:[%s3979] sm:$0x1]
  %s3981 = scalar_lea.vmem %s8, 1
  %v3982 = vld [vmem:[%s3981] sm:$0x1]
  %v3983 = vsel %vm185, %v3977, 0.0
  %3984 = vadd.xlane.f32.xlu0 %v3983
  %v3985 = vpop.xlane.xlu0 %3984
  %v3986 = vsel %vm185, %v3978, 0.0
  %3987 = vadd.xlane.f32.xlu0 %v3986
  %v3988 = vpop.xlane.xlu0 %3987
  %v3989 = vmul.f32 %v3985, %v1940
  %v3990 = vmul.f32 %v3988, %v1940
  %v3991 = vsub.f32 %v3977, %v3989
  %v3992 = vsub.f32 %v3978, %v3990
  %v3993 = vmul.f32 %v3991, %v3991
  %v3994 = vmul.f32 %v3992, %v3992
  %v3995 = vsel %vm185, %v3993, 0.0
  %3996 = vadd.xlane.f32.xlu0 %v3995
  %v3997 = vpop.xlane.xlu0 %3996
  %v3998 = vsel %vm185, %v3994, 0.0
  %3999 = vadd.xlane.f32.xlu0 %v3998
  %v4000 = vpop.xlane.xlu0 %3999
  %v4001 = vmul.f32 %v3997, %v1940
  %v4002 = vmul.f32 %v4000, %v1940
  %v4003 = vadd.f32 %v4001, 1e-05
  %v4004 = vadd.f32 %v4002, 1e-05
  %v4005 = vrsqrt.pop %v4003
  %v4006 = vrsqrt.pop %v4004
  %v4007 = vmul.f32 %v3991, %v4005
  %v4008 = vmul.f32 %v3992, %v4006
  %v4010 = vlaneseq
  %v4011 = vshrl.u32 %v4010, 7
  %v4012 = vsub.s32 0, %v4011
  %v4013 = vrot.slane %v3980, %v4012
  %v4015 = vmul.f32 %v4007, %v4013
  %v4016 = vmul.f32 %v4008, %v4013
  %v4018 = vlaneseq
  %v4019 = vshrl.u32 %v4018, 7
  %v4020 = vsub.s32 0, %v4019
  %v4021 = vrot.slane %v3982, %v4020
  %v4023 = vadd.f32 %v4015, %v4021
  %v4024 = vadd.f32 %v4016, %v4021
  %s4025 = scalar_lea.vmem %s9, 32
  %v4026 = vld [vmem:[%s4025] sm:$0xff]
  %v4027 = vld [vmem:[%s4025 + $0x8] sm:$0xff]
  %v4028 = vld [vmem:[%s4025 + $0x10] sm:$0xff]
  %v4029 = vld [vmem:[%s4025 + $0x18] sm:$0xff]
  %s4030 = scalar_lea.vmem %s10, 1
  %v4031 = vld [vmem:[%s4030] sm:$0x1]
  %v4033 = vlaneseq
  %v4034 = vshrl.u32 %v4033, 7
  %v4035 = vsub.s32 0, %v4034
  %v4036 = vrot.slane %v4031, %v4035
  %v4039 = vsel %vm185, %v4023, 0
  %v4042 = vsel %vm185, %v4024, 0
  %4044 = vmatprep.subr.mxu0 0.0
  %4045 = vmatpush1.msra.mxu0 %v4026
  %4046 = vmatprep.subr.mxu0 0.0
  %4047 = vmatpush1.msra.mxu0 %v4027
  %4048 = vmatprep.subr.mxu0 0.0
  %4049 = vmatpush1.msra.mxu0 %v4028
  %4050 = vmatprep.subr.mxu0 0.0
  %4051 = vmatpush1.msra.mxu0 %v4029
  %4052 = vmatprep.subr.mxu0 0.0
  %4053 = vmatpush1.msra.mxu0 0.0
  %4054 = vmatprep.subr.mxu0 0.0
  %4055 = vmatpush1.msra.mxu0 0.0
  %4056 = vmatprep.subr.mxu0 0.0
  %4057 = vmatpush1.msra.mxu0 0.0
  %4058 = vmatprep.subr.mxu0 0.0
  %4059 = vmatpush1.msra.mxu0 0.0
  %4060 = vmatprep.subr.mxu0 0.0
  %4061 = vmatpush1.msra.mxu0 0.0
  %4062 = vmatprep.subr.mxu0 0.0
  %4063 = vmatpush1.msra.mxu0 0.0
  %4064 = vmatprep.subr.mxu0 0.0
  %4065 = vmatpush1.msra.mxu0 0.0
  %4066 = vmatprep.subr.mxu0 0.0
  %4067 = vmatpush1.msra.mxu0 0.0
  %4068 = vmatprep.subr.mxu0 0.0
  %4069 = vmatpush1.msra.mxu0 0.0
  %4070 = vmatprep.subr.mxu0 0.0
  %4071 = vmatpush1.msra.mxu0 0.0
  %4072 = vmatprep.subr.mxu0 0.0
  %4073 = vmatpush1.msra.mxu0 0.0
  %4074 = vmatprep.subr.mxu0 0.0
  %4075 = vmatpush1.msra.mxu0 0.0
  %4076 = vmatprep.subr.mxu0 0.0
  %4077 = vmatpush1.msra.mxu0 0.0
  %4078 = vmatprep.subr.mxu0 0.0
  %4079 = vmatpush1.msra.mxu0 0.0
  %4080 = vmatprep.subr.mxu0 0.0
  %4081 = vmatpush1.msra.mxu0 0.0
  %4082 = vmatprep.subr.mxu0 0.0
  %4083 = vmatpush1.msra.mxu0 0.0
  %4084 = vmatprep.subr.mxu0 0.0
  %4085 = vmatpush1.msra.mxu0 0.0
  %4086 = vmatprep.subr.mxu0 0.0
  %4087 = vmatpush1.msra.mxu0 0.0
  %4088 = vmatprep.subr.mxu0 0.0
  %4089 = vmatpush1.msra.mxu0 0.0
  %4090 = vmatprep.subr.mxu0 0.0
  %4091 = vmatpush1.msra.mxu0 0.0
  %4092 = vmatprep.subr.mxu0 0.0
  %4093 = vmatpush1.msra.mxu0 0.0
  %4094 = vmatprep.subr.mxu0 0.0
  %4095 = vmatpush1.msra.mxu0 0.0
  %4096 = vmatprep.subr.mxu0 0.0
  %4097 = vmatpush1.msra.mxu0 0.0
  %4098 = vmatprep.subr.mxu0 0.0
  %4099 = vmatpush1.msra.mxu0 0.0
  %4100 = vmatprep.subr.mxu0 0.0
  %4101 = vmatpush1.msra.mxu0 0.0
  %4102 = vmatprep.subr.mxu0 0.0
  %4103 = vmatpush1.msra.mxu0 0.0
  %4104 = vmatprep.subr.mxu0 0.0
  %4105 = vmatpush1.msra.mxu0 0.0
  %4106 = vmatprep.subr.mxu0 0.0
  %4107 = vmatpush1.msra.mxu0 0.0
  %4108 = vmatprep.mubr.f32.mxu0 0.0
  %4109 = vmatmul.mubr.f32.gmra.mrb[0].mxu0 %v4039
  %v4110 = vpop.f32.mrb[0].mxu0
  %v4111 = vadd.f32 %v4036, %v4110
  %v4112 = vpop.f32.mrb[0].mxu0
  %4113 = vmatprep.mubr.f32.mxu0 0.0
  %4114 = vmatmul.mubr.f32.gmra.mrb[0].mxu0 %v4042
  %v4115 = vpop.f32.mrb[0].mxu0
  %v4116 = vadd.f32 %v4036, %v4115
  %v4117 = vpop.f32.mrb[0].mxu0
  %4118 = vdwg.mxu0
  %v4119 = vmax.f32 %v4111, 0.0
  %v4120 = vmax.f32 %v4116, 0.0
  %s4121 = scalar_lea.vmem %s11, 64
  %v4122 = vld [vmem:[%s4121] sm:$0xff]
  %v4123 = vld [vmem:[%s4121 + $0x8] sm:$0xff]
  %v4124 = vld [vmem:[%s4121 + $0x10] sm:$0xff]
  %v4125 = vld [vmem:[%s4121 + $0x18] sm:$0xff]
  %v4126 = vld [vmem:[%s4121 + $0x20] sm:$0xff]
  %v4127 = vld [vmem:[%s4121 + $0x28] sm:$0xff]
  %v4128 = vld [vmem:[%s4121 + $0x30] sm:$0xff]
  %v4129 = vld [vmem:[%s4121 + $0x38] sm:$0xff]
  %s4130 = scalar_lea.vmem %s12, 1
  %v4131 = vld [vmem:[%s4130] sm:$0x1]
  %v4133 = vlaneseq
  %v4134 = vshrl.u32 %v4133, 7
  %v4135 = vsub.s32 0, %v4134
  %v4136 = vrot.slane %v4131, %v4135
  %v4139 = vsel %vm2086, %v4119, 0
  %v4142 = vsel %vm2086, %v4120, 0
  %4144 = vmatprep.subr.mxu0 0.0
  %4145 = vmatpush1.msra.mxu0 %v4122
  %4146 = vmatprep.subr.mxu0 0.0
  %4147 = vmatpush1.msra.mxu0 %v4123
  %4148 = vmatprep.subr.mxu0 0.0
  %4149 = vmatpush1.msra.mxu0 %v4124
  %4150 = vmatprep.subr.mxu0 0.0
  %4151 = vmatpush1.msra.mxu0 %v4125
  %4152 = vmatprep.subr.mxu0 0.0
  %4153 = vmatpush1.msra.mxu0 %v4126
  %4154 = vmatprep.subr.mxu0 0.0
  %4155 = vmatpush1.msra.mxu0 %v4127
  %4156 = vmatprep.subr.mxu0 0.0
  %4157 = vmatpush1.msra.mxu0 %v4128
  %4158 = vmatprep.subr.mxu0 0.0
  %4159 = vmatpush1.msra.mxu0 %v4129
  %4160 = vmatprep.subr.mxu0 0.0
  %4161 = vmatpush1.msra.mxu0 0.0
  %4162 = vmatprep.subr.mxu0 0.0
  %4163 = vmatpush1.msra.mxu0 0.0
  %4164 = vmatprep.subr.mxu0 0.0
  %4165 = vmatpush1.msra.mxu0 0.0
  %4166 = vmatprep.subr.mxu0 0.0
  %4167 = vmatpush1.msra.mxu0 0.0
  %4168 = vmatprep.subr.mxu0 0.0
  %4169 = vmatpush1.msra.mxu0 0.0
  %4170 = vmatprep.subr.mxu0 0.0
  %4171 = vmatpush1.msra.mxu0 0.0
  %4172 = vmatprep.subr.mxu0 0.0
  %4173 = vmatpush1.msra.mxu0 0.0
  %4174 = vmatprep.subr.mxu0 0.0
  %4175 = vmatpush1.msra.mxu0 0.0
  %4176 = vmatprep.subr.mxu0 0.0
  %4177 = vmatpush1.msra.mxu0 0.0
  %4178 = vmatprep.subr.mxu0 0.0
  %4179 = vmatpush1.msra.mxu0 0.0
  %4180 = vmatprep.subr.mxu0 0.0
  %4181 = vmatpush1.msra.mxu0 0.0
  %4182 = vmatprep.subr.mxu0 0.0
  %4183 = vmatpush1.msra.mxu0 0.0
  %4184 = vmatprep.subr.mxu0 0.0
  %4185 = vmatpush1.msra.mxu0 0.0
  %4186 = vmatprep.subr.mxu0 0.0
  %4187 = vmatpush1.msra.mxu0 0.0
  %4188 = vmatprep.subr.mxu0 0.0
  %4189 = vmatpush1.msra.mxu0 0.0
  %4190 = vmatprep.subr.mxu0 0.0
  %4191 = vmatpush1.msra.mxu0 0.0
  %4192 = vmatprep.subr.mxu0 0.0
  %4193 = vmatpush1.msra.mxu0 0.0
  %4194 = vmatprep.subr.mxu0 0.0
  %4195 = vmatpush1.msra.mxu0 0.0
  %4196 = vmatprep.subr.mxu0 0.0
  %4197 = vmatpush1.msra.mxu0 0.0
  %4198 = vmatprep.subr.mxu0 0.0
  %4199 = vmatpush1.msra.mxu0 0.0
  %4200 = vmatprep.subr.mxu0 0.0
  %4201 = vmatpush1.msra.mxu0 0.0
  %4202 = vmatprep.subr.mxu0 0.0
  %4203 = vmatpush1.msra.mxu0 0.0
  %4204 = vmatprep.subr.mxu0 0.0
  %4205 = vmatpush1.msra.mxu0 0.0
  %4206 = vmatprep.subr.mxu0 0.0
  %4207 = vmatpush1.msra.mxu0 0.0
  %4208 = vmatprep.mubr.f32.mxu0 0.0
  %4209 = vmatmul.mubr.f32.gmra.mrb[0].mxu0 %v4139
  %v4210 = vpop.f32.mrb[0].mxu0
  %v4211 = vadd.f32 %v4136, %v4210
  %v4212 = vpop.f32.mrb[0].mxu0
  %4213 = vmatprep.mubr.f32.mxu0 0.0
  %4214 = vmatmul.mubr.f32.gmra.mrb[0].mxu0 %v4142
  %v4215 = vpop.f32.mrb[0].mxu0
  %v4216 = vadd.f32 %v4136, %v4215
  %v4217 = vpop.f32.mrb[0].mxu0
  %4218 = vdwg.mxu0
  %v4219 = vadd.f32 %v4211, %v4023
  %v4220 = vadd.f32 %v4216, %v4024
  %s4221 = scalar_lea.vmem %s13, 1
  %v4222 = vld [vmem:[%s4221] sm:$0x1]
  %s4223 = scalar_lea.vmem %s14, 1
  %v4224 = vld [vmem:[%s4223] sm:$0x1]
  %v4225 = vsel %vm185, %v4219, 0.0
  %4226 = vadd.xlane.f32.xlu0 %v4225
  %v4227 = vpop.xlane.xlu0 %4226
  %v4228 = vsel %vm185, %v4220, 0.0
  %4229 = vadd.xlane.f32.xlu0 %v4228
  %v4230 = vpop.xlane.xlu0 %4229
  %v4231 = vmul.f32 %v4227, %v1940
  %v4232 = vmul.f32 %v4230, %v1940
  %v4233 = vsub.f32 %v4219, %v4231
  %v4234 = vsub.f32 %v4220, %v4232
  %v4235 = vmul.f32 %v4233, %v4233
  %v4236 = vmul.f32 %v4234, %v4234
  %v4237 = vsel %vm185, %v4235, 0.0
  %4238 = vadd.xlane.f32.xlu0 %v4237
  %v4239 = vpop.xlane.xlu0 %4238
  %v4240 = vsel %vm185, %v4236, 0.0
  %4241 = vadd.xlane.f32.xlu0 %v4240
  %v4242 = vpop.xlane.xlu0 %4241
  %v4243 = vmul.f32 %v4239, %v1940
  %v4244 = vmul.f32 %v4242, %v1940
  %v4245 = vadd.f32 %v4243, 1e-05
  %v4246 = vadd.f32 %v4244, 1e-05
  %v4247 = vrsqrt.pop %v4245
  %v4248 = vrsqrt.pop %v4246
  %v4249 = vmul.f32 %v4233, %v4247
  %v4250 = vmul.f32 %v4234, %v4248
  %v4252 = vlaneseq
  %v4253 = vshrl.u32 %v4252, 7
  %v4254 = vsub.s32 0, %v4253
  %v4255 = vrot.slane %v4222, %v4254
  %v4257 = vmul.f32 %v4249, %v4255
  %v4258 = vmul.f32 %v4250, %v4255
  %v4260 = vlaneseq
  %v4261 = vshrl.u32 %v4260, 7
  %v4262 = vsub.s32 0, %v4261
  %v4263 = vrot.slane %v4224, %v4262
  %v4265 = vadd.f32 %v4257, %v4263
  %v4266 = vadd.f32 %v4258, %v4263
  %v4267 = vld [vmem:[%s15] sm:$0x1]
  %v4268 = vld [vmem:[%s16] sm:$0x1]
  %v4269 = vsel %vm185, %v4265, 0.0
  %4270 = vadd.xlane.f32.xlu0 %v4269
  %v4271 = vpop.xlane.xlu0 %4270
  %v4272 = vsel %vm185, %v4266, 0.0
  %4273 = vadd.xlane.f32.xlu0 %v4272
  %v4274 = vpop.xlane.xlu0 %4273
  %v4275 = vmul.f32 %v4271, %v1940
  %v4276 = vmul.f32 %v4274, %v1940
  %v4277 = vsub.f32 %v4265, %v4275
  %v4278 = vsub.f32 %v4266, %v4276
  %v4279 = vmul.f32 %v4277, %v4277
  %v4280 = vmul.f32 %v4278, %v4278
  %v4281 = vsel %vm185, %v4279, 0.0
  %4282 = vadd.xlane.f32.xlu0 %v4281
  %v4283 = vpop.xlane.xlu0 %4282
  %v4284 = vsel %vm185, %v4280, 0.0
  %4285 = vadd.xlane.f32.xlu0 %v4284
  %v4286 = vpop.xlane.xlu0 %4285
  %v4287 = vmul.f32 %v4283, %v1940
  %v4288 = vmul.f32 %v4286, %v1940
  %v4289 = vadd.f32 %v4287, 1e-05
  %v4290 = vadd.f32 %v4288, 1e-05
  %v4291 = vrsqrt.pop %v4289
  %v4292 = vrsqrt.pop %v4290
  %v4293 = vmul.f32 %v4277, %v4291
  %v4294 = vmul.f32 %v4278, %v4292
  %v4296 = vlaneseq
  %v4297 = vshrl.u32 %v4296, 7
  %v4298 = vsub.s32 0, %v4297
  %v4299 = vrot.slane %v4267, %v4298
  %v4301 = vmul.f32 %v4293, %v4299
  %v4302 = vmul.f32 %v4294, %v4299
  %v4304 = vlaneseq
  %v4305 = vshrl.u32 %v4304, 7
  %v4306 = vsub.s32 0, %v4305
  %v4307 = vrot.slane %v4268, %v4306
  %v4309 = vadd.f32 %v4301, %v4307
  %v4310 = vadd.f32 %v4302, %v4307
  %v4311 = vld [vmem:[%s17] sm:$0xff]
  %v4312 = vld [vmem:[%s17 + $0x8] sm:$0xff]
  %v4313 = vld [vmem:[%s17 + $0x10] sm:$0xff]
  %v4314 = vld [vmem:[%s17 + $0x18] sm:$0xff]
  %s4315 = scalar_lea.vmem %s17, 32
  %v4316 = vld [vmem:[%s4315] sm:$0xff]
  %v4317 = vld [vmem:[%s4315 + $0x8] sm:$0xff]
  %v4318 = vld [vmem:[%s4315 + $0x10] sm:$0xff]
  %v4319 = vld [vmem:[%s4315 + $0x18] sm:$0xff]
  %v4322 = vrot.slane %v4309, 1
  %vm4323 = vcmask 1041409
  %v4324 = vsel %vm4323, %v4310, %v4322
  %v4325 = vsel %vm185, %v4324, 0
  %4327 = vmatprep.subr.mxu0 0.0
  %4328 = vmatpush1.msra.mxu0 %v4316
  %4329 = vmatprep.subr.mxu0 0.0
  %4330 = vmatpush1.msra.mxu0 %v4317
  %4331 = vmatprep.subr.mxu0 0.0
  %4332 = vmatpush1.msra.mxu0 %v4318
  %4333 = vmatprep.subr.mxu0 0.0
  %4334 = vmatpush1.msra.mxu0 %v4319
  %4335 = vmatprep.subr.mxu0 0.0
  %4336 = vmatpush1.msra.mxu0 0.0
  %4337 = vmatprep.subr.mxu0 0.0
  %4338 = vmatpush1.msra.mxu0 0.0
  %4339 = vmatprep.subr.mxu0 0.0
  %4340 = vmatpush1.msra.mxu0 0.0
  %4341 = vmatprep.subr.mxu0 0.0
  %4342 = vmatpush1.msra.mxu0 0.0
  %4343 = vmatprep.subr.mxu0 0.0
  %4344 = vmatpush1.msra.mxu0 0.0
  %4345 = vmatprep.subr.mxu0 0.0
  %4346 = vmatpush1.msra.mxu0 0.0
  %4347 = vmatprep.subr.mxu0 0.0
  %4348 = vmatpush1.msra.mxu0 0.0
  %4349 = vmatprep.subr.mxu0 0.0
  %4350 = vmatpush1.msra.mxu0 0.0
  %4351 = vmatprep.subr.mxu0 0.0
  %4352 = vmatpush1.msra.mxu0 0.0
  %4353 = vmatprep.subr.mxu0 0.0
  %4354 = vmatpush1.msra.mxu0 0.0
  %4355 = vmatprep.subr.mxu0 0.0
  %4356 = vmatpush1.msra.mxu0 0.0
  %4357 = vmatprep.subr.mxu0 0.0
  %4358 = vmatpush1.msra.mxu0 0.0
  %4359 = vmatprep.subr.mxu0 0.0
  %4360 = vmatpush1.msra.mxu0 0.0
  %4361 = vmatprep.subr.mxu0 0.0
  %4362 = vmatpush1.msra.mxu0 0.0
  %4363 = vmatprep.subr.mxu0 0.0
  %4364 = vmatpush1.msra.mxu0 0.0
  %4365 = vmatprep.subr.mxu0 0.0
  %4366 = vmatpush1.msra.mxu0 0.0
  %4367 = vmatprep.subr.mxu0 0.0
  %4368 = vmatpush1.msra.mxu0 0.0
  %4369 = vmatprep.subr.mxu0 0.0
  %4370 = vmatpush1.msra.mxu0 0.0
  %4371 = vmatprep.subr.mxu0 0.0
  %4372 = vmatpush1.msra.mxu0 0.0
  %4373 = vmatprep.subr.mxu0 0.0
  %4374 = vmatpush1.msra.mxu0 0.0
  %4375 = vmatprep.subr.mxu0 0.0
  %4376 = vmatpush1.msra.mxu0 0.0
  %4377 = vmatprep.subr.mxu0 0.0
  %4378 = vmatpush1.msra.mxu0 0.0
  %4379 = vmatprep.subr.mxu0 0.0
  %4380 = vmatpush1.msra.mxu0 0.0
  %4381 = vmatprep.subr.mxu0 0.0
  %4382 = vmatpush1.msra.mxu0 0.0
  %4383 = vmatprep.subr.mxu0 0.0
  %4384 = vmatpush1.msra.mxu0 0.0
  %4385 = vmatprep.subr.mxu0 0.0
  %4386 = vmatpush1.msra.mxu0 0.0
  %4387 = vmatprep.subr.mxu0 0.0
  %4388 = vmatpush1.msra.mxu0 0.0
  %4389 = vmatprep.subr.mxu0 0.0
  %4390 = vmatpush1.msra.mxu0 0.0
  %4391 = vmatprep.mubr.f32.mxu0 0.0
  %4392 = vmatmul.mubr.f32.gmra.mrb[0].mxu0 %v4325
  %v4393 = vpop.f32.mrb[0].mxu0
  %v4394 = vadd.f32 0.0, %v4393
  %v4395 = vpop.f32.mrb[0].mxu0
  %4396 = vdwg.mxu0
  %v4397 = vrot.slane %v4310, 7
  %v4398 = vsel %vm4323, %v4397, %v4309
  %v4399 = vsel %vm185, %v4398, 0
  %4401 = vmatprep.subr.mxu0 0.0
  %4402 = vmatpush1.msra.mxu0 %v4311
  %4403 = vmatprep.subr.mxu0 0.0
  %4404 = vmatpush1.msra.mxu0 %v4312
  %4405 = vmatprep.subr.mxu0 0.0
  %4406 = vmatpush1.msra.mxu0 %v4313
  %4407 = vmatprep.subr.mxu0 0.0
  %4408 = vmatpush1.msra.mxu0 %v4314
  %4409 = vmatprep.subr.mxu0 0.0
  %4410 = vmatpush1.msra.mxu0 0.0
  %4411 = vmatprep.subr.mxu0 0.0
  %4412 = vmatpush1.msra.mxu0 0.0
  %4413 = vmatprep.subr.mxu0 0.0
  %4414 = vmatpush1.msra.mxu0 0.0
  %4415 = vmatprep.subr.mxu0 0.0
  %4416 = vmatpush1.msra.mxu0 0.0
  %4417 = vmatprep.subr.mxu0 0.0
  %4418 = vmatpush1.msra.mxu0 0.0
  %4419 = vmatprep.subr.mxu0 0.0
  %4420 = vmatpush1.msra.mxu0 0.0
  %4421 = vmatprep.subr.mxu0 0.0
  %4422 = vmatpush1.msra.mxu0 0.0
  %4423 = vmatprep.subr.mxu0 0.0
  %4424 = vmatpush1.msra.mxu0 0.0
  %4425 = vmatprep.subr.mxu0 0.0
  %4426 = vmatpush1.msra.mxu0 0.0
  %4427 = vmatprep.subr.mxu0 0.0
  %4428 = vmatpush1.msra.mxu0 0.0
  %4429 = vmatprep.subr.mxu0 0.0
  %4430 = vmatpush1.msra.mxu0 0.0
  %4431 = vmatprep.subr.mxu0 0.0
  %4432 = vmatpush1.msra.mxu0 0.0
  %4433 = vmatprep.subr.mxu0 0.0
  %4434 = vmatpush1.msra.mxu0 0.0
  %4435 = vmatprep.subr.mxu0 0.0
  %4436 = vmatpush1.msra.mxu0 0.0
  %4437 = vmatprep.subr.mxu0 0.0
  %4438 = vmatpush1.msra.mxu0 0.0
  %4439 = vmatprep.subr.mxu0 0.0
  %4440 = vmatpush1.msra.mxu0 0.0
  %4441 = vmatprep.subr.mxu0 0.0
  %4442 = vmatpush1.msra.mxu0 0.0
  %4443 = vmatprep.subr.mxu0 0.0
  %4444 = vmatpush1.msra.mxu0 0.0
  %4445 = vmatprep.subr.mxu0 0.0
  %4446 = vmatpush1.msra.mxu0 0.0
  %4447 = vmatprep.subr.mxu0 0.0
  %4448 = vmatpush1.msra.mxu0 0.0
  %4449 = vmatprep.subr.mxu0 0.0
  %4450 = vmatpush1.msra.mxu0 0.0
  %4451 = vmatprep.subr.mxu0 0.0
  %4452 = vmatpush1.msra.mxu0 0.0
  %4453 = vmatprep.subr.mxu0 0.0
  %4454 = vmatpush1.msra.mxu0 0.0
  %4455 = vmatprep.subr.mxu0 0.0
  %4456 = vmatpush1.msra.mxu0 0.0
  %4457 = vmatprep.subr.mxu0 0.0
  %4458 = vmatpush1.msra.mxu0 0.0
  %4459 = vmatprep.subr.mxu0 0.0
  %4460 = vmatpush1.msra.mxu0 0.0
  %4461 = vmatprep.subr.mxu0 0.0
  %4462 = vmatpush1.msra.mxu0 0.0
  %4463 = vmatprep.subr.mxu0 0.0
  %4464 = vmatpush1.msra.mxu0 0.0
  %4465 = vmatprep.mubr.f32.mxu0 0.0
  %4466 = vmatmul.mubr.f32.gmra.mrb[0].mxu0 %v4399
  %v4467 = vpop.f32.mrb[0].mxu0
  %v4468 = vadd.f32 %v4394, %v4467
  %v4469 = vpop.f32.mrb[0].mxu0
  %4470 = vdwg.mxu0
  %s4471 = scalar_lea.vmem %s17, 64
  %v4472 = vld [vmem:[%s4471] sm:$0xff]
  %v4473 = vld [vmem:[%s4471 + $0x8] sm:$0xff]
  %v4474 = vld [vmem:[%s4471 + $0x10] sm:$0xff]
  %v4475 = vld [vmem:[%s4471 + $0x18] sm:$0xff]
  %v4476 = vrot.slane %v4309, 2
  %v4477 = vrot.slane %v4310, 1
  %v4478 = vsel %vm4323, %v4477, %v4476
  %v4479 = vsel %vm185, %v4478, 0
  %4481 = vmatprep.subr.mxu0 0.0
  %4482 = vmatpush1.msra.mxu0 %v4472
  %4483 = vmatprep.subr.mxu0 0.0
  %4484 = vmatpush1.msra.mxu0 %v4473
  %4485 = vmatprep.subr.mxu0 0.0
  %4486 = vmatpush1.msra.mxu0 %v4474
  %4487 = vmatprep.subr.mxu0 0.0
  %4488 = vmatpush1.msra.mxu0 %v4475
  %4489 = vmatprep.subr.mxu0 0.0
  %4490 = vmatpush1.msra.mxu0 0.0
  %4491 = vmatprep.subr.mxu0 0.0
  %4492 = vmatpush1.msra.mxu0 0.0
  %4493 = vmatprep.subr.mxu0 0.0
  %4494 = vmatpush1.msra.mxu0 0.0
  %4495 = vmatprep.subr.mxu0 0.0
  %4496 = vmatpush1.msra.mxu0 0.0
  %4497 = vmatprep.subr.mxu0 0.0
  %4498 = vmatpush1.msra.mxu0 0.0
  %4499 = vmatprep.subr.mxu0 0.0
  %4500 = vmatpush1.msra.mxu0 0.0
  %4501 = vmatprep.subr.mxu0 0.0
  %4502 = vmatpush1.msra.mxu0 0.0
  %4503 = vmatprep.subr.mxu0 0.0
  %4504 = vmatpush1.msra.mxu0 0.0
  %4505 = vmatprep.subr.mxu0 0.0
  %4506 = vmatpush1.msra.mxu0 0.0
  %4507 = vmatprep.subr.mxu0 0.0
  %4508 = vmatpush1.msra.mxu0 0.0
  %4509 = vmatprep.subr.mxu0 0.0
  %4510 = vmatpush1.msra.mxu0 0.0
  %4511 = vmatprep.subr.mxu0 0.0
  %4512 = vmatpush1.msra.mxu0 0.0
  %4513 = vmatprep.subr.mxu0 0.0
  %4514 = vmatpush1.msra.mxu0 0.0
  %4515 = vmatprep.subr.mxu0 0.0
  %4516 = vmatpush1.msra.mxu0 0.0
  %4517 = vmatprep.subr.mxu0 0.0
  %4518 = vmatpush1.msra.mxu0 0.0
  %4519 = vmatprep.subr.mxu0 0.0
  %4520 = vmatpush1.msra.mxu0 0.0
  %4521 = vmatprep.subr.mxu0 0.0
  %4522 = vmatpush1.msra.mxu0 0.0
  %4523 = vmatprep.subr.mxu0 0.0
  %4524 = vmatpush1.msra.mxu0 0.0
  %4525 = vmatprep.subr.mxu0 0.0
  %4526 = vmatpush1.msra.mxu0 0.0
  %4527 = vmatprep.subr.mxu0 0.0
  %4528 = vmatpush1.msra.mxu0 0.0
  %4529 = vmatprep.subr.mxu0 0.0
  %4530 = vmatpush1.msra.mxu0 0.0
  %4531 = vmatprep.subr.mxu0 0.0
  %4532 = vmatpush1.msra.mxu0 0.0
  %4533 = vmatprep.subr.mxu0 0.0
  %4534 = vmatpush1.msra.mxu0 0.0
  %4535 = vmatprep.subr.mxu0 0.0
  %4536 = vmatpush1.msra.mxu0 0.0
  %4537 = vmatprep.subr.mxu0 0.0
  %4538 = vmatpush1.msra.mxu0 0.0
  %4539 = vmatprep.subr.mxu0 0.0
  %4540 = vmatpush1.msra.mxu0 0.0
  %4541 = vmatprep.subr.mxu0 0.0
  %4542 = vmatpush1.msra.mxu0 0.0
  %4543 = vmatprep.subr.mxu0 0.0
  %4544 = vmatpush1.msra.mxu0 0.0
  %4545 = vmatprep.mubr.f32.mxu0 0.0
  %4546 = vmatmul.mubr.f32.gmra.mrb[0].mxu0 %v4479
  %v4547 = vpop.f32.mrb[0].mxu0
  %v4548 = vadd.f32 0.0, %v4547
  %v4549 = vpop.f32.mrb[0].mxu0
  %4550 = vdwg.mxu0
  %v4551 = vadd.f32 %v4468, %v4548
  %s4552 = scalar_lea.vmem %s17, 96
  %v4553 = vld [vmem:[%s4552] sm:$0xff]
  %v4554 = vld [vmem:[%s4552 + $0x8] sm:$0xff]
  %v4555 = vld [vmem:[%s4552 + $0x10] sm:$0xff]
  %v4556 = vld [vmem:[%s4552 + $0x18] sm:$0xff]
  %v4557 = vrot.slane %v4309, 3
  %v4558 = vrot.slane %v4310, 2
  %v4559 = vsel %vm4323, %v4558, %v4557
  %v4560 = vsel %vm185, %v4559, 0
  %4562 = vmatprep.subr.mxu0 0.0
  %4563 = vmatpush1.msra.mxu0 %v4553
  %4564 = vmatprep.subr.mxu0 0.0
  %4565 = vmatpush1.msra.mxu0 %v4554
  %4566 = vmatprep.subr.mxu0 0.0
  %4567 = vmatpush1.msra.mxu0 %v4555
  %4568 = vmatprep.subr.mxu0 0.0
  %4569 = vmatpush1.msra.mxu0 %v4556
  %4570 = vmatprep.subr.mxu0 0.0
  %4571 = vmatpush1.msra.mxu0 0.0
  %4572 = vmatprep.subr.mxu0 0.0
  %4573 = vmatpush1.msra.mxu0 0.0
  %4574 = vmatprep.subr.mxu0 0.0
  %4575 = vmatpush1.msra.mxu0 0.0
  %4576 = vmatprep.subr.mxu0 0.0
  %4577 = vmatpush1.msra.mxu0 0.0
  %4578 = vmatprep.subr.mxu0 0.0
  %4579 = vmatpush1.msra.mxu0 0.0
  %4580 = vmatprep.subr.mxu0 0.0
  %4581 = vmatpush1.msra.mxu0 0.0
  %4582 = vmatprep.subr.mxu0 0.0
  %4583 = vmatpush1.msra.mxu0 0.0
  %4584 = vmatprep.subr.mxu0 0.0
  %4585 = vmatpush1.msra.mxu0 0.0
  %4586 = vmatprep.subr.mxu0 0.0
  %4587 = vmatpush1.msra.mxu0 0.0
  %4588 = vmatprep.subr.mxu0 0.0
  %4589 = vmatpush1.msra.mxu0 0.0
  %4590 = vmatprep.subr.mxu0 0.0
  %4591 = vmatpush1.msra.mxu0 0.0
  %4592 = vmatprep.subr.mxu0 0.0
  %4593 = vmatpush1.msra.mxu0 0.0
  %4594 = vmatprep.subr.mxu0 0.0
  %4595 = vmatpush1.msra.mxu0 0.0
  %4596 = vmatprep.subr.mxu0 0.0
  %4597 = vmatpush1.msra.mxu0 0.0
  %4598 = vmatprep.subr.mxu0 0.0
  %4599 = vmatpush1.msra.mxu0 0.0
  %4600 = vmatprep.subr.mxu0 0.0
  %4601 = vmatpush1.msra.mxu0 0.0
  %4602 = vmatprep.subr.mxu0 0.0
  %4603 = vmatpush1.msra.mxu0 0.0
  %4604 = vmatprep.subr.mxu0 0.0
  %4605 = vmatpush1.msra.mxu0 0.0
  %4606 = vmatprep.subr.mxu0 0.0
  %4607 = vmatpush1.msra.mxu0 0.0
  %4608 = vmatprep.subr.mxu0 0.0
  %4609 = vmatpush1.msra.mxu0 0.0
  %4610 = vmatprep.subr.mxu0 0.0
  %4611 = vmatpush1.msra.mxu0 0.0
  %4612 = vmatprep.subr.mxu0 0.0
  %4613 = vmatpush1.msra.mxu0 0.0
  %4614 = vmatprep.subr.mxu0 0.0
  %4615 = vmatpush1.msra.mxu0 0.0
  %4616 = vmatprep.subr.mxu0 0.0
  %4617 = vmatpush1.msra.mxu0 0.0
  %4618 = vmatprep.subr.mxu0 0.0
  %4619 = vmatpush1.msra.mxu0 0.0
  %4620 = vmatprep.subr.mxu0 0.0
  %4621 = vmatpush1.msra.mxu0 0.0
  %4622 = vmatprep.subr.mxu0 0.0
  %4623 = vmatpush1.msra.mxu0 0.0
  %4624 = vmatprep.subr.mxu0 0.0
  %4625 = vmatpush1.msra.mxu0 0.0
  %4626 = vmatprep.mubr.f32.mxu0 0.0
  %4627 = vmatmul.mubr.f32.gmra.mrb[0].mxu0 %v4560
  %v4628 = vpop.f32.mrb[0].mxu0
  %v4629 = vadd.f32 0.0, %v4628
  %v4630 = vpop.f32.mrb[0].mxu0
  %4631 = vdwg.mxu0
  %v4632 = vadd.f32 %v4551, %v4629
  %s4633 = scalar_lea.vmem %s17, 128
  %v4634 = vld [vmem:[%s4633] sm:$0xff]
  %v4635 = vld [vmem:[%s4633 + $0x8] sm:$0xff]
  %v4636 = vld [vmem:[%s4633 + $0x10] sm:$0xff]
  %v4637 = vld [vmem:[%s4633 + $0x18] sm:$0xff]
  %v4638 = vrot.slane %v4309, 4
  %v4639 = vrot.slane %v4310, 3
  %v4640 = vsel %vm4323, %v4639, %v4638
  %v4641 = vsel %vm185, %v4640, 0
  %4643 = vmatprep.subr.mxu0 0.0
  %4644 = vmatpush1.msra.mxu0 %v4634
  %4645 = vmatprep.subr.mxu0 0.0
  %4646 = vmatpush1.msra.mxu0 %v4635
  %4647 = vmatprep.subr.mxu0 0.0
  %4648 = vmatpush1.msra.mxu0 %v4636
  %4649 = vmatprep.subr.mxu0 0.0
  %4650 = vmatpush1.msra.mxu0 %v4637
  %4651 = vmatprep.subr.mxu0 0.0
  %4652 = vmatpush1.msra.mxu0 0.0
  %4653 = vmatprep.subr.mxu0 0.0
  %4654 = vmatpush1.msra.mxu0 0.0
  %4655 = vmatprep.subr.mxu0 0.0
  %4656 = vmatpush1.msra.mxu0 0.0
  %4657 = vmatprep.subr.mxu0 0.0
  %4658 = vmatpush1.msra.mxu0 0.0
  %4659 = vmatprep.subr.mxu0 0.0
  %4660 = vmatpush1.msra.mxu0 0.0
  %4661 = vmatprep.subr.mxu0 0.0
  %4662 = vmatpush1.msra.mxu0 0.0
  %4663 = vmatprep.subr.mxu0 0.0
  %4664 = vmatpush1.msra.mxu0 0.0
  %4665 = vmatprep.subr.mxu0 0.0
  %4666 = vmatpush1.msra.mxu0 0.0
  %4667 = vmatprep.subr.mxu0 0.0
  %4668 = vmatpush1.msra.mxu0 0.0
  %4669 = vmatprep.subr.mxu0 0.0
  %4670 = vmatpush1.msra.mxu0 0.0
  %4671 = vmatprep.subr.mxu0 0.0
  %4672 = vmatpush1.msra.mxu0 0.0
  %4673 = vmatprep.subr.mxu0 0.0
  %4674 = vmatpush1.msra.mxu0 0.0
  %4675 = vmatprep.subr.mxu0 0.0
  %4676 = vmatpush1.msra.mxu0 0.0
  %4677 = vmatprep.subr.mxu0 0.0
  %4678 = vmatpush1.msra.mxu0 0.0
  %4679 = vmatprep.subr.mxu0 0.0
  %4680 = vmatpush1.msra.mxu0 0.0
  %4681 = vmatprep.subr.mxu0 0.0
  %4682 = vmatpush1.msra.mxu0 0.0
  %4683 = vmatprep.subr.mxu0 0.0
  %4684 = vmatpush1.msra.mxu0 0.0
  %4685 = vmatprep.subr.mxu0 0.0
  %4686 = vmatpush1.msra.mxu0 0.0
  %4687 = vmatprep.subr.mxu0 0.0
  %4688 = vmatpush1.msra.mxu0 0.0
  %4689 = vmatprep.subr.mxu0 0.0
  %4690 = vmatpush1.msra.mxu0 0.0
  %4691 = vmatprep.subr.mxu0 0.0
  %4692 = vmatpush1.msra.mxu0 0.0
  %4693 = vmatprep.subr.mxu0 0.0
  %4694 = vmatpush1.msra.mxu0 0.0
  %4695 = vmatprep.subr.mxu0 0.0
  %4696 = vmatpush1.msra.mxu0 0.0
  %4697 = vmatprep.subr.mxu0 0.0
  %4698 = vmatpush1.msra.mxu0 0.0
  %4699 = vmatprep.subr.mxu0 0.0
  %4700 = vmatpush1.msra.mxu0 0.0
  %4701 = vmatprep.subr.mxu0 0.0
  %4702 = vmatpush1.msra.mxu0 0.0
  %4703 = vmatprep.subr.mxu0 0.0
  %4704 = vmatpush1.msra.mxu0 0.0
  %4705 = vmatprep.subr.mxu0 0.0
  %4706 = vmatpush1.msra.mxu0 0.0
  %4707 = vmatprep.mubr.f32.mxu0 0.0
  %4708 = vmatmul.mubr.f32.gmra.mrb[0].mxu0 %v4641
  %v4709 = vpop.f32.mrb[0].mxu0
  %v4710 = vadd.f32 0.0, %v4709
  %v4711 = vpop.f32.mrb[0].mxu0
  %4712 = vdwg.mxu0
  %v4713 = vadd.f32 %v4632, %v4710
  %s4714 = scalar_lea.vmem %s17, 160
  %v4715 = vld [vmem:[%s4714] sm:$0xff]
  %v4716 = vld [vmem:[%s4714 + $0x8] sm:$0xff]
  %v4717 = vld [vmem:[%s4714 + $0x10] sm:$0xff]
  %v4718 = vld [vmem:[%s4714 + $0x18] sm:$0xff]
  %v4719 = vrot.slane %v4309, 5
  %v4720 = vrot.slane %v4310, 4
  %v4721 = vsel %vm4323, %v4720, %v4719
  %v4722 = vsel %vm185, %v4721, 0
  %4724 = vmatprep.subr.mxu0 0.0
  %4725 = vmatpush1.msra.mxu0 %v4715
  %4726 = vmatprep.subr.mxu0 0.0
  %4727 = vmatpush1.msra.mxu0 %v4716
  %4728 = vmatprep.subr.mxu0 0.0
  %4729 = vmatpush1.msra.mxu0 %v4717
  %4730 = vmatprep.subr.mxu0 0.0
  %4731 = vmatpush1.msra.mxu0 %v4718
  %4732 = vmatprep.subr.mxu0 0.0
  %4733 = vmatpush1.msra.mxu0 0.0
  %4734 = vmatprep.subr.mxu0 0.0
  %4735 = vmatpush1.msra.mxu0 0.0
  %4736 = vmatprep.subr.mxu0 0.0
  %4737 = vmatpush1.msra.mxu0 0.0
  %4738 = vmatprep.subr.mxu0 0.0
  %4739 = vmatpush1.msra.mxu0 0.0
  %4740 = vmatprep.subr.mxu0 0.0
  %4741 = vmatpush1.msra.mxu0 0.0
  %4742 = vmatprep.subr.mxu0 0.0
  %4743 = vmatpush1.msra.mxu0 0.0
  %4744 = vmatprep.subr.mxu0 0.0
  %4745 = vmatpush1.msra.mxu0 0.0
  %4746 = vmatprep.subr.mxu0 0.0
  %4747 = vmatpush1.msra.mxu0 0.0
  %4748 = vmatprep.subr.mxu0 0.0
  %4749 = vmatpush1.msra.mxu0 0.0
  %4750 = vmatprep.subr.mxu0 0.0
  %4751 = vmatpush1.msra.mxu0 0.0
  %4752 = vmatprep.subr.mxu0 0.0
  %4753 = vmatpush1.msra.mxu0 0.0
  %4754 = vmatprep.subr.mxu0 0.0
  %4755 = vmatpush1.msra.mxu0 0.0
  %4756 = vmatprep.subr.mxu0 0.0
  %4757 = vmatpush1.msra.mxu0 0.0
  %4758 = vmatprep.subr.mxu0 0.0
  %4759 = vmatpush1.msra.mxu0 0.0
  %4760 = vmatprep.subr.mxu0 0.0
  %4761 = vmatpush1.msra.mxu0 0.0
  %4762 = vmatprep.subr.mxu0 0.0
  %4763 = vmatpush1.msra.mxu0 0.0
  %4764 = vmatprep.subr.mxu0 0.0
  %4765 = vmatpush1.msra.mxu0 0.0
  %4766 = vmatprep.subr.mxu0 0.0
  %4767 = vmatpush1.msra.mxu0 0.0
  %4768 = vmatprep.subr.mxu0 0.0
  %4769 = vmatpush1.msra.mxu0 0.0
  %4770 = vmatprep.subr.mxu0 0.0
  %4771 = vmatpush1.msra.mxu0 0.0
  %4772 = vmatprep.subr.mxu0 0.0
  %4773 = vmatpush1.msra.mxu0 0.0
  %4774 = vmatprep.subr.mxu0 0.0
  %4775 = vmatpush1.msra.mxu0 0.0
  %4776 = vmatprep.subr.mxu0 0.0
  %4777 = vmatpush1.msra.mxu0 0.0
  %4778 = vmatprep.subr.mxu0 0.0
  %4779 = vmatpush1.msra.mxu0 0.0
  %4780 = vmatprep.subr.mxu0 0.0
  %4781 = vmatpush1.msra.mxu0 0.0
  %4782 = vmatprep.subr.mxu0 0.0
  %4783 = vmatpush1.msra.mxu0 0.0
  %4784 = vmatprep.subr.mxu0 0.0
  %4785 = vmatpush1.msra.mxu0 0.0
  %4786 = vmatprep.subr.mxu0 0.0
  %4787 = vmatpush1.msra.mxu0 0.0
  %4788 = vmatprep.mubr.f32.mxu0 0.0
  %4789 = vmatmul.mubr.f32.gmra.mrb[0].mxu0 %v4722
  %v4790 = vpop.f32.mrb[0].mxu0
  %v4791 = vadd.f32 0.0, %v4790
  %v4792 = vpop.f32.mrb[0].mxu0
  %4793 = vdwg.mxu0
  %v4794 = vadd.f32 %v4713, %v4791
  %s4795 = scalar_lea.vmem %s17, 192
  %v4796 = vld [vmem:[%s4795] sm:$0xff]
  %v4797 = vld [vmem:[%s4795 + $0x8] sm:$0xff]
  %v4798 = vld [vmem:[%s4795 + $0x10] sm:$0xff]
  %v4799 = vld [vmem:[%s4795 + $0x18] sm:$0xff]
  %v4800 = vrot.slane %v4309, 6
  %v4801 = vrot.slane %v4310, 5
  %v4802 = vsel %vm4323, %v4801, %v4800
  %v4803 = vsel %vm185, %v4802, 0
  %4805 = vmatprep.subr.mxu0 0.0
  %4806 = vmatpush1.msra.mxu0 %v4796
  %4807 = vmatprep.subr.mxu0 0.0
  %4808 = vmatpush1.msra.mxu0 %v4797
  %4809 = vmatprep.subr.mxu0 0.0
  %4810 = vmatpush1.msra.mxu0 %v4798
  %4811 = vmatprep.subr.mxu0 0.0
  %4812 = vmatpush1.msra.mxu0 %v4799
  %4813 = vmatprep.subr.mxu0 0.0
  %4814 = vmatpush1.msra.mxu0 0.0
  %4815 = vmatprep.subr.mxu0 0.0
  %4816 = vmatpush1.msra.mxu0 0.0
  %4817 = vmatprep.subr.mxu0 0.0
  %4818 = vmatpush1.msra.mxu0 0.0
  %4819 = vmatprep.subr.mxu0 0.0
  %4820 = vmatpush1.msra.mxu0 0.0
  %4821 = vmatprep.subr.mxu0 0.0
  %4822 = vmatpush1.msra.mxu0 0.0
  %4823 = vmatprep.subr.mxu0 0.0
  %4824 = vmatpush1.msra.mxu0 0.0
  %4825 = vmatprep.subr.mxu0 0.0
  %4826 = vmatpush1.msra.mxu0 0.0
  %4827 = vmatprep.subr.mxu0 0.0
  %4828 = vmatpush1.msra.mxu0 0.0
  %4829 = vmatprep.subr.mxu0 0.0
  %4830 = vmatpush1.msra.mxu0 0.0
  %4831 = vmatprep.subr.mxu0 0.0
  %4832 = vmatpush1.msra.mxu0 0.0
  %4833 = vmatprep.subr.mxu0 0.0
  %4834 = vmatpush1.msra.mxu0 0.0
  %4835 = vmatprep.subr.mxu0 0.0
  %4836 = vmatpush1.msra.mxu0 0.0
  %4837 = vmatprep.subr.mxu0 0.0
  %4838 = vmatpush1.msra.mxu0 0.0
  %4839 = vmatprep.subr.mxu0 0.0
  %4840 = vmatpush1.msra.mxu0 0.0
  %4841 = vmatprep.subr.mxu0 0.0
  %4842 = vmatpush1.msra.mxu0 0.0
  %4843 = vmatprep.subr.mxu0 0.0
  %4844 = vmatpush1.msra.mxu0 0.0
  %4845 = vmatprep.subr.mxu0 0.0
  %4846 = vmatpush1.msra.mxu0 0.0
  %4847 = vmatprep.subr.mxu0 0.0
  %4848 = vmatpush1.msra.mxu0 0.0
  %4849 = vmatprep.subr.mxu0 0.0
  %4850 = vmatpush1.msra.mxu0 0.0
  %4851 = vmatprep.subr.mxu0 0.0
  %4852 = vmatpush1.msra.mxu0 0.0
  %4853 = vmatprep.subr.mxu0 0.0
  %4854 = vmatpush1.msra.mxu0 0.0
  %4855 = vmatprep.subr.mxu0 0.0
  %4856 = vmatpush1.msra.mxu0 0.0
  %4857 = vmatprep.subr.mxu0 0.0
  %4858 = vmatpush1.msra.mxu0 0.0
  %4859 = vmatprep.subr.mxu0 0.0
  %4860 = vmatpush1.msra.mxu0 0.0
  %4861 = vmatprep.subr.mxu0 0.0
  %4862 = vmatpush1.msra.mxu0 0.0
  %4863 = vmatprep.subr.mxu0 0.0
  %4864 = vmatpush1.msra.mxu0 0.0
  %4865 = vmatprep.subr.mxu0 0.0
  %4866 = vmatpush1.msra.mxu0 0.0
  %4867 = vmatprep.subr.mxu0 0.0
  %4868 = vmatpush1.msra.mxu0 0.0
  %4869 = vmatprep.mubr.f32.mxu0 0.0
  %4870 = vmatmul.mubr.f32.gmra.mrb[0].mxu0 %v4803
  %v4871 = vpop.f32.mrb[0].mxu0
  %v4872 = vadd.f32 0.0, %v4871
  %v4873 = vpop.f32.mrb[0].mxu0
  %4874 = vdwg.mxu0
  %v4875 = vadd.f32 %v4794, %v4872
  %s4876 = scalar_lea.vmem %s17, 224
  %v4877 = vld [vmem:[%s4876] sm:$0xff]
  %v4878 = vld [vmem:[%s4876 + $0x8] sm:$0xff]
  %v4879 = vld [vmem:[%s4876 + $0x10] sm:$0xff]
  %v4880 = vld [vmem:[%s4876 + $0x18] sm:$0xff]
  %v4881 = vrot.slane %v4309, 7
  %v4882 = vrot.slane %v4310, 6
  %v4883 = vsel %vm4323, %v4882, %v4881
  %v4884 = vsel %vm185, %v4883, 0
  %4886 = vmatprep.subr.mxu0 0.0
  %4887 = vmatpush1.msra.mxu0 %v4877
  %4888 = vmatprep.subr.mxu0 0.0
  %4889 = vmatpush1.msra.mxu0 %v4878
  %4890 = vmatprep.subr.mxu0 0.0
  %4891 = vmatpush1.msra.mxu0 %v4879
  %4892 = vmatprep.subr.mxu0 0.0
  %4893 = vmatpush1.msra.mxu0 %v4880
  %4894 = vmatprep.subr.mxu0 0.0
  %4895 = vmatpush1.msra.mxu0 0.0
  %4896 = vmatprep.subr.mxu0 0.0
  %4897 = vmatpush1.msra.mxu0 0.0
  %4898 = vmatprep.subr.mxu0 0.0
  %4899 = vmatpush1.msra.mxu0 0.0
  %4900 = vmatprep.subr.mxu0 0.0
  %4901 = vmatpush1.msra.mxu0 0.0
  %4902 = vmatprep.subr.mxu0 0.0
  %4903 = vmatpush1.msra.mxu0 0.0
  %4904 = vmatprep.subr.mxu0 0.0
  %4905 = vmatpush1.msra.mxu0 0.0
  %4906 = vmatprep.subr.mxu0 0.0
  %4907 = vmatpush1.msra.mxu0 0.0
  %4908 = vmatprep.subr.mxu0 0.0
  %4909 = vmatpush1.msra.mxu0 0.0
  %4910 = vmatprep.subr.mxu0 0.0
  %4911 = vmatpush1.msra.mxu0 0.0
  %4912 = vmatprep.subr.mxu0 0.0
  %4913 = vmatpush1.msra.mxu0 0.0
  %4914 = vmatprep.subr.mxu0 0.0
  %4915 = vmatpush1.msra.mxu0 0.0
  %4916 = vmatprep.subr.mxu0 0.0
  %4917 = vmatpush1.msra.mxu0 0.0
  %4918 = vmatprep.subr.mxu0 0.0
  %4919 = vmatpush1.msra.mxu0 0.0
  %4920 = vmatprep.subr.mxu0 0.0
  %4921 = vmatpush1.msra.mxu0 0.0
  %4922 = vmatprep.subr.mxu0 0.0
  %4923 = vmatpush1.msra.mxu0 0.0
  %4924 = vmatprep.subr.mxu0 0.0
  %4925 = vmatpush1.msra.mxu0 0.0
  %4926 = vmatprep.subr.mxu0 0.0
  %4927 = vmatpush1.msra.mxu0 0.0
  %4928 = vmatprep.subr.mxu0 0.0
  %4929 = vmatpush1.msra.mxu0 0.0
  %4930 = vmatprep.subr.mxu0 0.0
  %4931 = vmatpush1.msra.mxu0 0.0
  %4932 = vmatprep.subr.mxu0 0.0
  %4933 = vmatpush1.msra.mxu0 0.0
  %4934 = vmatprep.subr.mxu0 0.0
  %4935 = vmatpush1.msra.mxu0 0.0
  %4936 = vmatprep.subr.mxu0 0.0
  %4937 = vmatpush1.msra.mxu0 0.0
  %4938 = vmatprep.subr.mxu0 0.0
  %4939 = vmatpush1.msra.mxu0 0.0
  %4940 = vmatprep.subr.mxu0 0.0
  %4941 = vmatpush1.msra.mxu0 0.0
  %4942 = vmatprep.subr.mxu0 0.0
  %4943 = vmatpush1.msra.mxu0 0.0
  %4944 = vmatprep.subr.mxu0 0.0
  %4945 = vmatpush1.msra.mxu0 0.0
  %4946 = vmatprep.subr.mxu0 0.0
  %4947 = vmatpush1.msra.mxu0 0.0
  %4948 = vmatprep.subr.mxu0 0.0
  %4949 = vmatpush1.msra.mxu0 0.0
  %4950 = vmatprep.mubr.f32.mxu0 0.0
  %4951 = vmatmul.mubr.f32.gmra.mrb[0].mxu0 %v4884
  %v4952 = vpop.f32.mrb[0].mxu0
  %v4953 = vadd.f32 0.0, %v4952
  %v4954 = vpop.f32.mrb[0].mxu0
  %4955 = vdwg.mxu0
  %v4956 = vadd.f32 %v4875, %v4953
  %v4957 = vld [vmem:[#allocation2] sm:$0x1]
  %v4959 = vlaneseq
  %v4960 = vshrl.u32 %v4959, 7
  %v4961 = vsub.s32 0, %v4960
  %v4962 = vrot.slane %v4957, %v4961
  %v4964 = vadd.f32 %v4956, %v4962
  %vm4965 = vcmask 1024
  %4966 = vst.msk [vmem:[%s19] sm:$0x3] %vm4965, %v4964
  // Predicated region
  $region78: #{forward.1} parent=0 // pred_check
    _
  $region79: #{forward.1} parent=0 // pred_check_branch
    %4968 = sbr.rel (0) target = $region81
  $region80: #{forward.1} parent=0 // pred_region
    _
  $region81: #{forward.1} parent=0 // pred_fallthru
    _
  // Predicated region
  $region82: #{forward.1} parent=0 // pred_check
    _
  $region83: #{forward.1} parent=0 // pred_check_branch
    %4970 = sbr.rel (0) target = $region85
  $region84: #{forward.1} parent=0 // pred_region
    _
  $region85: #{forward.1} parent=0 // pred_fallthru
    _

</llo_original>
